<compile_context>
chip_gen: v7x
topology: tpu7x:2x2x1
jax: 0.10.0
libtpu: 0.0.40
codegen_flags: <defaults>
</compile_context>

<pallas_src>
import functools

import jax
import jax.numpy as jnp
from jax.experimental import pallas as pl
from jax.experimental.pallas import tpu as pltpu


def _round_up(x, m):
    return ((x + m - 1) // m) * m


def tnet_forward(x_ncw, params, *, k, tb=8, tn=128):
    """x_ncw: (B, k, N) float32, PyTorch Conv1d layout. Returns (B, k, k).

    tb: batch elements per grid step (bigger on v5e/v6e, keep >=2 grid steps
        on the batch axis for v7x's two TensorCores).
    tn: points per grid step along the reduction axis.
    """
    (w1, b1, w2, b2, w3, b3, wf1, bf1, wf2, bf2, wf3, bf3) = params
    bs, k_in, n_pts = x_ncw.shape
    assert k_in == k
    kp = w1.shape[0]          # conv1 input channels padded to a multiple of 8
    kk = k * k
    c3 = w3.shape[1]          # 1024

    tb = max(1, min(tb, bs))
    tn = min(tn, _round_up(n_pts, 8))
    b_pad = _round_up(bs, tb)
    n_pad = _round_up(n_pts, tn)
    n_btiles = b_pad // tb
    n_ntiles = n_pad // tn

    # (B, k, N) -> (B, N, k), pad channels to kp and pad batch / points.
    x = jnp.transpose(x_ncw, (0, 2, 1)).astype(jnp.float32)
    x = jnp.pad(x, ((0, b_pad - bs), (0, n_pad - n_pts), (0, kp - k)))

    def kernel(x_ref,
               w1_ref, b1_ref, w2_ref, b2_ref, w3_ref, b3_ref,
               wf1_ref, bf1_ref, wf2_ref, bf2_ref, wf3_ref, bf3_ref,
               out_ref, pool_acc):
        n_idx = pl.program_id(1)

        @pl.when(n_idx == 0)
        def _init():
            pool_acc[...] = jnp.full_like(pool_acc, -jnp.inf)

        # (TB, TN, KP) -> (TB*TN, KP): MXU-sized M for the conv matmuls.
        x_tile = x_ref[...].reshape(tb * tn, kp)

        # conv1 + bn1 + relu (pointwise conv == matmul over channels)
        h = jnp.dot(x_tile.astype(jnp.bfloat16), w1_ref[...],
                    preferred_element_type=jnp.float32)
        h = jnp.maximum(h + b1_ref[...], 0.0)                  # (TB*TN, 64)

        # conv2 + bn2 + relu
        h = jnp.dot(h.astype(jnp.bfloat16), w2_ref[...],
                    preferred_element_type=jnp.float32)
        h = jnp.maximum(h + b2_ref[...], 0.0)                  # (TB*TN, 128)

        # conv3 + bn3 + relu
        h = jnp.dot(h.astype(jnp.bfloat16), w3_ref[...],
                    preferred_element_type=jnp.float32)
        h = jnp.maximum(h + b3_ref[...], 0.0)                  # (TB*TN, 1024)

        # Running max-pool over points (this N tile).
        h = h.reshape(tb, tn, c3)
        if n_pts % tn != 0:
            # Mask padded point rows so they never win the max.
            row = jax.lax.broadcasted_iota(jnp.int32, (1, tn, 1), 1)
            valid = (n_idx * tn + row) < n_pts
            h = jnp.where(valid, h, -jnp.inf)
        tile_max = jnp.max(h, axis=1)                          # (TB, 1024)
        pool_acc[...] = jnp.maximum(pool_acc[...], tile_max)

        # FC stack only once per batch tile, on the last N step.
        @pl.when(n_idx == pl.num_programs(1) - 1)
        def _fc():
            pool = pool_acc[...]                               # (TB, 1024) f32
            f = jnp.dot(pool.astype(jnp.bfloat16), wf1_ref[...],
                        preferred_element_type=jnp.float32)
            f = jnp.maximum(f + bf1_ref[...], 0.0)             # (TB, 512)
            f = jnp.dot(f.astype(jnp.bfloat16), wf2_ref[...],
                        preferred_element_type=jnp.float32)
            f = jnp.maximum(f + bf2_ref[...], 0.0)             # (TB, 256)
            out = jnp.dot(f.astype(jnp.bfloat16), wf3_ref[...],
                          preferred_element_type=jnp.float32)
            # identity matrix already folded into bf3
            out_ref[0] = out + bf3_ref[...]                    # (TB, k*k)

    def full_spec(shape):
        nd = len(shape)
        return pl.BlockSpec(shape, lambda b, n, _nd=nd: (0,) * _nd)

    grid_spec = pltpu.PrefetchScalarGridSpec(
        num_scalar_prefetch=0,
        grid=(n_btiles, n_ntiles),
        in_specs=[
            pl.BlockSpec((tb, tn, kp), lambda b, n: (b, n, 0)),
            full_spec(w1.shape), full_spec(b1.shape),
            full_spec(w2.shape), full_spec(b2.shape),
            full_spec(w3.shape), full_spec(b3.shape),
            full_spec(wf1.shape), full_spec(bf1.shape),
            full_spec(wf2.shape), full_spec(bf2.shape),
            full_spec(wf3.shape), full_spec(bf3.shape),
        ],
        # Output block revisited across the N (reduction) axis; written only
        # on the last N step.
        out_specs=pl.BlockSpec((1, tb, kk), lambda b, n: (b, 0, 0)),
        scratch_shapes=[pltpu.VMEM((tb, c3), jnp.float32)],
    )

    out = pl.pallas_call(
        kernel,
        out_shape=jax.ShapeDtypeStruct((n_btiles, tb, kk), jnp.float32),
        grid_spec=grid_spec,
        compiler_params=pltpu.CompilerParams(
            dimension_semantics=("parallel", "arbitrary")),
    )(x, w1, b1, w2, b2, w3, b3, wf1, bf1, wf2, bf2, wf3, bf3)

    # glue: drop batch padding, reshape flattened transform to (B, k, k).
    return out.reshape(b_pad, kk)[:bs].reshape(bs, k, k)


# ---------------------------------------------------------------------------
# Deterministic parameter construction (synthetic, inference-mode BN folding).
# Weights are returned BN-folded, transposed to (Cin, Cout), cast to bf16,
# conv1 padded to 8 input channels, and the identity folded into the fc3 bias.
# ---------------------------------------------------------------------------

def make_tnet_params(key, k=3):
    kp = 8 * ((k + 7) // 8)

    def layer(key, cout, cin, with_bn=True, scale=0.05, eps=1e-5):
        ks = jax.random.split(key, 6)
        w = scale * jax.random.normal(ks[0], (cout, cin), jnp.float32)
        b = scale * jax.random.normal(ks[1], (cout,), jnp.float32)
        if with_bn:
            gamma = 1.0 + 0.1 * jax.random.normal(ks[2], (cout,), jnp.float32)
            beta = 0.1 * jax.random.normal(ks[3], (cout,), jnp.float32)
            mean = 0.1 * jax.random.normal(ks[4], (cout,), jnp.float32)
            var = jnp.abs(
                1.0 + 0.1 * jax.random.normal(ks[5], (cout,), jnp.float32))
            s = gamma / jnp.sqrt(var + eps)
            w = w * s[:, None]
            b = (b - mean) * s + beta
        return w.T, b[None, :]                     # (Cin, Cout), (1, Cout)

    keys = jax.random.split(key, 6)
    w1, b1 = layer(keys[0], 64, k)                 # conv1 + bn1
    w2, b2 = layer(keys[1], 128, 64)               # conv2 + bn2
    w3, b3 = layer(keys[2], 1024, 128)             # conv3 + bn3
    wf1, bf1 = layer(keys[3], 512, 1024)           # fc1 + bn4
    wf2, bf2 = layer(keys[4], 256, 512)            # fc2 + bn5
    wf3, bf3 = layer(keys[5], k * k, 256, with_bn=False)  # fc3

    # Pad conv1 input channels with zeros (layout hygiene; math unchanged).
    w1 = jnp.pad(w1, ((0, kp - k), (0, 0)))
    # Fold torch.eye(k).repeat(bs,1,1) into the fc3 bias.
    bf3 = bf3 + jnp.eye(k, dtype=jnp.float32).reshape(1, k * k)

    def prep(w, b):
        return (w.astype(jnp.bfloat16), b.astype(jnp.float32))

    return (prep(w1, b1) + prep(w2, b2) + prep(w3, b3) +
            prep(wf1, bf1) + prep(wf2, bf2) + prep(wf3, bf3))


def tnet_reference(x_ncw, params, *, k):
    """Pure-JAX reference of the same forward (eval-mode BN, bf16 matmul
    inputs with f32 accumulation), for checking the Pallas kernel."""
    (w1, b1, w2, b2, w3, b3, wf1, bf1, wf2, bf2, wf3, bf3) = params
    bs, _, _ = x_ncw.shape
    kp = w1.shape[0]
    x = jnp.transpose(x_ncw, (0, 2, 1)).astype(jnp.float32)   # (B, N, k)
    x = jnp.pad(x, ((0, 0), (0, 0), (0, kp - k)))

    def mm(a, w):
        # Emulate bf16-input / f32-accumulate MXU matmul.
        return jnp.matmul(a.astype(jnp.bfloat16).astype(jnp.float32),
                          w.astype(jnp.float32))

    h = jnp.maximum(mm(x, w1) + b1, 0.0)
    h = jnp.maximum(mm(h, w2) + b2, 0.0)
    h = jnp.maximum(mm(h, w3) + b3, 0.0)
    pool = jnp.max(h, axis=1)                                  # (B, 1024)
    f = jnp.maximum(mm(pool, wf1) + bf1[0], 0.0)
    f = jnp.maximum(mm(f, wf2) + bf2[0], 0.0)
    out = mm(f, wf3) + bf3[0]                                  # eye folded in
    return out.reshape(bs, k, k)


if __name__ == "__main__":
    K = 3          # Tnet k (3x3 spatial transform)
    BS = 4         # batch size
    N_PTS = 200    # number of points (not a multiple of the 128-point tile ->
                   # exercises the masked max-pool path)

    key = jax.random.PRNGKey(0)
    k_params, k_input = jax.random.split(key)

    params = make_tnet_params(k_params, k=K)
    x = jax.random.normal(k_input, (BS, K, N_PTS), jnp.float32)  # NCW layout

    # tb=2 keeps two "parallel" batch grid steps (both v7x TensorCores busy);
    # tn=128 tiles the point/reduction axis.
    fwd = jax.jit(functools.partial(tnet_forward, k=K, tb=2, tn=128))
    out = jax.block_until_ready(fwd(x, params))

    ref = tnet_reference(x, params, k=K)
    assert out.shape == (BS, K, K), out.shape
    err = float(jnp.max(jnp.abs(out - ref)))
    assert jnp.allclose(out, ref, atol=2e-3, rtol=2e-3), (
        "mismatch vs reference, max abs err %e" % err)

    print("KERNEL_OK")
</pallas_src>

<mosaic_0001>
module attributes {stable_mosaic.version = 11 : i64} {
  func.func @kernel(%arg0: i32, %arg1: i32, %arg2: memref<2x128x8xf32, #tpu.memory_space<vmem>>, %arg3: memref<8x64xbf16, #tpu.memory_space<vmem>>, %arg4: memref<1x64xf32, #tpu.memory_space<vmem>>, %arg5: memref<64x128xbf16, #tpu.memory_space<vmem>>, %arg6: memref<1x128xf32, #tpu.memory_space<vmem>>, %arg7: memref<128x1024xbf16, #tpu.memory_space<vmem>>, %arg8: memref<1x1024xf32, #tpu.memory_space<vmem>>, %arg9: memref<1024x512xbf16, #tpu.memory_space<vmem>>, %arg10: memref<1x512xf32, #tpu.memory_space<vmem>>, %arg11: memref<512x256xbf16, #tpu.memory_space<vmem>>, %arg12: memref<1x256xf32, #tpu.memory_space<vmem>>, %arg13: memref<256x9xbf16, #tpu.memory_space<vmem>>, %arg14: memref<1x9xf32, #tpu.memory_space<vmem>>, %arg15: memref<1x2x9xf32, #tpu.memory_space<vmem>>, %arg16: memref<2x1024xf32, #tpu.memory_space<vmem>>) attributes {dimension_semantics = [#tpu.dimension_semantics<parallel>, #tpu.dimension_semantics<arbitrary>], iteration_bounds = array<i64: 2, 2>, scalar_prefetch = 0 : i64, scratch_operands = 1 : i64, tpu.core_type = #tpu.core_type<tc>, window_params = [{transform_indices = @transform_0, window_bounds = array<i64: 2, 128, 8>}, {pipeline_mode = #tpu.pipeline_mode<synchronous>, transform_indices = @transform_1, window_bounds = array<i64: 8, 64>}, {pipeline_mode = #tpu.pipeline_mode<synchronous>, transform_indices = @transform_2, window_bounds = array<i64: 1, 64>}, {pipeline_mode = #tpu.pipeline_mode<synchronous>, transform_indices = @transform_3, window_bounds = array<i64: 64, 128>}, {pipeline_mode = #tpu.pipeline_mode<synchronous>, transform_indices = @transform_4, window_bounds = array<i64: 1, 128>}, {pipeline_mode = #tpu.pipeline_mode<synchronous>, transform_indices = @transform_5, window_bounds = array<i64: 128, 1024>}, {pipeline_mode = #tpu.pipeline_mode<synchronous>, transform_indices = @transform_6, window_bounds = array<i64: 1, 1024>}, {pipeline_mode = #tpu.pipeline_mode<synchronous>, transform_indices = @transform_7, window_bounds = array<i64: 1024, 512>}, {pipeline_mode = #tpu.pipeline_mode<synchronous>, transform_indices = @transform_8, window_bounds = array<i64: 1, 512>}, {pipeline_mode = #tpu.pipeline_mode<synchronous>, transform_indices = @transform_9, window_bounds = array<i64: 512, 256>}, {pipeline_mode = #tpu.pipeline_mode<synchronous>, transform_indices = @transform_10, window_bounds = array<i64: 1, 256>}, {pipeline_mode = #tpu.pipeline_mode<synchronous>, transform_indices = @transform_11, window_bounds = array<i64: 256, 9>}, {pipeline_mode = #tpu.pipeline_mode<synchronous>, transform_indices = @transform_12, window_bounds = array<i64: 1, 9>}, {transform_indices = @transform_13, window_bounds = array<i64: 1, 2, 9>}]} {
    %c0_i32 = arith.constant 0 : i32
    %0 = arith.cmpi eq, %arg1, %c0_i32 : i32
    %1 = arith.extui %0 : i1 to i32
    %c0_i32_0 = arith.constant 0 : i32
    %2 = arith.cmpi ne, %1, %c0_i32_0 : i32
    scf.if %2 {
      %cst_27 = arith.constant 0xFF800000 : f32
      %47 = vector.broadcast %cst_27 : f32 to vector<2x1024xf32>
      %c0_28 = arith.constant 0 : index
      %c0_29 = arith.constant 0 : index
      %48 = vector.load %arg16[%c0_28, %c0_29] : memref<2x1024xf32, #tpu.memory_space<vmem>>, vector<2x1024xf32>
      tpu.vector_store %arg16[%c0_28, %c0_29], %47 {strides = array<i32>} : memref<2x1024xf32, #tpu.memory_space<vmem>>, vector<2x1024xf32>,
    } else {
    }
    %c0 = arith.constant 0 : index
    %c0_1 = arith.constant 0 : index
    %c0_2 = arith.constant 0 : index
    %3 = vector.load %arg2[%c0, %c0_1, %c0_2] : memref<2x128x8xf32, #tpu.memory_space<vmem>>, vector<2x128x8xf32>
    %4 = vector.shape_cast %3 : vector<2x128x8xf32> to vector<256x8xf32>
    %5 = arith.truncf %4 : vector<256x8xf32> to vector<256x8xbf16>
    %c0_3 = arith.constant 0 : index
    %c0_4 = arith.constant 0 : index
    %6 = vector.load %arg3[%c0_3, %c0_4] : memref<8x64xbf16, #tpu.memory_space<vmem>>, vector<8x64xbf16>
    %cst = arith.constant dense<0.000000e+00> : vector<256x64xf32>
    %7 = tpu.matmul %5, %6, %cst {dimension_numbers = #tpu.dot_dimension_numbers<[1], [0], [0], [1], [0, 0, 1, 1], [], []>} : vector<256x8xbf16>, vector<8x64xbf16>, vector<256x64xf32> -> vector<256x64xf32>
    %c0_5 = arith.constant 0 : index
    %c0_6 = arith.constant 0 : index
    %8 = vector.load %arg4[%c0_5, %c0_6] : memref<1x64xf32, #tpu.memory_space<vmem>>, vector<1x64xf32>
    %9 = vector.broadcast %8 : vector<1x64xf32> to vector<256x64xf32>
    %10 = arith.addf %7, %9 : vector<256x64xf32>
    %cst_7 = arith.constant 0.000000e+00 : f32
    %11 = vector.broadcast %cst_7 : f32 to vector<256x64xf32>
    %12 = arith.maximumf %10, %11 : vector<256x64xf32>
    %13 = arith.truncf %12 : vector<256x64xf32> to vector<256x64xbf16>
    %c0_8 = arith.constant 0 : index
    %c0_9 = arith.constant 0 : index
    %14 = vector.load %arg5[%c0_8, %c0_9] : memref<64x128xbf16, #tpu.memory_space<vmem>>, vector<64x128xbf16>
    %cst_10 = arith.constant dense<0.000000e+00> : vector<256x128xf32>
    %15 = tpu.matmul %13, %14, %cst_10 {dimension_numbers = #tpu.dot_dimension_numbers<[1], [0], [0], [1], [0, 0, 1, 1], [], []>} : vector<256x64xbf16>, vector<64x128xbf16>, vector<256x128xf32> -> vector<256x128xf32>
    %c0_11 = arith.constant 0 : index
    %c0_12 = arith.constant 0 : index
    %16 = vector.load %arg6[%c0_11, %c0_12] : memref<1x128xf32, #tpu.memory_space<vmem>>, vector<1x128xf32>
    %17 = vector.broadcast %16 : vector<1x128xf32> to vector<256x128xf32>
    %18 = arith.addf %15, %17 : vector<256x128xf32>
    %cst_13 = arith.constant 0.000000e+00 : f32
    %19 = vector.broadcast %cst_13 : f32 to vector<256x128xf32>
    %20 = arith.maximumf %18, %19 : vector<256x128xf32>
    %21 = arith.truncf %20 : vector<256x128xf32> to vector<256x128xbf16>
    %c0_14 = arith.constant 0 : index
    %c0_15 = arith.constant 0 : index
    %22 = vector.load %arg7[%c0_14, %c0_15] : memref<128x1024xbf16, #tpu.memory_space<vmem>>, vector<128x1024xbf16>
    %cst_16 = arith.constant dense<0.000000e+00> : vector<256x1024xf32>
    %23 = tpu.matmul %21, %22, %cst_16 {dimension_numbers = #tpu.dot_dimension_numbers<[1], [0], [0], [1], [0, 0, 1, 1], [], []>} : vector<256x128xbf16>, vector<128x1024xbf16>, vector<256x1024xf32> -> vector<256x1024xf32>
    %c0_17 = arith.constant 0 : index
    %c0_18 = arith.constant 0 : index
    %24 = vector.load %arg8[%c0_17, %c0_18] : memref<1x1024xf32, #tpu.memory_space<vmem>>, vector<1x1024xf32>
    %25 = vector.broadcast %24 : vector<1x1024xf32> to vector<256x1024xf32>
    %26 = arith.addf %23, %25 : vector<256x1024xf32>
    %cst_19 = arith.constant 0.000000e+00 : f32
    %27 = vector.broadcast %cst_19 : f32 to vector<256x1024xf32>
    %28 = arith.maximumf %26, %27 : vector<256x1024xf32>
    %29 = vector.shape_cast %28 : vector<256x1024xf32> to vector<2x128x1024xf32>
    %30 = tpu.iota {dimensions = array<i32: 1>} : vector<1x128x1xi32>
    %c128_i32 = arith.constant 128 : i32
    %31 = arith.muli %arg1, %c128_i32 : i32
    %32 = vector.broadcast %31 : i32 to vector<1x128x1xi32>
    %33 = arith.addi %32, %30 : vector<1x128x1xi32>
    %c200_i32 = arith.constant 200 : i32
    %34 = vector.broadcast %c200_i32 : i32 to vector<1x128x1xi32>
    %35 = arith.cmpi slt, %33, %34 : vector<1x128x1xi32>
    %cst_20 = arith.constant 0xFF800000 : f32
    %36 = vector.shape_cast %35 : vector<1x128x1xi1> to vector<1x128x1xi1>
    %37 = vector.broadcast %36 : vector<1x128x1xi1> to vector<2x128x1024xi1>
    %38 = vector.broadcast %cst_20 : f32 to vector<2x128x1024xf32>
    %39 = arith.select %37, %29, %38 : vector<2x128x1024xi1>, vector<2x128x1024xf32>
    %cst_21 = arith.constant dense<0xFF800000> : vector<2x1024xf32>
    %40 = vector.multi_reduction <maximumf>, %39, %cst_21 [1] : vector<2x128x1024xf32> to vector<2x1024xf32>
    %c0_22 = arith.constant 0 : index
    %c0_23 = arith.constant 0 : index
    %41 = vector.load %arg16[%c0_22, %c0_23] : memref<2x1024xf32, #tpu.memory_space<vmem>>, vector<2x1024xf32>
    %42 = arith.maximumf %41, %40 : vector<2x1024xf32>
    %c0_24 = arith.constant 0 : index
    %c0_25 = arith.constant 0 : index
    %43 = vector.load %arg16[%c0_24, %c0_25] : memref<2x1024xf32, #tpu.memory_space<vmem>>, vector<2x1024xf32>
    tpu.vector_store %arg16[%c0_24, %c0_25], %42 {strides = array<i32>} : memref<2x1024xf32, #tpu.memory_space<vmem>>, vector<2x1024xf32>,
    %c1_i32 = arith.constant 1 : i32
    %44 = arith.cmpi eq, %arg1, %c1_i32 : i32
    %45 = arith.extui %44 : i1 to i32
    %c0_i32_26 = arith.constant 0 : i32
    %46 = arith.cmpi ne, %45, %c0_i32_26 : i32
    scf.if %46 {
      %c0_27 = arith.constant 0 : index
      %c0_28 = arith.constant 0 : index
      %47 = vector.load %arg16[%c0_27, %c0_28] : memref<2x1024xf32, #tpu.memory_space<vmem>>, vector<2x1024xf32>
      %48 = arith.truncf %47 : vector<2x1024xf32> to vector<2x1024xbf16>
      %c0_29 = arith.constant 0 : index
      %c0_30 = arith.constant 0 : index
      %49 = vector.load %arg9[%c0_29, %c0_30] : memref<1024x512xbf16, #tpu.memory_space<vmem>>, vector<1024x512xbf16>
      %cst_31 = arith.constant dense<0.000000e+00> : vector<2x512xf32>
      %50 = tpu.matmul %48, %49, %cst_31 {dimension_numbers = #tpu.dot_dimension_numbers<[1], [0], [0], [1], [0, 0, 1, 1], [], []>} : vector<2x1024xbf16>, vector<1024x512xbf16>, vector<2x512xf32> -> vector<2x512xf32>
      %c0_32 = arith.constant 0 : index
      %c0_33 = arith.constant 0 : index
      %51 = vector.load %arg10[%c0_32, %c0_33] : memref<1x512xf32, #tpu.memory_space<vmem>>, vector<1x512xf32>
      %52 = vector.broadcast %51 : vector<1x512xf32> to vector<2x512xf32>
      %53 = arith.addf %50, %52 : vector<2x512xf32>
      %cst_34 = arith.constant 0.000000e+00 : f32
      %54 = vector.broadcast %cst_34 : f32 to vector<2x512xf32>
      %55 = arith.maximumf %53, %54 : vector<2x512xf32>
      %56 = arith.truncf %55 : vector<2x512xf32> to vector<2x512xbf16>
      %c0_35 = arith.constant 0 : index
      %c0_36 = arith.constant 0 : index
      %57 = vector.load %arg11[%c0_35, %c0_36] : memref<512x256xbf16, #tpu.memory_space<vmem>>, vector<512x256xbf16>
      %cst_37 = arith.constant dense<0.000000e+00> : vector<2x256xf32>
      %58 = tpu.matmul %56, %57, %cst_37 {dimension_numbers = #tpu.dot_dimension_numbers<[1], [0], [0], [1], [0, 0, 1, 1], [], []>} : vector<2x512xbf16>, vector<512x256xbf16>, vector<2x256xf32> -> vector<2x256xf32>
      %c0_38 = arith.constant 0 : index
      %c0_39 = arith.constant 0 : index
      %59 = vector.load %arg12[%c0_38, %c0_39] : memref<1x256xf32, #tpu.memory_space<vmem>>, vector<1x256xf32>
      %60 = vector.broadcast %59 : vector<1x256xf32> to vector<2x256xf32>
      %61 = arith.addf %58, %60 : vector<2x256xf32>
      %cst_40 = arith.constant 0.000000e+00 : f32
      %62 = vector.broadcast %cst_40 : f32 to vector<2x256xf32>
      %63 = arith.maximumf %61, %62 : vector<2x256xf32>
      %64 = arith.truncf %63 : vector<2x256xf32> to vector<2x256xbf16>
      %c0_41 = arith.constant 0 : index
      %c0_42 = arith.constant 0 : index
      %65 = vector.load %arg13[%c0_41, %c0_42] : memref<256x9xbf16, #tpu.memory_space<vmem>>, vector<256x9xbf16>
      %cst_43 = arith.constant dense<0.000000e+00> : vector<2x9xf32>
      %66 = tpu.matmul %64, %65, %cst_43 {dimension_numbers = #tpu.dot_dimension_numbers<[1], [0], [0], [1], [0, 0, 1, 1], [], []>} : vector<2x256xbf16>, vector<256x9xbf16>, vector<2x9xf32> -> vector<2x9xf32>
      %c0_44 = arith.constant 0 : index
      %c0_45 = arith.constant 0 : index
      %67 = vector.load %arg14[%c0_44, %c0_45] : memref<1x9xf32, #tpu.memory_space<vmem>>, vector<1x9xf32>
      %68 = vector.broadcast %67 : vector<1x9xf32> to vector<2x9xf32>
      %69 = arith.addf %66, %68 : vector<2x9xf32>
      %c0_46 = arith.constant 0 : index
      %c0_47 = arith.constant 0 : index
      %c0_48 = arith.constant 0 : index
      %70 = vector.load %arg15[%c0_46, %c0_47, %c0_48] : memref<1x2x9xf32, #tpu.memory_space<vmem>>, vector<1x2x9xf32>
      %71 = vector.shape_cast %70 : vector<1x2x9xf32> to vector<2x9xf32>
      %72 = vector.shape_cast %69 : vector<2x9xf32> to vector<1x2x9xf32>
      tpu.vector_store %arg15[%c0_46, %c0_47, %c0_48], %72 {strides = array<i32>} : memref<1x2x9xf32, #tpu.memory_space<vmem>>, vector<1x2x9xf32>,
    } else {
    }
    return
  }
  func.func @transform_0(%arg0: i32, %arg1: i32) -> (i32, i32, i32) {
    %c0_i32 = arith.constant 0 : i32
    %c0_i32_0 = arith.constant 0 : i32
    return %arg0, %arg1, %c0_i32 : i32, i32, i32
  }
  func.func @transform_1(%arg0: i32, %arg1: i32) -> (i32, i32) {
    %c0_i32 = arith.constant 0 : i32
    %c0_i32_0 = arith.constant 0 : i32
    %c0_i32_1 = arith.constant 0 : i32
    return %c0_i32, %c0_i32_0 : i32, i32
  }
  func.func @transform_2(%arg0: i32, %arg1: i32) -> (i32, i32) {
    %c0_i32 = arith.constant 0 : i32
    %c0_i32_0 = arith.constant 0 : i32
    %c0_i32_1 = arith.constant 0 : i32
    return %c0_i32, %c0_i32_0 : i32, i32
  }
  func.func @transform_3(%arg0: i32, %arg1: i32) -> (i32, i32) {
    %c0_i32 = arith.constant 0 : i32
    %c0_i32_0 = arith.constant 0 : i32
    %c0_i32_1 = arith.constant 0 : i32
    return %c0_i32, %c0_i32_0 : i32, i32
  }
  func.func @transform_4(%arg0: i32, %arg1: i32) -> (i32, i32) {
    %c0_i32 = arith.constant 0 : i32
    %c0_i32_0 = arith.constant 0 : i32
    %c0_i32_1 = arith.constant 0 : i32
    return %c0_i32, %c0_i32_0 : i32, i32
  }
  func.func @transform_5(%arg0: i32, %arg1: i32) -> (i32, i32) {
    %c0_i32 = arith.constant 0 : i32
    %c0_i32_0 = arith.constant 0 : i32
    %c0_i32_1 = arith.constant 0 : i32
    return %c0_i32, %c0_i32_0 : i32, i32
  }
  func.func @transform_6(%arg0: i32, %arg1: i32) -> (i32, i32) {
    %c0_i32 = arith.constant 0 : i32
    %c0_i32_0 = arith.constant 0 : i32
    %c0_i32_1 = arith.constant 0 : i32
    return %c0_i32, %c0_i32_0 : i32, i32
  }
  func.func @transform_7(%arg0: i32, %arg1: i32) -> (i32, i32) {
    %c0_i32 = arith.constant 0 : i32
    %c0_i32_0 = arith.constant 0 : i32
    %c0_i32_1 = arith.constant 0 : i32
    return %c0_i32, %c0_i32_0 : i32, i32
  }
  func.func @transform_8(%arg0: i32, %arg1: i32) -> (i32, i32) {
    %c0_i32 = arith.constant 0 : i32
    %c0_i32_0 = arith.constant 0 : i32
    %c0_i32_1 = arith.constant 0 : i32
    return %c0_i32, %c0_i32_0 : i32, i32
  }
  func.func @transform_9(%arg0: i32, %arg1: i32) -> (i32, i32) {
    %c0_i32 = arith.constant 0 : i32
    %c0_i32_0 = arith.constant 0 : i32
    %c0_i32_1 = arith.constant 0 : i32
    return %c0_i32, %c0_i32_0 : i32, i32
  }
  func.func @transform_10(%arg0: i32, %arg1: i32) -> (i32, i32) {
    %c0_i32 = arith.constant 0 : i32
    %c0_i32_0 = arith.constant 0 : i32
    %c0_i32_1 = arith.constant 0 : i32
    return %c0_i32, %c0_i32_0 : i32, i32
  }
  func.func @transform_11(%arg0: i32, %arg1: i32) -> (i32, i32) {
    %c0_i32 = arith.constant 0 : i32
    %c0_i32_0 = arith.constant 0 : i32
    %c0_i32_1 = arith.constant 0 : i32
    return %c0_i32, %c0_i32_0 : i32, i32
  }
  func.func @transform_12(%arg0: i32, %arg1: i32) -> (i32, i32) {
    %c0_i32 = arith.constant 0 : i32
    %c0_i32_0 = arith.constant 0 : i32
    %c0_i32_1 = arith.constant 0 : i32
    return %c0_i32, %c0_i32_0 : i32, i32
  }
  func.func @transform_13(%arg0: i32, %arg1: i32) -> (i32, i32, i32) {
    %c0_i32 = arith.constant 0 : i32
    %c0_i32_0 = arith.constant 0 : i32
    %c0_i32_1 = arith.constant 0 : i32
    return %arg0, %c0_i32, %c0_i32_0 : i32, i32, i32
  }
}

</mosaic_0001>

<llo_original>
// kernel: tnet_forward.1
$region0: #{tnet_forward.1}
  #allocation0 [shape = 'u32[]', space=smem, size = 0x4, offset = 0x4, fixed_abs, tag = 'smem constant byte address 0x4 - core index']
  #allocation1 [shape = 'u32[144,128]{1,0:T(1,128)}', space=vmem, size = 0x12000, scoped, tag = 'internal scratch']
  #allocation2 [shape = 'f32[2,1024]{1,0:T(2,128)}', space=vmem, size = 0x2000, scoped, tag = 'scratch operand']
  %s0 = inlined_call_operand.vmem [shape: f32[4,256,8], index: 0, kind: input, shape index: {}]
  %s1 = inlined_call_operand.vmem [shape: bf16[8,64], index: 1, kind: input, shape index: {}]
  %s2 = inlined_call_operand.vmem [shape: f32[1,64], index: 2, kind: input, shape index: {}]
  %s3 = inlined_call_operand.vmem [shape: bf16[64,128], index: 3, kind: input, shape index: {}]
  %s4 = inlined_call_operand.vmem [shape: f32[1,128], index: 4, kind: input, shape index: {}]
  %s5 = inlined_call_operand.vmem [shape: bf16[128,1024], index: 5, kind: input, shape index: {}]
  %s6 = inlined_call_operand.vmem [shape: f32[1,1024], index: 6, kind: input, shape index: {}]
  %s7 = inlined_call_operand.vmem [shape: bf16[1024,512], index: 7, kind: input, shape index: {}]
  %s8 = inlined_call_operand.vmem [shape: f32[1,512], index: 8, kind: input, shape index: {}]
  %s9 = inlined_call_operand.hbm [shape: bf16[512,256], index: 9, kind: input, shape index: {}]
  %s10 = inlined_call_operand.vmem [shape: f32[1,256], index: 10, kind: input, shape index: {}]
  %s11 = inlined_call_operand.vmem [shape: bf16[256,9], index: 11, kind: input, shape index: {}]
  %s12 = inlined_call_operand.vmem [shape: f32[1,9], index: 12, kind: input, shape index: {}]
  %s13 = inlined_call_operand.vmem [shape: f32[2,2,9], index: 13, kind: output, shape index: {}]
  %s14 = sld [smem:[#allocation0]]
  $region135: #{tnet_forward.1} parent=0
    _
  %s16 = ssub.s32 1, %s14
  %s17 = scalar_select 0, %s16, %s14
  $region1: #{tnet_forward.1} parent=0
    #allocation3 [shape = 'u8[262144]{0}', space=vmem, size = 0x40000, scoped, tag = 'input window, operand 0']
    #allocation4 [shape = 'u8[262144]{0}', space=vmem, size = 0x40000, scoped, tag = 'input window, operand 9, single buffered']
    #allocation5 [shape = 's32[2]{0}', space=sflag, size = 0x8, scoped, tag = 'scoped memory for tnet_forward.1']
    %18 = vsyncpa [#allocation5], 0
    loop: start=0, step=1, limit=6
    $region2: #{tnet_forward.1} parent=1 // loop_pre_header
      _
    $region3: #{tnet_forward.1} parent=1 // loop_header
      %s20 = sphi 0, %s24
      %p21 = scmp.ge.s32.totalorder %s20, 6
      %s27 = sphi 0, %s39
      %s28 = sphi 0, %s35
      %s29 = sphi 0, %s27
      %s30 = sphi 0, %s28
      %s31 = sphi 0, %s29
      %s32 = sphi 0, %s30
      %s44 = sphi 0, %s46
      %s47 = sphi 0, %s44
      %s48 = sphi 0, %s47
      %s64 = sphi 0, %s48
      %s68 = sphi 0, %s68
      %s70 = sphi 0, %s68
      %s71 = sphi 0, %s70
      %s85 = sphi 0, %s71
      %s89 = sphi 0, %s89
      %s91 = sphi 0, %s89
      %s92 = sphi 0, %s91
      %s106 = sphi 0, %s92
      %s110 = sphi 0, %s110
      %s112 = sphi 0, %s110
      %s113 = sphi 0, %s112
      %s127 = sphi 0, %s113
      %s131 = sphi 0, %s131
      %s133 = sphi 0, %s131
      %s134 = sphi 0, %s133
      %s148 = sphi 0, %s134
      %s152 = sphi 0, %s152
      %s154 = sphi 0, %s152
      %s155 = sphi 0, %s154
      %s169 = sphi 0, %s155
      %s173 = sphi 0, %s173
      %s175 = sphi 0, %s173
      %s176 = sphi 0, %s175
      %s190 = sphi 0, %s176
      %s194 = sphi 0, %s194
      %s196 = sphi 0, %s194
      %s197 = sphi 0, %s196
      %s211 = sphi 0, %s197
      %s215 = sphi 0, %s215
      %s217 = sphi 0, %s215
      %s218 = sphi 0, %s217
      %s232 = sphi 0, %s218
      %s236 = sphi 0, %s236
      %s238 = sphi 0, %s236
      %s239 = sphi 0, %s238
      %s253 = sphi 0, %s239
      %s257 = sphi 0, %s257
      %s259 = sphi 0, %s257
      %s260 = sphi 0, %s259
      %s274 = sphi 0, %s260
      %s278 = sphi 0, %s278
      %s280 = sphi 0, %s278
      %s281 = sphi 0, %s280
      %s295 = sphi 0, %s281
      %s299 = sphi 0, %s299
      %s301 = sphi 0, %s299
      %s302 = sphi 0, %s301
      %s316 = sphi 0, %s302
      %s322 = sphi 0, %s324
      %s325 = sphi 0, %s322
      %s326 = sphi 0, %s325
      %s342 = sphi 0, %s326
    $region4: #{tnet_forward.1} parent=1 // loop_header_branch
      %23 = sbr.rel (%p21) target = $region8
    $region5: #{tnet_forward.1} parent=1 // loop_body
      %s25 = ssub.s32 %s20, 1
      %s26 = ssub.s32 %s20, 2
      %s33 = sadd.s32 1, %s28
      %p34 = scmp.ge.s32.totalorder %s33, 2
      %s35 = scalar_select %p34, 0, %s33
      %s36 = sadd.s32 1, %s27
      %s37 = scalar_select %p34, %s36, %s27
      %p38 = scmp.ge.s32.totalorder %s37, 2
      %s39 = scalar_select %p38, 0, %s37
      %s40 = ssub.s32 %s27, %s39
      %s41 = ssub.s32 %s28, %s35
      %s42 = sor.u32 %s40, %s41
      %p43 = scmp.eq.s32.totalorder %s42, 0
      %s45 = sadd.s32 %s44, 1
      %s46 = scalar_select %p43, %s44, %s45
      %p49 = pneg %p43
      %p50 = scmp.eq.s32.totalorder %s20, 3
      %p51 = por %p49, %p50
      %p52 = scmp.ne.s32.totalorder %s44, %s47
      %p53 = scmp.eq.s32.totalorder %s20, 0
      %p54 = por %p52, %p53
      %p55 = scmp.ne.s32.totalorder %s44, %s47
      %p56 = scmp.eq.s32.totalorder %s25, 3
      %p57 = por %p55, %p56
      %p58 = scmp.ne.s32.totalorder %s47, %s48
      %p59 = scmp.eq.s32.totalorder %s25, 0
      %p60 = por %p58, %p59
      %p61 = scmp.ne.s32.totalorder %s47, %s48
      %p62 = scmp.eq.s32.totalorder %s26, 3
      %p63 = por %p61, %p62
      %p65 = scmp.ne.s32.totalorder %s48, %s64
      %p66 = scmp.eq.s32.totalorder %s26, 0
      %p67 = por %p65, %p66
      %s69 = sadd.s32 %s68, 1
      %p72 = scmp.eq.s32.totalorder %s20, 3
      %p73 = scmp.ne.s32.totalorder %s68, %s70
      %p74 = scmp.eq.s32.totalorder %s20, 0
      %p75 = por %p73, %p74
      %p76 = scmp.ne.s32.totalorder %s68, %s70
      %p77 = scmp.eq.s32.totalorder %s25, 3
      %p78 = por %p76, %p77
      %p79 = scmp.ne.s32.totalorder %s70, %s71
      %p80 = scmp.eq.s32.totalorder %s25, 0
      %p81 = por %p79, %p80
      %p82 = scmp.ne.s32.totalorder %s70, %s71
      %p83 = scmp.eq.s32.totalorder %s26, 3
      %p84 = por %p82, %p83
      %p86 = scmp.ne.s32.totalorder %s71, %s85
      %p87 = scmp.eq.s32.totalorder %s26, 0
      %p88 = por %p86, %p87
      %s90 = sadd.s32 %s89, 1
      %p93 = scmp.eq.s32.totalorder %s20, 3
      %p94 = scmp.ne.s32.totalorder %s89, %s91
      %p95 = scmp.eq.s32.totalorder %s20, 0
      %p96 = por %p94, %p95
      %p97 = scmp.ne.s32.totalorder %s89, %s91
      %p98 = scmp.eq.s32.totalorder %s25, 3
      %p99 = por %p97, %p98
      %p100 = scmp.ne.s32.totalorder %s91, %s92
      %p101 = scmp.eq.s32.totalorder %s25, 0
      %p102 = por %p100, %p101
      %p103 = scmp.ne.s32.totalorder %s91, %s92
      %p104 = scmp.eq.s32.totalorder %s26, 3
      %p105 = por %p103, %p104
      %p107 = scmp.ne.s32.totalorder %s92, %s106
      %p108 = scmp.eq.s32.totalorder %s26, 0
      %p109 = por %p107, %p108
      %s111 = sadd.s32 %s110, 1
      %p114 = scmp.eq.s32.totalorder %s20, 3
      %p115 = scmp.ne.s32.totalorder %s110, %s112
      %p116 = scmp.eq.s32.totalorder %s20, 0
      %p117 = por %p115, %p116
      %p118 = scmp.ne.s32.totalorder %s110, %s112
      %p119 = scmp.eq.s32.totalorder %s25, 3
      %p120 = por %p118, %p119
      %p121 = scmp.ne.s32.totalorder %s112, %s113
      %p122 = scmp.eq.s32.totalorder %s25, 0
      %p123 = por %p121, %p122
      %p124 = scmp.ne.s32.totalorder %s112, %s113
      %p125 = scmp.eq.s32.totalorder %s26, 3
      %p126 = por %p124, %p125
      %p128 = scmp.ne.s32.totalorder %s113, %s127
      %p129 = scmp.eq.s32.totalorder %s26, 0
      %p130 = por %p128, %p129
      %s132 = sadd.s32 %s131, 1
      %p135 = scmp.eq.s32.totalorder %s20, 3
      %p136 = scmp.ne.s32.totalorder %s131, %s133
      %p137 = scmp.eq.s32.totalorder %s20, 0
      %p138 = por %p136, %p137
      %p139 = scmp.ne.s32.totalorder %s131, %s133
      %p140 = scmp.eq.s32.totalorder %s25, 3
      %p141 = por %p139, %p140
      %p142 = scmp.ne.s32.totalorder %s133, %s134
      %p143 = scmp.eq.s32.totalorder %s25, 0
      %p144 = por %p142, %p143
      %p145 = scmp.ne.s32.totalorder %s133, %s134
      %p146 = scmp.eq.s32.totalorder %s26, 3
      %p147 = por %p145, %p146
      %p149 = scmp.ne.s32.totalorder %s134, %s148
      %p150 = scmp.eq.s32.totalorder %s26, 0
      %p151 = por %p149, %p150
      %s153 = sadd.s32 %s152, 1
      %p156 = scmp.eq.s32.totalorder %s20, 3
      %p157 = scmp.ne.s32.totalorder %s152, %s154
      %p158 = scmp.eq.s32.totalorder %s20, 0
      %p159 = por %p157, %p158
      %p160 = scmp.ne.s32.totalorder %s152, %s154
      %p161 = scmp.eq.s32.totalorder %s25, 3
      %p162 = por %p160, %p161
      %p163 = scmp.ne.s32.totalorder %s154, %s155
      %p164 = scmp.eq.s32.totalorder %s25, 0
      %p165 = por %p163, %p164
      %p166 = scmp.ne.s32.totalorder %s154, %s155
      %p167 = scmp.eq.s32.totalorder %s26, 3
      %p168 = por %p166, %p167
      %p170 = scmp.ne.s32.totalorder %s155, %s169
      %p171 = scmp.eq.s32.totalorder %s26, 0
      %p172 = por %p170, %p171
      %s174 = sadd.s32 %s173, 1
      %p177 = scmp.eq.s32.totalorder %s20, 3
      %p178 = scmp.ne.s32.totalorder %s173, %s175
      %p179 = scmp.eq.s32.totalorder %s20, 0
      %p180 = por %p178, %p179
      %p181 = scmp.ne.s32.totalorder %s173, %s175
      %p182 = scmp.eq.s32.totalorder %s25, 3
      %p183 = por %p181, %p182
      %p184 = scmp.ne.s32.totalorder %s175, %s176
      %p185 = scmp.eq.s32.totalorder %s25, 0
      %p186 = por %p184, %p185
      %p187 = scmp.ne.s32.totalorder %s175, %s176
      %p188 = scmp.eq.s32.totalorder %s26, 3
      %p189 = por %p187, %p188
      %p191 = scmp.ne.s32.totalorder %s176, %s190
      %p192 = scmp.eq.s32.totalorder %s26, 0
      %p193 = por %p191, %p192
      %s195 = sadd.s32 %s194, 1
      %p198 = scmp.eq.s32.totalorder %s20, 3
      %p199 = scmp.ne.s32.totalorder %s194, %s196
      %p200 = scmp.eq.s32.totalorder %s20, 0
      %p201 = por %p199, %p200
      %p202 = scmp.ne.s32.totalorder %s194, %s196
      %p203 = scmp.eq.s32.totalorder %s25, 3
      %p204 = por %p202, %p203
      %p205 = scmp.ne.s32.totalorder %s196, %s197
      %p206 = scmp.eq.s32.totalorder %s25, 0
      %p207 = por %p205, %p206
      %p208 = scmp.ne.s32.totalorder %s196, %s197
      %p209 = scmp.eq.s32.totalorder %s26, 3
      %p210 = por %p208, %p209
      %p212 = scmp.ne.s32.totalorder %s197, %s211
      %p213 = scmp.eq.s32.totalorder %s26, 0
      %p214 = por %p212, %p213
      %s216 = sadd.s32 %s215, 1
      %p219 = scmp.eq.s32.totalorder %s20, 3
      %p220 = scmp.ne.s32.totalorder %s215, %s217
      %p221 = scmp.eq.s32.totalorder %s20, 0
      %p222 = por %p220, %p221
      %p223 = scmp.ne.s32.totalorder %s215, %s217
      %p224 = scmp.eq.s32.totalorder %s25, 3
      %p225 = por %p223, %p224
      %p226 = scmp.ne.s32.totalorder %s217, %s218
      %p227 = scmp.eq.s32.totalorder %s25, 0
      %p228 = por %p226, %p227
      %p229 = scmp.ne.s32.totalorder %s217, %s218
      %p230 = scmp.eq.s32.totalorder %s26, 3
      %p231 = por %p229, %p230
      %p233 = scmp.ne.s32.totalorder %s218, %s232
      %p234 = scmp.eq.s32.totalorder %s26, 0
      %p235 = por %p233, %p234
      %s237 = sadd.s32 %s236, 1
      %p240 = scmp.eq.s32.totalorder %s20, 3
      %p241 = scmp.ne.s32.totalorder %s236, %s238
      %p242 = scmp.eq.s32.totalorder %s20, 0
      %p243 = por %p241, %p242
      %p244 = scmp.ne.s32.totalorder %s236, %s238
      %p245 = scmp.eq.s32.totalorder %s25, 3
      %p246 = por %p244, %p245
      %p247 = scmp.ne.s32.totalorder %s238, %s239
      %p248 = scmp.eq.s32.totalorder %s25, 0
      %p249 = por %p247, %p248
      %p250 = scmp.ne.s32.totalorder %s238, %s239
      %p251 = scmp.eq.s32.totalorder %s26, 3
      %p252 = por %p250, %p251
      %p254 = scmp.ne.s32.totalorder %s239, %s253
      %p255 = scmp.eq.s32.totalorder %s26, 0
      %p256 = por %p254, %p255
      %s258 = sadd.s32 %s257, 1
      %p261 = scmp.eq.s32.totalorder %s20, 3
      %p262 = scmp.ne.s32.totalorder %s257, %s259
      %p263 = scmp.eq.s32.totalorder %s20, 0
      %p264 = por %p262, %p263
      %p265 = scmp.ne.s32.totalorder %s257, %s259
      %p266 = scmp.eq.s32.totalorder %s25, 3
      %p267 = por %p265, %p266
      %p268 = scmp.ne.s32.totalorder %s259, %s260
      %p269 = scmp.eq.s32.totalorder %s25, 0
      %p270 = por %p268, %p269
      %p271 = scmp.ne.s32.totalorder %s259, %s260
      %p272 = scmp.eq.s32.totalorder %s26, 3
      %p273 = por %p271, %p272
      %p275 = scmp.ne.s32.totalorder %s260, %s274
      %p276 = scmp.eq.s32.totalorder %s26, 0
      %p277 = por %p275, %p276
      %s279 = sadd.s32 %s278, 1
      %p282 = scmp.eq.s32.totalorder %s20, 3
      %p283 = scmp.ne.s32.totalorder %s278, %s280
      %p284 = scmp.eq.s32.totalorder %s20, 0
      %p285 = por %p283, %p284
      %p286 = scmp.ne.s32.totalorder %s278, %s280
      %p287 = scmp.eq.s32.totalorder %s25, 3
      %p288 = por %p286, %p287
      %p289 = scmp.ne.s32.totalorder %s280, %s281
      %p290 = scmp.eq.s32.totalorder %s25, 0
      %p291 = por %p289, %p290
      %p292 = scmp.ne.s32.totalorder %s280, %s281
      %p293 = scmp.eq.s32.totalorder %s26, 3
      %p294 = por %p292, %p293
      %p296 = scmp.ne.s32.totalorder %s281, %s295
      %p297 = scmp.eq.s32.totalorder %s26, 0
      %p298 = por %p296, %p297
      %s300 = sadd.s32 %s299, 1
      %p303 = scmp.eq.s32.totalorder %s20, 3
      %p304 = scmp.ne.s32.totalorder %s299, %s301
      %p305 = scmp.eq.s32.totalorder %s20, 0
      %p306 = por %p304, %p305
      %p307 = scmp.ne.s32.totalorder %s299, %s301
      %p308 = scmp.eq.s32.totalorder %s25, 3
      %p309 = por %p307, %p308
      %p310 = scmp.ne.s32.totalorder %s301, %s302
      %p311 = scmp.eq.s32.totalorder %s25, 0
      %p312 = por %p310, %p311
      %p313 = scmp.ne.s32.totalorder %s301, %s302
      %p314 = scmp.eq.s32.totalorder %s26, 3
      %p315 = por %p313, %p314
      %p317 = scmp.ne.s32.totalorder %s302, %s316
      %p318 = scmp.eq.s32.totalorder %s26, 0
      %p319 = por %p317, %p318
      %s320 = ssub.s32 %s27, %s39
      %p321 = scmp.eq.s32.totalorder %s320, 0
      %s323 = sadd.s32 %s322, 1
      %s324 = scalar_select %p321, %s322, %s323
      %p327 = pneg %p321
      %p328 = scmp.eq.s32.totalorder %s20, 3
      %p329 = por %p327, %p328
      %p330 = scmp.ne.s32.totalorder %s322, %s325
      %p331 = scmp.eq.s32.totalorder %s20, 0
      %p332 = por %p330, %p331
      %p333 = scmp.ne.s32.totalorder %s322, %s325
      %p334 = scmp.eq.s32.totalorder %s25, 3
      %p335 = por %p333, %p334
      %p336 = scmp.ne.s32.totalorder %s325, %s326
      %p337 = scmp.eq.s32.totalorder %s25, 0
      %p338 = por %p336, %p337
      %p339 = scmp.ne.s32.totalorder %s325, %s326
      %p340 = scmp.eq.s32.totalorder %s26, 3
      %p341 = por %p339, %p340
      %p343 = scmp.ne.s32.totalorder %s326, %s342
      %p344 = scmp.eq.s32.totalorder %s26, 0
      %p345 = por %p343, %p344
      %p346 = scmp.le.s32.totalorder 1, %s20
      %p347 = scmp.lt.s32.totalorder %s20, 5
      %p348 = pnand %p346, %p347
      %p349 = pneg %p348
      // Predicated region
      $region9: #{tnet_forward.1} parent=5 // pred_check
        _
      $region10: #{tnet_forward.1} parent=5 // pred_check_branch
        %351 = sbr.rel (%p348) target = $region12
      $region11: #{tnet_forward.1} parent=5 // pred_region
        %s352 = ssub.s32 %s20, 1
        // Predicated region
        $region13: #{tnet_forward.1} parent=11 // pred_check
          %p353 = pneg %p81
        $region14: #{tnet_forward.1} parent=11 // pred_check_branch
          %355 = sbr.rel (%p353) target = $region16
        $region15: #{tnet_forward.1} parent=11 // pred_region
          _
        $region16: #{tnet_forward.1} parent=11 // pred_fallthru
          _
        // Predicated region
        $region17: #{tnet_forward.1} parent=11 // pred_check
          %p356 = pneg %p102
        $region18: #{tnet_forward.1} parent=11 // pred_check_branch
          %358 = sbr.rel (%p356) target = $region20
        $region19: #{tnet_forward.1} parent=11 // pred_region
          _
        $region20: #{tnet_forward.1} parent=11 // pred_fallthru
          _
        // Predicated region
        $region21: #{tnet_forward.1} parent=11 // pred_check
          %p359 = pneg %p123
        $region22: #{tnet_forward.1} parent=11 // pred_check_branch
          %361 = sbr.rel (%p359) target = $region24
        $region23: #{tnet_forward.1} parent=11 // pred_region
          _
        $region24: #{tnet_forward.1} parent=11 // pred_fallthru
          _
        // Predicated region
        $region25: #{tnet_forward.1} parent=11 // pred_check
          %p362 = pneg %p144
        $region26: #{tnet_forward.1} parent=11 // pred_check_branch
          %364 = sbr.rel (%p362) target = $region28
        $region27: #{tnet_forward.1} parent=11 // pred_region
          _
        $region28: #{tnet_forward.1} parent=11 // pred_fallthru
          _
        // Predicated region
        $region29: #{tnet_forward.1} parent=11 // pred_check
          %p365 = pneg %p165
        $region30: #{tnet_forward.1} parent=11 // pred_check_branch
          %367 = sbr.rel (%p365) target = $region32
        $region31: #{tnet_forward.1} parent=11 // pred_region
          _
        $region32: #{tnet_forward.1} parent=11 // pred_fallthru
          _
        // Predicated region
        $region33: #{tnet_forward.1} parent=11 // pred_check
          %p368 = pneg %p186
        $region34: #{tnet_forward.1} parent=11 // pred_check_branch
          %370 = sbr.rel (%p368) target = $region36
        $region35: #{tnet_forward.1} parent=11 // pred_region
          _
        $region36: #{tnet_forward.1} parent=11 // pred_fallthru
          _
        // Predicated region
        $region37: #{tnet_forward.1} parent=11 // pred_check
          %p371 = pneg %p207
        $region38: #{tnet_forward.1} parent=11 // pred_check_branch
          %373 = sbr.rel (%p371) target = $region40
        $region39: #{tnet_forward.1} parent=11 // pred_region
          _
        $region40: #{tnet_forward.1} parent=11 // pred_fallthru
          _
        // Predicated region
        $region41: #{tnet_forward.1} parent=11 // pred_check
          %p374 = pneg %p228
        $region42: #{tnet_forward.1} parent=11 // pred_check_branch
          %376 = sbr.rel (%p374) target = $region44
        $region43: #{tnet_forward.1} parent=11 // pred_region
          _
        $region44: #{tnet_forward.1} parent=11 // pred_fallthru
          _
        // Predicated region
        $region45: #{tnet_forward.1} parent=11 // pred_check
          %p377 = pneg %p249
        $region46: #{tnet_forward.1} parent=11 // pred_check_branch
          %379 = sbr.rel (%p377) target = $region48
        $region47: #{tnet_forward.1} parent=11 // pred_region
          %s381 = ssub.s32 8192, 8192
          %382 = vsyncadd [#allocation5], %s381
          %s383 = sshll.u32 [#allocation4], 4
          %s384 = int_to_ptr.vmem [resolvable:$true] %s383
          %389 = dma.hbm_to_vmem [thread:$0]  %s9, 8192, %s384, [#allocation5], 128, 128, 8
        $region48: #{tnet_forward.1} parent=11 // pred_fallthru
          _
        // Predicated region
        $region49: #{tnet_forward.1} parent=11 // pred_check
          %p390 = pneg %p270
        $region50: #{tnet_forward.1} parent=11 // pred_check_branch
          %392 = sbr.rel (%p390) target = $region52
        $region51: #{tnet_forward.1} parent=11 // pred_region
          _
        $region52: #{tnet_forward.1} parent=11 // pred_fallthru
          _
        // Predicated region
        $region53: #{tnet_forward.1} parent=11 // pred_check
          %p393 = pneg %p291
        $region54: #{tnet_forward.1} parent=11 // pred_check_branch
          %395 = sbr.rel (%p393) target = $region56
        $region55: #{tnet_forward.1} parent=11 // pred_region
          _
        $region56: #{tnet_forward.1} parent=11 // pred_fallthru
          _
        // Predicated region
        $region57: #{tnet_forward.1} parent=11 // pred_check
          %p396 = pneg %p312
        $region58: #{tnet_forward.1} parent=11 // pred_check_branch
          %398 = sbr.rel (%p396) target = $region60
        $region59: #{tnet_forward.1} parent=11 // pred_region
          _
        $region60: #{tnet_forward.1} parent=11 // pred_fallthru
          _
      $region12: #{tnet_forward.1} parent=5 // pred_fallthru
        _
      %p399 = scmp.lt.s32.totalorder %s20, 4
      // Predicated region
      $region61: #{tnet_forward.1} parent=5 // pred_check
        %p400 = pneg %p399
      $region62: #{tnet_forward.1} parent=5 // pred_check_branch
        %402 = sbr.rel (%p400) target = $region64
      $region63: #{tnet_forward.1} parent=5 // pred_region
        // Predicated region
        $region65: #{tnet_forward.1} parent=63 // pred_check
          %p403 = pneg %p54
        $region66: #{tnet_forward.1} parent=63 // pred_check_branch
          %405 = sbr.rel (%p403) target = $region68
        $region67: #{tnet_forward.1} parent=63 // pred_region
          %s406 = sand.u32 %s44, 1
          %s407 = sand.u32 %s44, 1
          %s408 = smul.addr %s407, 256
          %s409 = scalar_lea.vmem [#allocation3], %s408
          %s410 = smul.u32 2, %s27
          %s411 = smul.u32 16, %s28
          %s412 = smul.addr %s410, 32
          %s413 = sadd.s32 %s411, %s412
          %s414 = smul.addr %s413, 8
          %s415 = scalar_lea.vmem %s0, %s414
          // Predicated region
          $region69: #{tnet_forward.1} parent=67 // pred_check
            _
          $region70: #{tnet_forward.1} parent=67 // pred_check_branch
            %417 = sbr.rel (0) target = $region72
          $region71: #{tnet_forward.1} parent=67 // pred_region
            // Predicated region
            $region73: #{tnet_forward.1} parent=71 // pred_check
              _
            $region74: #{tnet_forward.1} parent=71 // pred_check_branch
              %419 = sbr.rel (0) target = $region76
            $region75: #{tnet_forward.1} parent=71 // pred_region
              // Predicated region
              $region88: #{tnet_forward.1} parent=75 // pred_check
                _
              $region89: #{tnet_forward.1} parent=75 // pred_check_branch
                %496 = sbr.rel (0) target = $region91
              $region90: #{tnet_forward.1} parent=75 // pred_region
                loop: start=0, step=1, limit=1
                $region92: #{tnet_forward.1} parent=90 // loop_pre_header
                  _
                $region93: #{tnet_forward.1} parent=90 // loop_header
                  %s498 = sphi 0, %s502
                  %p499 = scmp.ge.s32.totalorder %s498, 1
                  %s503 = sphi %s415, %s415
                  %s504 = sphi %s409, %s409
                $region94: #{tnet_forward.1} parent=90 // loop_header_branch
                  %501 = sbr.rel (%p499) target = $region98
                $region95: #{tnet_forward.1} parent=90 // loop_body
                  %v505 = vld [vmem:[%s503] sm:$0xff]
                  %506 = vst [vmem:[%s504] sm:$0xff] %v505
                  %v507 = vld [vmem:[%s503 + $0x8] sm:$0xff]
                  %508 = vst [vmem:[%s504 + $0x8] sm:$0xff] %v507
                  %v509 = vld [vmem:[%s503 + $0x10] sm:$0xff]
                  %510 = vst [vmem:[%s504 + $0x10] sm:$0xff] %v509
                  %v511 = vld [vmem:[%s503 + $0x18] sm:$0xff]
                  %512 = vst [vmem:[%s504 + $0x18] sm:$0xff] %v511
                  %v513 = vld [vmem:[%s503 + $0x20] sm:$0xff]
                  %514 = vst [vmem:[%s504 + $0x20] sm:$0xff] %v513
                  %v515 = vld [vmem:[%s503 + $0x28] sm:$0xff]
                  %516 = vst [vmem:[%s504 + $0x28] sm:$0xff] %v515
                  %v517 = vld [vmem:[%s503 + $0x30] sm:$0xff]
                  %518 = vst [vmem:[%s504 + $0x30] sm:$0xff] %v517
                  %v519 = vld [vmem:[%s503 + $0x38] sm:$0xff]
                  %520 = vst [vmem:[%s504 + $0x38] sm:$0xff] %v519
                  %v521 = vld [vmem:[%s503 + $0x40] sm:$0xff]
                  %522 = vst [vmem:[%s504 + $0x40] sm:$0xff] %v521
                  %v523 = vld [vmem:[%s503 + $0x48] sm:$0xff]
                  %524 = vst [vmem:[%s504 + $0x48] sm:$0xff] %v523
                  %v525 = vld [vmem:[%s503 + $0x50] sm:$0xff]
                  %526 = vst [vmem:[%s504 + $0x50] sm:$0xff] %v525
                  %v527 = vld [vmem:[%s503 + $0x58] sm:$0xff]
                  %528 = vst [vmem:[%s504 + $0x58] sm:$0xff] %v527
                  %v529 = vld [vmem:[%s503 + $0x60] sm:$0xff]
                  %530 = vst [vmem:[%s504 + $0x60] sm:$0xff] %v529
                  %v531 = vld [vmem:[%s503 + $0x68] sm:$0xff]
                  %532 = vst [vmem:[%s504 + $0x68] sm:$0xff] %v531
                  %v533 = vld [vmem:[%s503 + $0x70] sm:$0xff]
                  %534 = vst [vmem:[%s504 + $0x70] sm:$0xff] %v533
                  %v535 = vld [vmem:[%s503 + $0x78] sm:$0xff]
                  %536 = vst [vmem:[%s504 + $0x78] sm:$0xff] %v535
                  %v537 = vld [vmem:[%s503 + $0x100] sm:$0xff]
                  %538 = vst [vmem:[%s504 + $0x80] sm:$0xff] %v537
                  %v539 = vld [vmem:[%s503 + $0x108] sm:$0xff]
                  %540 = vst [vmem:[%s504 + $0x88] sm:$0xff] %v539
                  %v541 = vld [vmem:[%s503 + $0x110] sm:$0xff]
                  %542 = vst [vmem:[%s504 + $0x90] sm:$0xff] %v541
                  %v543 = vld [vmem:[%s503 + $0x118] sm:$0xff]
                  %544 = vst [vmem:[%s504 + $0x98] sm:$0xff] %v543
                  %v545 = vld [vmem:[%s503 + $0x120] sm:$0xff]
                  %546 = vst [vmem:[%s504 + $0xa0] sm:$0xff] %v545
                  %v547 = vld [vmem:[%s503 + $0x128] sm:$0xff]
                  %548 = vst [vmem:[%s504 + $0xa8] sm:$0xff] %v547
                  %v549 = vld [vmem:[%s503 + $0x130] sm:$0xff]
                  %550 = vst [vmem:[%s504 + $0xb0] sm:$0xff] %v549
                  %v551 = vld [vmem:[%s503 + $0x138] sm:$0xff]
                  %552 = vst [vmem:[%s504 + $0xb8] sm:$0xff] %v551
                  %v553 = vld [vmem:[%s503 + $0x140] sm:$0xff]
                  %554 = vst [vmem:[%s504 + $0xc0] sm:$0xff] %v553
                  %v555 = vld [vmem:[%s503 + $0x148] sm:$0xff]
                  %556 = vst [vmem:[%s504 + $0xc8] sm:$0xff] %v555
                  %v557 = vld [vmem:[%s503 + $0x150] sm:$0xff]
                  %558 = vst [vmem:[%s504 + $0xd0] sm:$0xff] %v557
                  %v559 = vld [vmem:[%s503 + $0x158] sm:$0xff]
                  %560 = vst [vmem:[%s504 + $0xd8] sm:$0xff] %v559
                  %v561 = vld [vmem:[%s503 + $0x160] sm:$0xff]
                  %562 = vst [vmem:[%s504 + $0xe0] sm:$0xff] %v561
                  %v563 = vld [vmem:[%s503 + $0x168] sm:$0xff]
                  %564 = vst [vmem:[%s504 + $0xe8] sm:$0xff] %v563
                  %v565 = vld [vmem:[%s503 + $0x170] sm:$0xff]
                  %566 = vst [vmem:[%s504 + $0xf0] sm:$0xff] %v565
                  %v567 = vld [vmem:[%s503 + $0x178] sm:$0xff]
                  %568 = vst [vmem:[%s504 + $0xf8] sm:$0xff] %v567
                $region96: #{tnet_forward.1} parent=90 // loop_footer
                  %s502 = sadd.s32 1, %s498
                $region97: #{tnet_forward.1} parent=90 // loop_footer_branch
                  %497 = sbr.rel target = $region93
                $region98: #{tnet_forward.1} parent=90 // loop_exit
                  _
              $region91: #{tnet_forward.1} parent=75 // pred_fallthru
                _
              // Predicated region
              $region99: #{tnet_forward.1} parent=75 // pred_check
                _
              $region100: #{tnet_forward.1} parent=75 // pred_check_branch
                %570 = sbr.rel target = $region102
              $region101: #{tnet_forward.1} parent=75 // pred_region
                _
              $region102: #{tnet_forward.1} parent=75 // pred_fallthru
                _
            $region76: #{tnet_forward.1} parent=71 // pred_fallthru
              _
            // Predicated region
            $region77: #{tnet_forward.1} parent=71 // pred_check
              _
            $region78: #{tnet_forward.1} parent=71 // pred_check_branch
              %421 = sbr.rel target = $region80
            $region79: #{tnet_forward.1} parent=71 // pred_region
              loop: start=0, step=1, limit=1
              $region81: #{tnet_forward.1} parent=79 // loop_pre_header
                _
              $region82: #{tnet_forward.1} parent=79 // loop_header
                %s424 = sphi 0, %s428
                %p425 = scmp.ge.s32.totalorder %s424, 1
                %s429 = sphi %s415, %s415
                %s430 = sphi %s409, %s409
              $region83: #{tnet_forward.1} parent=79 // loop_header_branch
                %427 = sbr.rel (%p425) target = $region87
              $region84: #{tnet_forward.1} parent=79 // loop_body
                %v431 = vld [vmem:[%s429] sm:$0xff]
                %432 = vst [vmem:[%s430] sm:$0xff] %v431
                %v433 = vld [vmem:[%s429 + $0x8] sm:$0xff]
                %434 = vst [vmem:[%s430 + $0x8] sm:$0xff] %v433
                %v435 = vld [vmem:[%s429 + $0x10] sm:$0xff]
                %436 = vst [vmem:[%s430 + $0x10] sm:$0xff] %v435
                %v437 = vld [vmem:[%s429 + $0x18] sm:$0xff]
                %438 = vst [vmem:[%s430 + $0x18] sm:$0xff] %v437
                %v439 = vld [vmem:[%s429 + $0x20] sm:$0xff]
                %440 = vst [vmem:[%s430 + $0x20] sm:$0xff] %v439
                %v441 = vld [vmem:[%s429 + $0x28] sm:$0xff]
                %442 = vst [vmem:[%s430 + $0x28] sm:$0xff] %v441
                %v443 = vld [vmem:[%s429 + $0x30] sm:$0xff]
                %444 = vst [vmem:[%s430 + $0x30] sm:$0xff] %v443
                %v445 = vld [vmem:[%s429 + $0x38] sm:$0xff]
                %446 = vst [vmem:[%s430 + $0x38] sm:$0xff] %v445
                %v447 = vld [vmem:[%s429 + $0x40] sm:$0xff]
                %448 = vst [vmem:[%s430 + $0x40] sm:$0xff] %v447
                %v449 = vld [vmem:[%s429 + $0x48] sm:$0xff]
                %450 = vst [vmem:[%s430 + $0x48] sm:$0xff] %v449
                %v451 = vld [vmem:[%s429 + $0x50] sm:$0xff]
                %452 = vst [vmem:[%s430 + $0x50] sm:$0xff] %v451
                %v453 = vld [vmem:[%s429 + $0x58] sm:$0xff]
                %454 = vst [vmem:[%s430 + $0x58] sm:$0xff] %v453
                %v455 = vld [vmem:[%s429 + $0x60] sm:$0xff]
                %456 = vst [vmem:[%s430 + $0x60] sm:$0xff] %v455
                %v457 = vld [vmem:[%s429 + $0x68] sm:$0xff]
                %458 = vst [vmem:[%s430 + $0x68] sm:$0xff] %v457
                %v459 = vld [vmem:[%s429 + $0x70] sm:$0xff]
                %460 = vst [vmem:[%s430 + $0x70] sm:$0xff] %v459
                %v461 = vld [vmem:[%s429 + $0x78] sm:$0xff]
                %462 = vst [vmem:[%s430 + $0x78] sm:$0xff] %v461
                %v463 = vld [vmem:[%s429 + $0x100] sm:$0xff]
                %464 = vst [vmem:[%s430 + $0x80] sm:$0xff] %v463
                %v465 = vld [vmem:[%s429 + $0x108] sm:$0xff]
                %466 = vst [vmem:[%s430 + $0x88] sm:$0xff] %v465
                %v467 = vld [vmem:[%s429 + $0x110] sm:$0xff]
                %468 = vst [vmem:[%s430 + $0x90] sm:$0xff] %v467
                %v469 = vld [vmem:[%s429 + $0x118] sm:$0xff]
                %470 = vst [vmem:[%s430 + $0x98] sm:$0xff] %v469
                %v471 = vld [vmem:[%s429 + $0x120] sm:$0xff]
                %472 = vst [vmem:[%s430 + $0xa0] sm:$0xff] %v471
                %v473 = vld [vmem:[%s429 + $0x128] sm:$0xff]
                %474 = vst [vmem:[%s430 + $0xa8] sm:$0xff] %v473
                %v475 = vld [vmem:[%s429 + $0x130] sm:$0xff]
                %476 = vst [vmem:[%s430 + $0xb0] sm:$0xff] %v475
                %v477 = vld [vmem:[%s429 + $0x138] sm:$0xff]
                %478 = vst [vmem:[%s430 + $0xb8] sm:$0xff] %v477
                %v479 = vld [vmem:[%s429 + $0x140] sm:$0xff]
                %480 = vst [vmem:[%s430 + $0xc0] sm:$0xff] %v479
                %v481 = vld [vmem:[%s429 + $0x148] sm:$0xff]
                %482 = vst [vmem:[%s430 + $0xc8] sm:$0xff] %v481
                %v483 = vld [vmem:[%s429 + $0x150] sm:$0xff]
                %484 = vst [vmem:[%s430 + $0xd0] sm:$0xff] %v483
                %v485 = vld [vmem:[%s429 + $0x158] sm:$0xff]
                %486 = vst [vmem:[%s430 + $0xd8] sm:$0xff] %v485
                %v487 = vld [vmem:[%s429 + $0x160] sm:$0xff]
                %488 = vst [vmem:[%s430 + $0xe0] sm:$0xff] %v487
                %v489 = vld [vmem:[%s429 + $0x168] sm:$0xff]
                %490 = vst [vmem:[%s430 + $0xe8] sm:$0xff] %v489
                %v491 = vld [vmem:[%s429 + $0x170] sm:$0xff]
                %492 = vst [vmem:[%s430 + $0xf0] sm:$0xff] %v491
                %v493 = vld [vmem:[%s429 + $0x178] sm:$0xff]
                %494 = vst [vmem:[%s430 + $0xf8] sm:$0xff] %v493
              $region85: #{tnet_forward.1} parent=79 // loop_footer
                %s428 = sadd.s32 1, %s424
              $region86: #{tnet_forward.1} parent=79 // loop_footer_branch
                %423 = sbr.rel target = $region82
              $region87: #{tnet_forward.1} parent=79 // loop_exit
                _
            $region80: #{tnet_forward.1} parent=71 // pred_fallthru
              _
          $region72: #{tnet_forward.1} parent=67 // pred_fallthru
            _
          %571 = vnop
        $region68: #{tnet_forward.1} parent=63 // pred_fallthru
          _
      $region64: #{tnet_forward.1} parent=5 // pred_fallthru
        _
      %p572 = scmp.le.s32.totalorder 1, %s20
      %p573 = scmp.lt.s32.totalorder %s20, 5
      %p574 = pnand %p572, %p573
      %p575 = pneg %p574
      // Predicated region
      $region103: #{tnet_forward.1} parent=5 // pred_check
        _
      $region104: #{tnet_forward.1} parent=5 // pred_check_branch
        %577 = sbr.rel (%p574) target = $region106
      $region105: #{tnet_forward.1} parent=5 // pred_region
        %s578 = ssub.s32 %s20, 1
        %s579 = sand.u32 %s47, 1
        %s580 = sand.u32 %s47, 1
        %s581 = smul.addr %s580, 256
        %s582 = scalar_lea.vmem [#allocation3], %s581
        // Predicated region
        $region107: #{tnet_forward.1} parent=105 // pred_check
          %p583 = pneg %p60
        $region108: #{tnet_forward.1} parent=105 // pred_check_branch
          %585 = sbr.rel (%p583) target = $region110
        $region109: #{tnet_forward.1} parent=105 // pred_region
          _
        $region110: #{tnet_forward.1} parent=105 // pred_fallthru
          _
        // Predicated region
        $region111: #{tnet_forward.1} parent=105 // pred_check
          %p586 = pneg %p249
        $region112: #{tnet_forward.1} parent=105 // pred_check_branch
          %588 = sbr.rel (%p586) target = $region114
        $region113: #{tnet_forward.1} parent=105 // pred_region
          %589 = dma.done [#allocation5], 8192
        $region114: #{tnet_forward.1} parent=105 // pred_fallthru
          _
        %s590 = sand.u32 %s47, 1
        %s591 = sand.u32 %s47, 1
        %s592 = smul.addr %s591, 256
        %s593 = scalar_lea.vmem [#allocation3], %s592
        %p594 = pneg %p60
        %p595 = pneg %p57
        %p596 = pneg %p81
        %p597 = pneg %p78
        %p598 = pneg %p102
        %p599 = pneg %p99
        %p600 = pneg %p123
        %p601 = pneg %p120
        %p602 = pneg %p144
        %p603 = pneg %p141
        %p604 = pneg %p165
        %p605 = pneg %p162
        %p606 = pneg %p186
        %p607 = pneg %p183
        %p608 = pneg %p207
        %p609 = pneg %p204
        %p610 = pneg %p228
        %p611 = pneg %p225
        %p612 = pneg %p249
        %p613 = pneg %p246
        %p614 = pneg %p270
        %p615 = pneg %p267
        %p616 = pneg %p291
        %p617 = pneg %p288
        %p618 = pneg %p312
        %p619 = pneg %p309
        %p620 = pneg %p338
        %p621 = pneg %p335
        %p622 = scmp.lt.s32.totalorder %s29, 1
        %s623 = scalar_select %p622, %s29, 1
        %s624 = smul.addr %s623, 2
        %s625 = scalar_lea.vmem %s13, %s624
        %s626 = smul.u32 2, %s29
        %s627 = smul.u32 16, %s30
        %p628 = scmp.lt.s32.totalorder %s29, 1
        %s629 = scalar_select %p628, %s29, 1
        %s630 = smul.addr %s629, 2
        %s631 = scalar_lea.vmem %s13, %s630
        %p633 = scmp.eq.s32.totalorder %s30, 0
        // Predicated region
        $region115: #{tnet_forward.1} parent=105 // pred_check
          %p634 = pneg %p633
        $region116: #{tnet_forward.1} parent=105 // pred_check_branch
          %636 = sbr.rel (%p634) target = $region118
        $region117: #{tnet_forward.1} parent=105 // pred_region
          %637 = vst [vmem:[#allocation2] sm:$0xff] -inf
          %638 = vst [vmem:[#allocation2 + $0x8] sm:$0xff] -inf
        $region118: #{tnet_forward.1} parent=105 // pred_fallthru
          _
        %v639 = vld [vmem:[%s582] sm:$0xff]
        %v640 = vld [vmem:[%s582 + $0x8] sm:$0xff]
        %v641 = vld [vmem:[%s582 + $0x10] sm:$0xff]
        %v642 = vld [vmem:[%s582 + $0x18] sm:$0xff]
        %v643 = vld [vmem:[%s582 + $0x20] sm:$0xff]
        %v644 = vld [vmem:[%s582 + $0x28] sm:$0xff]
        %v645 = vld [vmem:[%s582 + $0x30] sm:$0xff]
        %v646 = vld [vmem:[%s582 + $0x38] sm:$0xff]
        %v647 = vld [vmem:[%s582 + $0x40] sm:$0xff]
        %v648 = vld [vmem:[%s582 + $0x48] sm:$0xff]
        %v649 = vld [vmem:[%s582 + $0x50] sm:$0xff]
        %v650 = vld [vmem:[%s582 + $0x58] sm:$0xff]
        %v651 = vld [vmem:[%s582 + $0x60] sm:$0xff]
        %v652 = vld [vmem:[%s582 + $0x68] sm:$0xff]
        %v653 = vld [vmem:[%s582 + $0x70] sm:$0xff]
        %v654 = vld [vmem:[%s582 + $0x78] sm:$0xff]
        %v655 = vld [vmem:[%s582 + $0x80] sm:$0xff]
        %v656 = vld [vmem:[%s582 + $0x88] sm:$0xff]
        %v657 = vld [vmem:[%s582 + $0x90] sm:$0xff]
        %v658 = vld [vmem:[%s582 + $0x98] sm:$0xff]
        %v659 = vld [vmem:[%s582 + $0xa0] sm:$0xff]
        %v660 = vld [vmem:[%s582 + $0xa8] sm:$0xff]
        %v661 = vld [vmem:[%s582 + $0xb0] sm:$0xff]
        %v662 = vld [vmem:[%s582 + $0xb8] sm:$0xff]
        %v663 = vld [vmem:[%s582 + $0xc0] sm:$0xff]
        %v664 = vld [vmem:[%s582 + $0xc8] sm:$0xff]
        %v665 = vld [vmem:[%s582 + $0xd0] sm:$0xff]
        %v666 = vld [vmem:[%s582 + $0xd8] sm:$0xff]
        %v667 = vld [vmem:[%s582 + $0xe0] sm:$0xff]
        %v668 = vld [vmem:[%s582 + $0xe8] sm:$0xff]
        %v669 = vld [vmem:[%s582 + $0xf0] sm:$0xff]
        %v670 = vld [vmem:[%s582 + $0xf8] sm:$0xff]
        %v671 = vpack.c.bf16 %v640, %v639
        %v672 = vpack.c.bf16 %v642, %v641
        %v673 = vpack.c.bf16 %v644, %v643
        %v674 = vpack.c.bf16 %v646, %v645
        %v675 = vpack.c.bf16 %v648, %v647
        %v676 = vpack.c.bf16 %v650, %v649
        %v677 = vpack.c.bf16 %v652, %v651
        %v678 = vpack.c.bf16 %v654, %v653
        %v679 = vpack.c.bf16 %v656, %v655
        %v680 = vpack.c.bf16 %v658, %v657
        %v681 = vpack.c.bf16 %v660, %v659
        %v682 = vpack.c.bf16 %v662, %v661
        %v683 = vpack.c.bf16 %v664, %v663
        %v684 = vpack.c.bf16 %v666, %v665
        %v685 = vpack.c.bf16 %v668, %v667
        %v686 = vpack.c.bf16 %v670, %v669
        %v687 = vld [vmem:[%s1] sm:$0xf]
        %v688 = vld [vmem:[%s2] sm:$0x1]
        %v690 = vlaneseq
        %v691 = vshrl.u32 %v690, 7
        %v692 = vsub.s32 0, %v691
        %v693 = vrot.slane %v688, %v692
        %vm695 = vcmask 64512
        %v697 = vsel %vm695, %v671, 0
        %v700 = vsel %vm695, %v672, 0
        %v703 = vsel %vm695, %v673, 0
        %v706 = vsel %vm695, %v674, 0
        %v709 = vsel %vm695, %v675, 0
        %v712 = vsel %vm695, %v676, 0
        %v715 = vsel %vm695, %v677, 0
        %v718 = vsel %vm695, %v678, 0
        %v721 = vsel %vm695, %v679, 0
        %v724 = vsel %vm695, %v680, 0
        %v727 = vsel %vm695, %v681, 0
        %v730 = vsel %vm695, %v682, 0
        %v733 = vsel %vm695, %v683, 0
        %v736 = vsel %vm695, %v684, 0
        %v739 = vsel %vm695, %v685, 0
        %v742 = vsel %vm695, %v686, 0
        %vm744 = vcmask 1043456
        %v746 = vsel %vm744, %v687, 0
        %748 = vmatprep.subr.bf16.mxu0 0
        %749 = vmatpush1.bf16.msra.mxu0 %v746
        %750 = vmatprep.subr.bf16.mxu0 0
        %751 = vmatpush1.bf16.msra.mxu0 0
        %752 = vmatprep.subr.bf16.mxu0 0
        %753 = vmatpush1.bf16.msra.mxu0 0
        %754 = vmatprep.subr.bf16.mxu0 0
        %755 = vmatpush1.bf16.msra.mxu0 0
        %756 = vmatprep.subr.bf16.mxu0 0
        %757 = vmatpush1.bf16.msra.mxu0 0
        %758 = vmatprep.subr.bf16.mxu0 0
        %759 = vmatpush1.bf16.msra.mxu0 0
        %760 = vmatprep.subr.bf16.mxu0 0
        %761 = vmatpush1.bf16.msra.mxu0 0
        %762 = vmatprep.subr.bf16.mxu0 0
        %763 = vmatpush1.bf16.msra.mxu0 0
        %764 = vmatprep.subr.bf16.mxu0 0
        %765 = vmatpush1.bf16.msra.mxu0 0
        %766 = vmatprep.subr.bf16.mxu0 0
        %767 = vmatpush1.bf16.msra.mxu0 0
        %768 = vmatprep.subr.bf16.mxu0 0
        %769 = vmatpush1.bf16.msra.mxu0 0
        %770 = vmatprep.subr.bf16.mxu0 0
        %771 = vmatpush1.bf16.msra.mxu0 0
        %772 = vmatprep.subr.bf16.mxu0 0
        %773 = vmatpush1.bf16.msra.mxu0 0
        %774 = vmatprep.subr.bf16.mxu0 0
        %775 = vmatpush1.bf16.msra.mxu0 0
        %776 = vmatprep.subr.bf16.mxu0 0
        %777 = vmatpush1.bf16.msra.mxu0 0
        %778 = vmatprep.subr.bf16.mxu0 0
        %779 = vmatpush1.bf16.msra.mxu0 0
        %780 = vmatprep.mubr.bf16.mxu0 0
        %781 = vmatmul.mubr.bf16.gmra.mrb[0].mxu0 %v697
        %v782 = vpop.f32.mrb[0].mxu0
        %v783 = vadd.f32 %v693, %v782
        %v784 = vpop.f32.mrb[0].mxu0
        %v785 = vpop.f32.mrb[0].mxu0
        %v786 = vadd.f32 %v693, %v785
        %v787 = vpop.f32.mrb[0].mxu0
        %788 = vmatprep.mubr.bf16.mxu0 0
        %789 = vmatmul.mubr.bf16.gmra.mrb[0].mxu0 %v700
        %v790 = vpop.f32.mrb[0].mxu0
        %v791 = vadd.f32 %v693, %v790
        %v792 = vpop.f32.mrb[0].mxu0
        %v793 = vpop.f32.mrb[0].mxu0
        %v794 = vadd.f32 %v693, %v793
        %v795 = vpop.f32.mrb[0].mxu0
        %796 = vmatprep.mubr.bf16.mxu0 0
        %797 = vmatmul.mubr.bf16.gmra.mrb[0].mxu0 %v703
        %v798 = vpop.f32.mrb[0].mxu0
        %v799 = vadd.f32 %v693, %v798
        %v800 = vpop.f32.mrb[0].mxu0
        %v801 = vpop.f32.mrb[0].mxu0
        %v802 = vadd.f32 %v693, %v801
        %v803 = vpop.f32.mrb[0].mxu0
        %804 = vmatprep.mubr.bf16.mxu0 0
        %805 = vmatmul.mubr.bf16.gmra.mrb[0].mxu0 %v706
        %v806 = vpop.f32.mrb[0].mxu0
        %v807 = vadd.f32 %v693, %v806
        %v808 = vpop.f32.mrb[0].mxu0
        %v809 = vpop.f32.mrb[0].mxu0
        %v810 = vadd.f32 %v693, %v809
        %v811 = vpop.f32.mrb[0].mxu0
        %812 = vmatprep.mubr.bf16.mxu0 0
        %813 = vmatmul.mubr.bf16.gmra.mrb[0].mxu0 %v709
        %v814 = vpop.f32.mrb[0].mxu0
        %v815 = vadd.f32 %v693, %v814
        %v816 = vpop.f32.mrb[0].mxu0
        %v817 = vpop.f32.mrb[0].mxu0
        %v818 = vadd.f32 %v693, %v817
        %v819 = vpop.f32.mrb[0].mxu0
        %820 = vmatprep.mubr.bf16.mxu0 0
        %821 = vmatmul.mubr.bf16.gmra.mrb[0].mxu0 %v712
        %v822 = vpop.f32.mrb[0].mxu0
        %v823 = vadd.f32 %v693, %v822
        %v824 = vpop.f32.mrb[0].mxu0
        %v825 = vpop.f32.mrb[0].mxu0
        %v826 = vadd.f32 %v693, %v825
        %v827 = vpop.f32.mrb[0].mxu0
        %828 = vmatprep.mubr.bf16.mxu0 0
        %829 = vmatmul.mubr.bf16.gmra.mrb[0].mxu0 %v715
        %v830 = vpop.f32.mrb[0].mxu0
        %v831 = vadd.f32 %v693, %v830
        %v832 = vpop.f32.mrb[0].mxu0
        %v833 = vpop.f32.mrb[0].mxu0
        %v834 = vadd.f32 %v693, %v833
        %v835 = vpop.f32.mrb[0].mxu0
        %836 = vmatprep.mubr.bf16.mxu0 0
        %837 = vmatmul.mubr.bf16.gmra.mrb[0].mxu0 %v718
        %v838 = vpop.f32.mrb[0].mxu0
        %v839 = vadd.f32 %v693, %v838
        %v840 = vpop.f32.mrb[0].mxu0
        %v841 = vpop.f32.mrb[0].mxu0
        %v842 = vadd.f32 %v693, %v841
        %v843 = vpop.f32.mrb[0].mxu0
        %844 = vmatprep.mubr.bf16.mxu0 0
        %845 = vmatmul.mubr.bf16.gmra.mrb[0].mxu0 %v721
        %v846 = vpop.f32.mrb[0].mxu0
        %v847 = vadd.f32 %v693, %v846
        %v848 = vpop.f32.mrb[0].mxu0
        %v849 = vpop.f32.mrb[0].mxu0
        %v850 = vadd.f32 %v693, %v849
        %v851 = vpop.f32.mrb[0].mxu0
        %852 = vmatprep.mubr.bf16.mxu0 0
        %853 = vmatmul.mubr.bf16.gmra.mrb[0].mxu0 %v724
        %v854 = vpop.f32.mrb[0].mxu0
        %v855 = vadd.f32 %v693, %v854
        %v856 = vpop.f32.mrb[0].mxu0
        %v857 = vpop.f32.mrb[0].mxu0
        %v858 = vadd.f32 %v693, %v857
        %v859 = vpop.f32.mrb[0].mxu0
        %860 = vmatprep.mubr.bf16.mxu0 0
        %861 = vmatmul.mubr.bf16.gmra.mrb[0].mxu0 %v727
        %v862 = vpop.f32.mrb[0].mxu0
        %v863 = vadd.f32 %v693, %v862
        %v864 = vpop.f32.mrb[0].mxu0
        %v865 = vpop.f32.mrb[0].mxu0
        %v866 = vadd.f32 %v693, %v865
        %v867 = vpop.f32.mrb[0].mxu0
        %868 = vmatprep.mubr.bf16.mxu0 0
        %869 = vmatmul.mubr.bf16.gmra.mrb[0].mxu0 %v730
        %v870 = vpop.f32.mrb[0].mxu0
        %v871 = vadd.f32 %v693, %v870
        %v872 = vpop.f32.mrb[0].mxu0
        %v873 = vpop.f32.mrb[0].mxu0
        %v874 = vadd.f32 %v693, %v873
        %v875 = vpop.f32.mrb[0].mxu0
        %876 = vmatprep.mubr.bf16.mxu0 0
        %877 = vmatmul.mubr.bf16.gmra.mrb[0].mxu0 %v733
        %v878 = vpop.f32.mrb[0].mxu0
        %v879 = vadd.f32 %v693, %v878
        %v880 = vpop.f32.mrb[0].mxu0
        %v881 = vpop.f32.mrb[0].mxu0
        %v882 = vadd.f32 %v693, %v881
        %v883 = vpop.f32.mrb[0].mxu0
        %884 = vmatprep.mubr.bf16.mxu0 0
        %885 = vmatmul.mubr.bf16.gmra.mrb[0].mxu0 %v736
        %v886 = vpop.f32.mrb[0].mxu0
        %v887 = vadd.f32 %v693, %v886
        %v888 = vpop.f32.mrb[0].mxu0
        %v889 = vpop.f32.mrb[0].mxu0
        %v890 = vadd.f32 %v693, %v889
        %v891 = vpop.f32.mrb[0].mxu0
        %892 = vmatprep.mubr.bf16.mxu0 0
        %893 = vmatmul.mubr.bf16.gmra.mrb[0].mxu0 %v739
        %v894 = vpop.f32.mrb[0].mxu0
        %v895 = vadd.f32 %v693, %v894
        %v896 = vpop.f32.mrb[0].mxu0
        %v897 = vpop.f32.mrb[0].mxu0
        %v898 = vadd.f32 %v693, %v897
        %v899 = vpop.f32.mrb[0].mxu0
        %900 = vmatprep.mubr.bf16.mxu0 0
        %901 = vmatmul.mubr.bf16.gmra.mrb[0].mxu0 %v742
        %v902 = vpop.f32.mrb[0].mxu0
        %v903 = vadd.f32 %v693, %v902
        %v904 = vpop.f32.mrb[0].mxu0
        %v905 = vpop.f32.mrb[0].mxu0
        %v906 = vadd.f32 %v693, %v905
        %v907 = vpop.f32.mrb[0].mxu0
        %908 = vdwg.mxu0
        %v909 = vmax.f32 %v783, 0.0
        %v910 = vmax.f32 %v786, 0.0
        %v911 = vmax.f32 %v791, 0.0
        %v912 = vmax.f32 %v794, 0.0
        %v913 = vmax.f32 %v799, 0.0
        %v914 = vmax.f32 %v802, 0.0
        %v915 = vmax.f32 %v807, 0.0
        %v916 = vmax.f32 %v810, 0.0
        %v917 = vmax.f32 %v815, 0.0
        %v918 = vmax.f32 %v818, 0.0
        %v919 = vmax.f32 %v823, 0.0
        %v920 = vmax.f32 %v826, 0.0
        %v921 = vmax.f32 %v831, 0.0
        %v922 = vmax.f32 %v834, 0.0
        %v923 = vmax.f32 %v839, 0.0
        %v924 = vmax.f32 %v842, 0.0
        %v925 = vmax.f32 %v847, 0.0
        %v926 = vmax.f32 %v850, 0.0
        %v927 = vmax.f32 %v855, 0.0
        %v928 = vmax.f32 %v858, 0.0
        %v929 = vmax.f32 %v863, 0.0
        %v930 = vmax.f32 %v866, 0.0
        %v931 = vmax.f32 %v871, 0.0
        %v932 = vmax.f32 %v874, 0.0
        %v933 = vmax.f32 %v879, 0.0
        %v934 = vmax.f32 %v882, 0.0
        %v935 = vmax.f32 %v887, 0.0
        %v936 = vmax.f32 %v890, 0.0
        %v937 = vmax.f32 %v895, 0.0
        %v938 = vmax.f32 %v898, 0.0
        %v939 = vmax.f32 %v903, 0.0
        %v940 = vmax.f32 %v906, 0.0
        %v941 = vpack.c.bf16 %v910, %v909
        %v942 = vpack.c.bf16 %v912, %v911
        %v943 = vpack.c.bf16 %v914, %v913
        %v944 = vpack.c.bf16 %v916, %v915
        %v945 = vpack.c.bf16 %v918, %v917
        %v946 = vpack.c.bf16 %v920, %v919
        %v947 = vpack.c.bf16 %v922, %v921
        %v948 = vpack.c.bf16 %v924, %v923
        %v949 = vpack.c.bf16 %v926, %v925
        %v950 = vpack.c.bf16 %v928, %v927
        %v951 = vpack.c.bf16 %v930, %v929
        %v952 = vpack.c.bf16 %v932, %v931
        %v953 = vpack.c.bf16 %v934, %v933
        %v954 = vpack.c.bf16 %v936, %v935
        %v955 = vpack.c.bf16 %v938, %v937
        %v956 = vpack.c.bf16 %v940, %v939
        %v957 = vld [vmem:[%s3] sm:$0xf]
        %v958 = vld [vmem:[%s3 + $0x4] sm:$0xf]
        %v959 = vld [vmem:[%s3 + $0x8] sm:$0xf]
        %v960 = vld [vmem:[%s3 + $0xc] sm:$0xf]
        %v961 = vld [vmem:[%s3 + $0x10] sm:$0xf]
        %v962 = vld [vmem:[%s3 + $0x14] sm:$0xf]
        %v963 = vld [vmem:[%s3 + $0x18] sm:$0xf]
        %v964 = vld [vmem:[%s3 + $0x1c] sm:$0xf]
        %v965 = vld [vmem:[%s4] sm:$0x1]
        %v967 = vlaneseq
        %v968 = vshrl.u32 %v967, 7
        %v969 = vsub.s32 0, %v968
        %v970 = vrot.slane %v965, %v969
        %v980 = vunpack.c.l.b16 %v957
        %v981 = vunpack.c.l.b16 %v958
        %v982 = vunpack.c.l.b16 %v959
        %v983 = vunpack.c.l.b16 %v960
        %v984 = vunpack.c.l.b16 %v961
        %v985 = vunpack.c.l.b16 %v962
        %v986 = vunpack.c.l.b16 %v963
        %v987 = vunpack.c.l.b16 %v964
        %v988 = vpack.c.b16 %v981, %v980
        %v989 = vpack.c.b16 %v983, %v982
        %v990 = vpack.c.b16 %v985, %v984
        %v991 = vpack.c.b16 %v987, %v986
        %vm996 = vcmask 523264
        %v998 = vsel %vm996, %v941, 0
        %v1001 = vsel %vm996, %v942, 0
        %v1004 = vsel %vm996, %v943, 0
        %v1007 = vsel %vm996, %v944, 0
        %v1010 = vsel %vm996, %v945, 0
        %v1013 = vsel %vm996, %v946, 0
        %v1016 = vsel %vm996, %v947, 0
        %v1019 = vsel %vm996, %v948, 0
        %v1022 = vsel %vm996, %v949, 0
        %v1025 = vsel %vm996, %v950, 0
        %v1028 = vsel %vm996, %v951, 0
        %v1031 = vsel %vm996, %v952, 0
        %v1034 = vsel %vm996, %v953, 0
        %v1037 = vsel %vm996, %v954, 0
        %v1040 = vsel %vm996, %v955, 0
        %v1043 = vsel %vm996, %v956, 0
        %1045 = vmatprep.subr.bf16.mxu0 0
        %1046 = vmatpush1.bf16.msra.mxu0 %v988
        %1047 = vmatprep.subr.bf16.mxu0 0
        %1048 = vmatpush1.bf16.msra.mxu0 %v989
        %1049 = vmatprep.subr.bf16.mxu0 0
        %1050 = vmatpush1.bf16.msra.mxu0 %v990
        %1051 = vmatprep.subr.bf16.mxu0 0
        %1052 = vmatpush1.bf16.msra.mxu0 %v991
        %1053 = vmatprep.subr.bf16.mxu0 0
        %1054 = vmatpush1.bf16.msra.mxu0 0
        %1055 = vmatprep.subr.bf16.mxu0 0
        %1056 = vmatpush1.bf16.msra.mxu0 0
        %1057 = vmatprep.subr.bf16.mxu0 0
        %1058 = vmatpush1.bf16.msra.mxu0 0
        %1059 = vmatprep.subr.bf16.mxu0 0
        %1060 = vmatpush1.bf16.msra.mxu0 0
        %1061 = vmatprep.subr.bf16.mxu0 0
        %1062 = vmatpush1.bf16.msra.mxu0 0
        %1063 = vmatprep.subr.bf16.mxu0 0
        %1064 = vmatpush1.bf16.msra.mxu0 0
        %1065 = vmatprep.subr.bf16.mxu0 0
        %1066 = vmatpush1.bf16.msra.mxu0 0
        %1067 = vmatprep.subr.bf16.mxu0 0
        %1068 = vmatpush1.bf16.msra.mxu0 0
        %1069 = vmatprep.subr.bf16.mxu0 0
        %1070 = vmatpush1.bf16.msra.mxu0 0
        %1071 = vmatprep.subr.bf16.mxu0 0
        %1072 = vmatpush1.bf16.msra.mxu0 0
        %1073 = vmatprep.subr.bf16.mxu0 0
        %1074 = vmatpush1.bf16.msra.mxu0 0
        %1075 = vmatprep.subr.bf16.mxu0 0
        %1076 = vmatpush1.bf16.msra.mxu0 0
        %1077 = vmatprep.mubr.bf16.mxu0 0
        %1078 = vmatmul.mubr.bf16.gmra.mrb[0].mxu0 %v998
        %v1079 = vpop.f32.mrb[0].mxu0
        %v1080 = vadd.f32 %v970, %v1079
        %v1081 = vpop.f32.mrb[0].mxu0
        %v1082 = vpop.f32.mrb[0].mxu0
        %v1083 = vadd.f32 %v970, %v1082
        %v1084 = vpop.f32.mrb[0].mxu0
        %1085 = vmatprep.mubr.bf16.mxu0 0
        %1086 = vmatmul.mubr.bf16.gmra.mrb[0].mxu0 %v1001
        %v1087 = vpop.f32.mrb[0].mxu0
        %v1088 = vadd.f32 %v970, %v1087
        %v1089 = vpop.f32.mrb[0].mxu0
        %v1090 = vpop.f32.mrb[0].mxu0
        %v1091 = vadd.f32 %v970, %v1090
        %v1092 = vpop.f32.mrb[0].mxu0
        %1093 = vmatprep.mubr.bf16.mxu0 0
        %1094 = vmatmul.mubr.bf16.gmra.mrb[0].mxu0 %v1004
        %v1095 = vpop.f32.mrb[0].mxu0
        %v1096 = vadd.f32 %v970, %v1095
        %v1097 = vpop.f32.mrb[0].mxu0
        %v1098 = vpop.f32.mrb[0].mxu0
        %v1099 = vadd.f32 %v970, %v1098
        %v1100 = vpop.f32.mrb[0].mxu0
        %1101 = vmatprep.mubr.bf16.mxu0 0
        %1102 = vmatmul.mubr.bf16.gmra.mrb[0].mxu0 %v1007
        %v1103 = vpop.f32.mrb[0].mxu0
        %v1104 = vadd.f32 %v970, %v1103
        %v1105 = vpop.f32.mrb[0].mxu0
        %v1106 = vpop.f32.mrb[0].mxu0
        %v1107 = vadd.f32 %v970, %v1106
        %v1108 = vpop.f32.mrb[0].mxu0
        %1109 = vmatprep.mubr.bf16.mxu0 0
        %1110 = vmatmul.mubr.bf16.gmra.mrb[0].mxu0 %v1010
        %v1111 = vpop.f32.mrb[0].mxu0
        %v1112 = vadd.f32 %v970, %v1111
        %v1113 = vpop.f32.mrb[0].mxu0
        %v1114 = vpop.f32.mrb[0].mxu0
        %v1115 = vadd.f32 %v970, %v1114
        %v1116 = vpop.f32.mrb[0].mxu0
        %1117 = vmatprep.mubr.bf16.mxu0 0
        %1118 = vmatmul.mubr.bf16.gmra.mrb[0].mxu0 %v1013
        %v1119 = vpop.f32.mrb[0].mxu0
        %v1120 = vadd.f32 %v970, %v1119
        %v1121 = vpop.f32.mrb[0].mxu0
        %v1122 = vpop.f32.mrb[0].mxu0
        %v1123 = vadd.f32 %v970, %v1122
        %v1124 = vpop.f32.mrb[0].mxu0
        %1125 = vmatprep.mubr.bf16.mxu0 0
        %1126 = vmatmul.mubr.bf16.gmra.mrb[0].mxu0 %v1016
        %v1127 = vpop.f32.mrb[0].mxu0
        %v1128 = vadd.f32 %v970, %v1127
        %v1129 = vpop.f32.mrb[0].mxu0
        %v1130 = vpop.f32.mrb[0].mxu0
        %v1131 = vadd.f32 %v970, %v1130
        %v1132 = vpop.f32.mrb[0].mxu0
        %1133 = vmatprep.mubr.bf16.mxu0 0
        %1134 = vmatmul.mubr.bf16.gmra.mrb[0].mxu0 %v1019
        %v1135 = vpop.f32.mrb[0].mxu0
        %v1136 = vadd.f32 %v970, %v1135
        %v1137 = vpop.f32.mrb[0].mxu0
        %v1138 = vpop.f32.mrb[0].mxu0
        %v1139 = vadd.f32 %v970, %v1138
        %v1140 = vpop.f32.mrb[0].mxu0
        %1141 = vmatprep.mubr.bf16.mxu0 0
        %1142 = vmatmul.mubr.bf16.gmra.mrb[0].mxu0 %v1022
        %v1143 = vpop.f32.mrb[0].mxu0
        %v1144 = vadd.f32 %v970, %v1143
        %v1145 = vpop.f32.mrb[0].mxu0
        %v1146 = vpop.f32.mrb[0].mxu0
        %v1147 = vadd.f32 %v970, %v1146
        %v1148 = vpop.f32.mrb[0].mxu0
        %1149 = vmatprep.mubr.bf16.mxu0 0
        %1150 = vmatmul.mubr.bf16.gmra.mrb[0].mxu0 %v1025
        %v1151 = vpop.f32.mrb[0].mxu0
        %v1152 = vadd.f32 %v970, %v1151
        %v1153 = vpop.f32.mrb[0].mxu0
        %v1154 = vpop.f32.mrb[0].mxu0
        %v1155 = vadd.f32 %v970, %v1154
        %v1156 = vpop.f32.mrb[0].mxu0
        %1157 = vmatprep.mubr.bf16.mxu0 0
        %1158 = vmatmul.mubr.bf16.gmra.mrb[0].mxu0 %v1028
        %v1159 = vpop.f32.mrb[0].mxu0
        %v1160 = vadd.f32 %v970, %v1159
        %v1161 = vpop.f32.mrb[0].mxu0
        %v1162 = vpop.f32.mrb[0].mxu0
        %v1163 = vadd.f32 %v970, %v1162
        %v1164 = vpop.f32.mrb[0].mxu0
        %1165 = vmatprep.mubr.bf16.mxu0 0
        %1166 = vmatmul.mubr.bf16.gmra.mrb[0].mxu0 %v1031
        %v1167 = vpop.f32.mrb[0].mxu0
        %v1168 = vadd.f32 %v970, %v1167
        %v1169 = vpop.f32.mrb[0].mxu0
        %v1170 = vpop.f32.mrb[0].mxu0
        %v1171 = vadd.f32 %v970, %v1170
        %v1172 = vpop.f32.mrb[0].mxu0
        %1173 = vmatprep.mubr.bf16.mxu0 0
        %1174 = vmatmul.mubr.bf16.gmra.mrb[0].mxu0 %v1034
        %v1175 = vpop.f32.mrb[0].mxu0
        %v1176 = vadd.f32 %v970, %v1175
        %v1177 = vpop.f32.mrb[0].mxu0
        %v1178 = vpop.f32.mrb[0].mxu0
        %v1179 = vadd.f32 %v970, %v1178
        %v1180 = vpop.f32.mrb[0].mxu0
        %1181 = vmatprep.mubr.bf16.mxu0 0
        %1182 = vmatmul.mubr.bf16.gmra.mrb[0].mxu0 %v1037
        %v1183 = vpop.f32.mrb[0].mxu0
        %v1184 = vadd.f32 %v970, %v1183
        %v1185 = vpop.f32.mrb[0].mxu0
        %v1186 = vpop.f32.mrb[0].mxu0
        %v1187 = vadd.f32 %v970, %v1186
        %v1188 = vpop.f32.mrb[0].mxu0
        %1189 = vmatprep.mubr.bf16.mxu0 0
        %1190 = vmatmul.mubr.bf16.gmra.mrb[0].mxu0 %v1040
        %v1191 = vpop.f32.mrb[0].mxu0
        %v1192 = vadd.f32 %v970, %v1191
        %v1193 = vpop.f32.mrb[0].mxu0
        %v1194 = vpop.f32.mrb[0].mxu0
        %v1195 = vadd.f32 %v970, %v1194
        %v1196 = vpop.f32.mrb[0].mxu0
        %1197 = vmatprep.mubr.bf16.mxu0 0
        %1198 = vmatmul.mubr.bf16.gmra.mrb[0].mxu0 %v1043
        %v1199 = vpop.f32.mrb[0].mxu0
        %v1200 = vadd.f32 %v970, %v1199
        %v1201 = vpop.f32.mrb[0].mxu0
        %v1202 = vpop.f32.mrb[0].mxu0
        %v1203 = vadd.f32 %v970, %v1202
        %v1204 = vpop.f32.mrb[0].mxu0
        %1205 = vdwg.mxu0
        %v1206 = vmax.f32 %v1080, 0.0
        %v1207 = vmax.f32 %v1083, 0.0
        %v1208 = vmax.f32 %v1088, 0.0
        %v1209 = vmax.f32 %v1091, 0.0
        %v1210 = vmax.f32 %v1096, 0.0
        %v1211 = vmax.f32 %v1099, 0.0
        %v1212 = vmax.f32 %v1104, 0.0
        %v1213 = vmax.f32 %v1107, 0.0
        %v1214 = vmax.f32 %v1112, 0.0
        %v1215 = vmax.f32 %v1115, 0.0
        %v1216 = vmax.f32 %v1120, 0.0
        %v1217 = vmax.f32 %v1123, 0.0
        %v1218 = vmax.f32 %v1128, 0.0
        %v1219 = vmax.f32 %v1131, 0.0
        %v1220 = vmax.f32 %v1136, 0.0
        %v1221 = vmax.f32 %v1139, 0.0
        %v1222 = vmax.f32 %v1144, 0.0
        %v1223 = vmax.f32 %v1147, 0.0
        %v1224 = vmax.f32 %v1152, 0.0
        %v1225 = vmax.f32 %v1155, 0.0
        %v1226 = vmax.f32 %v1160, 0.0
        %v1227 = vmax.f32 %v1163, 0.0
        %v1228 = vmax.f32 %v1168, 0.0
        %v1229 = vmax.f32 %v1171, 0.0
        %v1230 = vmax.f32 %v1176, 0.0
        %v1231 = vmax.f32 %v1179, 0.0
        %v1232 = vmax.f32 %v1184, 0.0
        %v1233 = vmax.f32 %v1187, 0.0
        %v1234 = vmax.f32 %v1192, 0.0
        %v1235 = vmax.f32 %v1195, 0.0
        %v1236 = vmax.f32 %v1200, 0.0
        %v1237 = vmax.f32 %v1203, 0.0
        %v1238 = vpack.c.bf16 %v1207, %v1206
        %v1239 = vpack.c.bf16 %v1209, %v1208
        %v1240 = vpack.c.bf16 %v1211, %v1210
        %v1241 = vpack.c.bf16 %v1213, %v1212
        %v1242 = vpack.c.bf16 %v1215, %v1214
        %v1243 = vpack.c.bf16 %v1217, %v1216
        %v1244 = vpack.c.bf16 %v1219, %v1218
        %v1245 = vpack.c.bf16 %v1221, %v1220
        %v1246 = vpack.c.bf16 %v1223, %v1222
        %v1247 = vpack.c.bf16 %v1225, %v1224
        %v1248 = vpack.c.bf16 %v1227, %v1226
        %v1249 = vpack.c.bf16 %v1229, %v1228
        %v1250 = vpack.c.bf16 %v1231, %v1230
        %v1251 = vpack.c.bf16 %v1233, %v1232
        %v1252 = vpack.c.bf16 %v1235, %v1234
        %v1253 = vpack.c.bf16 %v1237, %v1236
        %v1254 = vld [vmem:[%s5] sm:$0xff]
        %v1255 = vld [vmem:[%s5 + $0x8] sm:$0xff]
        %v1256 = vld [vmem:[%s5 + $0x10] sm:$0xff]
        %v1257 = vld [vmem:[%s5 + $0x18] sm:$0xff]
        %v1258 = vld [vmem:[%s5 + $0x20] sm:$0xff]
        %v1259 = vld [vmem:[%s5 + $0x28] sm:$0xff]
        %v1260 = vld [vmem:[%s5 + $0x30] sm:$0xff]
        %v1261 = vld [vmem:[%s5 + $0x38] sm:$0xff]
        %v1262 = vld [vmem:[%s5 + $0x40] sm:$0xff]
        %v1263 = vld [vmem:[%s5 + $0x48] sm:$0xff]
        %v1264 = vld [vmem:[%s5 + $0x50] sm:$0xff]
        %v1265 = vld [vmem:[%s5 + $0x58] sm:$0xff]
        %v1266 = vld [vmem:[%s5 + $0x60] sm:$0xff]
        %v1267 = vld [vmem:[%s5 + $0x68] sm:$0xff]
        %v1268 = vld [vmem:[%s5 + $0x70] sm:$0xff]
        %v1269 = vld [vmem:[%s5 + $0x78] sm:$0xff]
        %v1270 = vld [vmem:[%s5 + $0x80] sm:$0xff]
        %v1271 = vld [vmem:[%s5 + $0x88] sm:$0xff]
        %v1272 = vld [vmem:[%s5 + $0x90] sm:$0xff]
        %v1273 = vld [vmem:[%s5 + $0x98] sm:$0xff]
        %v1274 = vld [vmem:[%s5 + $0xa0] sm:$0xff]
        %v1275 = vld [vmem:[%s5 + $0xa8] sm:$0xff]
        %v1276 = vld [vmem:[%s5 + $0xb0] sm:$0xff]
        %v1277 = vld [vmem:[%s5 + $0xb8] sm:$0xff]
        %v1278 = vld [vmem:[%s5 + $0xc0] sm:$0xff]
        %v1279 = vld [vmem:[%s5 + $0xc8] sm:$0xff]
        %v1280 = vld [vmem:[%s5 + $0xd0] sm:$0xff]
        %v1281 = vld [vmem:[%s5 + $0xd8] sm:$0xff]
        %v1282 = vld [vmem:[%s5 + $0xe0] sm:$0xff]
        %v1283 = vld [vmem:[%s5 + $0xe8] sm:$0xff]
        %v1284 = vld [vmem:[%s5 + $0xf0] sm:$0xff]
        %v1285 = vld [vmem:[%s5 + $0xf8] sm:$0xff]
        %v1286 = vld [vmem:[%s5 + $0x100] sm:$0xff]
        %v1287 = vld [vmem:[%s5 + $0x108] sm:$0xff]
        %v1288 = vld [vmem:[%s5 + $0x110] sm:$0xff]
        %v1289 = vld [vmem:[%s5 + $0x118] sm:$0xff]
        %v1290 = vld [vmem:[%s5 + $0x120] sm:$0xff]
        %v1291 = vld [vmem:[%s5 + $0x128] sm:$0xff]
        %v1292 = vld [vmem:[%s5 + $0x130] sm:$0xff]
        %v1293 = vld [vmem:[%s5 + $0x138] sm:$0xff]
        %v1294 = vld [vmem:[%s5 + $0x140] sm:$0xff]
        %v1295 = vld [vmem:[%s5 + $0x148] sm:$0xff]
        %v1296 = vld [vmem:[%s5 + $0x150] sm:$0xff]
        %v1297 = vld [vmem:[%s5 + $0x158] sm:$0xff]
        %v1298 = vld [vmem:[%s5 + $0x160] sm:$0xff]
        %v1299 = vld [vmem:[%s5 + $0x168] sm:$0xff]
        %v1300 = vld [vmem:[%s5 + $0x170] sm:$0xff]
        %v1301 = vld [vmem:[%s5 + $0x178] sm:$0xff]
        %v1302 = vld [vmem:[%s5 + $0x180] sm:$0xff]
        %v1303 = vld [vmem:[%s5 + $0x188] sm:$0xff]
        %v1304 = vld [vmem:[%s5 + $0x190] sm:$0xff]
        %v1305 = vld [vmem:[%s5 + $0x198] sm:$0xff]
        %v1306 = vld [vmem:[%s5 + $0x1a0] sm:$0xff]
        %v1307 = vld [vmem:[%s5 + $0x1a8] sm:$0xff]
        %v1308 = vld [vmem:[%s5 + $0x1b0] sm:$0xff]
        %v1309 = vld [vmem:[%s5 + $0x1b8] sm:$0xff]
        %v1310 = vld [vmem:[%s5 + $0x1c0] sm:$0xff]
        %v1311 = vld [vmem:[%s5 + $0x1c8] sm:$0xff]
        %v1312 = vld [vmem:[%s5 + $0x1d0] sm:$0xff]
        %v1313 = vld [vmem:[%s5 + $0x1d8] sm:$0xff]
        %v1314 = vld [vmem:[%s5 + $0x1e0] sm:$0xff]
        %v1315 = vld [vmem:[%s5 + $0x1e8] sm:$0xff]
        %v1316 = vld [vmem:[%s5 + $0x1f0] sm:$0xff]
        %v1317 = vld [vmem:[%s5 + $0x1f8] sm:$0xff]
        %v1318 = vld [vmem:[%s6] sm:$0xff]
        %v1320 = vlaneseq
        %v1321 = vshrl.u32 %v1320, 7
        %v1322 = vsub.s32 0, %v1321
        %v1323 = vrot.slane %v1318, %v1322
        %v1324 = vlaneseq
        %v1325 = vshrl.u32 %v1324, 7
        %v1326 = vsub.s32 1, %v1325
        %v1327 = vrot.slane %v1318, %v1326
        %v1328 = vlaneseq
        %v1329 = vshrl.u32 %v1328, 7
        %v1330 = vsub.s32 2, %v1329
        %v1331 = vrot.slane %v1318, %v1330
        %v1332 = vlaneseq
        %v1333 = vshrl.u32 %v1332, 7
        %v1334 = vsub.s32 3, %v1333
        %v1335 = vrot.slane %v1318, %v1334
        %v1336 = vlaneseq
        %v1337 = vshrl.u32 %v1336, 7
        %v1338 = vsub.s32 4, %v1337
        %v1339 = vrot.slane %v1318, %v1338
        %v1340 = vlaneseq
        %v1341 = vshrl.u32 %v1340, 7
        %v1342 = vsub.s32 5, %v1341
        %v1343 = vrot.slane %v1318, %v1342
        %v1344 = vlaneseq
        %v1345 = vshrl.u32 %v1344, 7
        %v1346 = vsub.s32 6, %v1345
        %v1347 = vrot.slane %v1318, %v1346
        %v1348 = vlaneseq
        %v1349 = vshrl.u32 %v1348, 7
        %v1350 = vsub.s32 7, %v1349
        %v1351 = vrot.slane %v1318, %v1350
        %v1424 = vunpack.c.l.b16 %v1254
        %v1425 = vunpack.c.h.b16 %v1254
        %v1426 = vunpack.c.l.b16 %v1255
        %v1427 = vunpack.c.h.b16 %v1255
        %v1428 = vunpack.c.l.b16 %v1256
        %v1429 = vunpack.c.h.b16 %v1256
        %v1430 = vunpack.c.l.b16 %v1257
        %v1431 = vunpack.c.h.b16 %v1257
        %v1432 = vunpack.c.l.b16 %v1258
        %v1433 = vunpack.c.h.b16 %v1258
        %v1434 = vunpack.c.l.b16 %v1259
        %v1435 = vunpack.c.h.b16 %v1259
        %v1436 = vunpack.c.l.b16 %v1260
        %v1437 = vunpack.c.h.b16 %v1260
        %v1438 = vunpack.c.l.b16 %v1261
        %v1439 = vunpack.c.h.b16 %v1261
        %v1440 = vunpack.c.l.b16 %v1262
        %v1441 = vunpack.c.h.b16 %v1262
        %v1442 = vunpack.c.l.b16 %v1263
        %v1443 = vunpack.c.h.b16 %v1263
        %v1444 = vunpack.c.l.b16 %v1264
        %v1445 = vunpack.c.h.b16 %v1264
        %v1446 = vunpack.c.l.b16 %v1265
        %v1447 = vunpack.c.h.b16 %v1265
        %v1448 = vunpack.c.l.b16 %v1266
        %v1449 = vunpack.c.h.b16 %v1266
        %v1450 = vunpack.c.l.b16 %v1267
        %v1451 = vunpack.c.h.b16 %v1267
        %v1452 = vunpack.c.l.b16 %v1268
        %v1453 = vunpack.c.h.b16 %v1268
        %v1454 = vunpack.c.l.b16 %v1269
        %v1455 = vunpack.c.h.b16 %v1269
        %v1456 = vunpack.c.l.b16 %v1270
        %v1457 = vunpack.c.h.b16 %v1270
        %v1458 = vunpack.c.l.b16 %v1271
        %v1459 = vunpack.c.h.b16 %v1271
        %v1460 = vunpack.c.l.b16 %v1272
        %v1461 = vunpack.c.h.b16 %v1272
        %v1462 = vunpack.c.l.b16 %v1273
        %v1463 = vunpack.c.h.b16 %v1273
        %v1464 = vunpack.c.l.b16 %v1274
        %v1465 = vunpack.c.h.b16 %v1274
        %v1466 = vunpack.c.l.b16 %v1275
        %v1467 = vunpack.c.h.b16 %v1275
        %v1468 = vunpack.c.l.b16 %v1276
        %v1469 = vunpack.c.h.b16 %v1276
        %v1470 = vunpack.c.l.b16 %v1277
        %v1471 = vunpack.c.h.b16 %v1277
        %v1472 = vunpack.c.l.b16 %v1278
        %v1473 = vunpack.c.h.b16 %v1278
        %v1474 = vunpack.c.l.b16 %v1279
        %v1475 = vunpack.c.h.b16 %v1279
        %v1476 = vunpack.c.l.b16 %v1280
        %v1477 = vunpack.c.h.b16 %v1280
        %v1478 = vunpack.c.l.b16 %v1281
        %v1479 = vunpack.c.h.b16 %v1281
        %v1480 = vunpack.c.l.b16 %v1282
        %v1481 = vunpack.c.h.b16 %v1282
        %v1482 = vunpack.c.l.b16 %v1283
        %v1483 = vunpack.c.h.b16 %v1283
        %v1484 = vunpack.c.l.b16 %v1284
        %v1485 = vunpack.c.h.b16 %v1284
        %v1486 = vunpack.c.l.b16 %v1285
        %v1487 = vunpack.c.h.b16 %v1285
        %v1488 = vunpack.c.l.b16 %v1286
        %v1489 = vunpack.c.h.b16 %v1286
        %v1490 = vunpack.c.l.b16 %v1287
        %v1491 = vunpack.c.h.b16 %v1287
        %v1492 = vunpack.c.l.b16 %v1288
        %v1493 = vunpack.c.h.b16 %v1288
        %v1494 = vunpack.c.l.b16 %v1289
        %v1495 = vunpack.c.h.b16 %v1289
        %v1496 = vunpack.c.l.b16 %v1290
        %v1497 = vunpack.c.h.b16 %v1290
        %v1498 = vunpack.c.l.b16 %v1291
        %v1499 = vunpack.c.h.b16 %v1291
        %v1500 = vunpack.c.l.b16 %v1292
        %v1501 = vunpack.c.h.b16 %v1292
        %v1502 = vunpack.c.l.b16 %v1293
        %v1503 = vunpack.c.h.b16 %v1293
        %v1504 = vunpack.c.l.b16 %v1294
        %v1505 = vunpack.c.h.b16 %v1294
        %v1506 = vunpack.c.l.b16 %v1295
        %v1507 = vunpack.c.h.b16 %v1295
        %v1508 = vunpack.c.l.b16 %v1296
        %v1509 = vunpack.c.h.b16 %v1296
        %v1510 = vunpack.c.l.b16 %v1297
        %v1511 = vunpack.c.h.b16 %v1297
        %v1512 = vunpack.c.l.b16 %v1298
        %v1513 = vunpack.c.h.b16 %v1298
        %v1514 = vunpack.c.l.b16 %v1299
        %v1515 = vunpack.c.h.b16 %v1299
        %v1516 = vunpack.c.l.b16 %v1300
        %v1517 = vunpack.c.h.b16 %v1300
        %v1518 = vunpack.c.l.b16 %v1301
        %v1519 = vunpack.c.h.b16 %v1301
        %v1520 = vunpack.c.l.b16 %v1302
        %v1521 = vunpack.c.h.b16 %v1302
        %v1522 = vunpack.c.l.b16 %v1303
        %v1523 = vunpack.c.h.b16 %v1303
        %v1524 = vunpack.c.l.b16 %v1304
        %v1525 = vunpack.c.h.b16 %v1304
        %v1526 = vunpack.c.l.b16 %v1305
        %v1527 = vunpack.c.h.b16 %v1305
        %v1528 = vunpack.c.l.b16 %v1306
        %v1529 = vunpack.c.h.b16 %v1306
        %v1530 = vunpack.c.l.b16 %v1307
        %v1531 = vunpack.c.h.b16 %v1307
        %v1532 = vunpack.c.l.b16 %v1308
        %v1533 = vunpack.c.h.b16 %v1308
        %v1534 = vunpack.c.l.b16 %v1309
        %v1535 = vunpack.c.h.b16 %v1309
        %v1536 = vunpack.c.l.b16 %v1310
        %v1537 = vunpack.c.h.b16 %v1310
        %v1538 = vunpack.c.l.b16 %v1311
        %v1539 = vunpack.c.h.b16 %v1311
        %v1540 = vunpack.c.l.b16 %v1312
        %v1541 = vunpack.c.h.b16 %v1312
        %v1542 = vunpack.c.l.b16 %v1313
        %v1543 = vunpack.c.h.b16 %v1313
        %v1544 = vunpack.c.l.b16 %v1314
        %v1545 = vunpack.c.h.b16 %v1314
        %v1546 = vunpack.c.l.b16 %v1315
        %v1547 = vunpack.c.h.b16 %v1315
        %v1548 = vunpack.c.l.b16 %v1316
        %v1549 = vunpack.c.h.b16 %v1316
        %v1550 = vunpack.c.l.b16 %v1317
        %v1551 = vunpack.c.h.b16 %v1317
        %v1552 = vpack.c.b16 %v1432, %v1424
        %v1553 = vpack.c.b16 %v1433, %v1425
        %v1554 = vpack.c.b16 %v1434, %v1426
        %v1555 = vpack.c.b16 %v1435, %v1427
        %v1556 = vpack.c.b16 %v1436, %v1428
        %v1557 = vpack.c.b16 %v1437, %v1429
        %v1558 = vpack.c.b16 %v1438, %v1430
        %v1559 = vpack.c.b16 %v1439, %v1431
        %v1560 = vpack.c.b16 %v1448, %v1440
        %v1561 = vpack.c.b16 %v1449, %v1441
        %v1562 = vpack.c.b16 %v1450, %v1442
        %v1563 = vpack.c.b16 %v1451, %v1443
        %v1564 = vpack.c.b16 %v1452, %v1444
        %v1565 = vpack.c.b16 %v1453, %v1445
        %v1566 = vpack.c.b16 %v1454, %v1446
        %v1567 = vpack.c.b16 %v1455, %v1447
        %v1568 = vpack.c.b16 %v1464, %v1456
        %v1569 = vpack.c.b16 %v1465, %v1457
        %v1570 = vpack.c.b16 %v1466, %v1458
        %v1571 = vpack.c.b16 %v1467, %v1459
        %v1572 = vpack.c.b16 %v1468, %v1460
        %v1573 = vpack.c.b16 %v1469, %v1461
        %v1574 = vpack.c.b16 %v1470, %v1462
        %v1575 = vpack.c.b16 %v1471, %v1463
        %v1576 = vpack.c.b16 %v1480, %v1472
        %v1577 = vpack.c.b16 %v1481, %v1473
        %v1578 = vpack.c.b16 %v1482, %v1474
        %v1579 = vpack.c.b16 %v1483, %v1475
        %v1580 = vpack.c.b16 %v1484, %v1476
        %v1581 = vpack.c.b16 %v1485, %v1477
        %v1582 = vpack.c.b16 %v1486, %v1478
        %v1583 = vpack.c.b16 %v1487, %v1479
        %v1584 = vpack.c.b16 %v1496, %v1488
        %v1585 = vpack.c.b16 %v1497, %v1489
        %v1586 = vpack.c.b16 %v1498, %v1490
        %v1587 = vpack.c.b16 %v1499, %v1491
        %v1588 = vpack.c.b16 %v1500, %v1492
        %v1589 = vpack.c.b16 %v1501, %v1493
        %v1590 = vpack.c.b16 %v1502, %v1494
        %v1591 = vpack.c.b16 %v1503, %v1495
        %v1592 = vpack.c.b16 %v1512, %v1504
        %v1593 = vpack.c.b16 %v1513, %v1505
        %v1594 = vpack.c.b16 %v1514, %v1506
        %v1595 = vpack.c.b16 %v1515, %v1507
        %v1596 = vpack.c.b16 %v1516, %v1508
        %v1597 = vpack.c.b16 %v1517, %v1509
        %v1598 = vpack.c.b16 %v1518, %v1510
        %v1599 = vpack.c.b16 %v1519, %v1511
        %v1600 = vpack.c.b16 %v1528, %v1520
        %v1601 = vpack.c.b16 %v1529, %v1521
        %v1602 = vpack.c.b16 %v1530, %v1522
        %v1603 = vpack.c.b16 %v1531, %v1523
        %v1604 = vpack.c.b16 %v1532, %v1524
        %v1605 = vpack.c.b16 %v1533, %v1525
        %v1606 = vpack.c.b16 %v1534, %v1526
        %v1607 = vpack.c.b16 %v1535, %v1527
        %v1608 = vpack.c.b16 %v1544, %v1536
        %v1609 = vpack.c.b16 %v1545, %v1537
        %v1610 = vpack.c.b16 %v1546, %v1538
        %v1611 = vpack.c.b16 %v1547, %v1539
        %v1612 = vpack.c.b16 %v1548, %v1540
        %v1613 = vpack.c.b16 %v1549, %v1541
        %v1614 = vpack.c.b16 %v1550, %v1542
        %v1615 = vpack.c.b16 %v1551, %v1543
        %1680 = vmatprep.subr.bf16.mxu0 %v1553
        %1681 = vmatpush1.bf16.msra.mxu0 %v1552
        %1682 = vmatprep.subr.bf16.mxu0 %v1561
        %1683 = vmatpush1.bf16.msra.mxu0 %v1560
        %1684 = vmatprep.subr.bf16.mxu0 %v1569
        %1685 = vmatpush1.bf16.msra.mxu0 %v1568
        %1686 = vmatprep.subr.bf16.mxu0 %v1577
        %1687 = vmatpush1.bf16.msra.mxu0 %v1576
        %1688 = vmatprep.subr.bf16.mxu0 %v1585
        %1689 = vmatpush1.bf16.msra.mxu0 %v1584
        %1690 = vmatprep.subr.bf16.mxu0 %v1593
        %1691 = vmatpush1.bf16.msra.mxu0 %v1592
        %1692 = vmatprep.subr.bf16.mxu0 %v1601
        %1693 = vmatpush1.bf16.msra.mxu0 %v1600
        %1694 = vmatprep.subr.bf16.mxu0 %v1609
        %1695 = vmatpush1.bf16.msra.mxu0 %v1608
        %1696 = vmatprep.subr.bf16.mxu0 0
        %1697 = vmatpush1.bf16.msra.mxu0 0
        %1698 = vmatprep.subr.bf16.mxu0 0
        %1699 = vmatpush1.bf16.msra.mxu0 0
        %1700 = vmatprep.subr.bf16.mxu0 0
        %1701 = vmatpush1.bf16.msra.mxu0 0
        %1702 = vmatprep.subr.bf16.mxu0 0
        %1703 = vmatpush1.bf16.msra.mxu0 0
        %1704 = vmatprep.subr.bf16.mxu0 0
        %1705 = vmatpush1.bf16.msra.mxu0 0
        %1706 = vmatprep.subr.bf16.mxu0 0
        %1707 = vmatpush1.bf16.msra.mxu0 0
        %1708 = vmatprep.subr.bf16.mxu0 0
        %1709 = vmatpush1.bf16.msra.mxu0 0
        %1710 = vmatprep.subr.bf16.mxu0 0
        %1711 = vmatpush1.bf16.msra.mxu0 0
        %1712 = vmatprep.mubr.bf16.mxu0 0
        %1713 = vmatmul.mubr.bf16.gmra.mrb[0].mxu0 %v1238
        %v1714 = vpop.f32.mrb[0].mxu0
        %v1715 = vadd.f32 %v1323, %v1714
        %v1716 = vpop.f32.mrb[0].mxu0
        %v1717 = vadd.f32 %v1327, %v1716
        %v1718 = vpop.f32.mrb[0].mxu0
        %v1719 = vadd.f32 %v1323, %v1718
        %v1720 = vpop.f32.mrb[0].mxu0
        %v1721 = vadd.f32 %v1327, %v1720
        %1722 = vmatprep.mubr.bf16.mxu0 0
        %1723 = vmatmul.mubr.bf16.gmra.mrb[0].mxu0 %v1239
        %v1724 = vpop.f32.mrb[0].mxu0
        %v1725 = vadd.f32 %v1323, %v1724
        %v1726 = vpop.f32.mrb[0].mxu0
        %v1727 = vadd.f32 %v1327, %v1726
        %v1728 = vpop.f32.mrb[0].mxu0
        %v1729 = vadd.f32 %v1323, %v1728
        %v1730 = vpop.f32.mrb[0].mxu0
        %v1731 = vadd.f32 %v1327, %v1730
        %1732 = vmatprep.mubr.bf16.mxu0 0
        %1733 = vmatmul.mubr.bf16.gmra.mrb[0].mxu0 %v1240
        %v1734 = vpop.f32.mrb[0].mxu0
        %v1735 = vadd.f32 %v1323, %v1734
        %v1736 = vpop.f32.mrb[0].mxu0
        %v1737 = vadd.f32 %v1327, %v1736
        %v1738 = vpop.f32.mrb[0].mxu0
        %v1739 = vadd.f32 %v1323, %v1738
        %v1740 = vpop.f32.mrb[0].mxu0
        %v1741 = vadd.f32 %v1327, %v1740
        %1742 = vmatprep.mubr.bf16.mxu0 0
        %1743 = vmatmul.mubr.bf16.gmra.mrb[0].mxu0 %v1241
        %v1744 = vpop.f32.mrb[0].mxu0
        %v1745 = vadd.f32 %v1323, %v1744
        %v1746 = vpop.f32.mrb[0].mxu0
        %v1747 = vadd.f32 %v1327, %v1746
        %v1748 = vpop.f32.mrb[0].mxu0
        %v1749 = vadd.f32 %v1323, %v1748
        %v1750 = vpop.f32.mrb[0].mxu0
        %v1751 = vadd.f32 %v1327, %v1750
        %1752 = vmatprep.mubr.bf16.mxu0 0
        %1753 = vmatmul.mubr.bf16.gmra.mrb[0].mxu0 %v1242
        %v1754 = vpop.f32.mrb[0].mxu0
        %v1755 = vadd.f32 %v1323, %v1754
        %v1756 = vpop.f32.mrb[0].mxu0
        %v1757 = vadd.f32 %v1327, %v1756
        %v1758 = vpop.f32.mrb[0].mxu0
        %v1759 = vadd.f32 %v1323, %v1758
        %v1760 = vpop.f32.mrb[0].mxu0
        %v1761 = vadd.f32 %v1327, %v1760
        %1762 = vmatprep.mubr.bf16.mxu0 0
        %1763 = vmatmul.mubr.bf16.gmra.mrb[0].mxu0 %v1243
        %v1764 = vpop.f32.mrb[0].mxu0
        %v1765 = vadd.f32 %v1323, %v1764
        %v1766 = vpop.f32.mrb[0].mxu0
        %v1767 = vadd.f32 %v1327, %v1766
        %v1768 = vpop.f32.mrb[0].mxu0
        %v1769 = vadd.f32 %v1323, %v1768
        %v1770 = vpop.f32.mrb[0].mxu0
        %v1771 = vadd.f32 %v1327, %v1770
        %1772 = vmatprep.mubr.bf16.mxu0 0
        %1773 = vmatmul.mubr.bf16.gmra.mrb[0].mxu0 %v1244
        %v1774 = vpop.f32.mrb[0].mxu0
        %v1775 = vadd.f32 %v1323, %v1774
        %v1776 = vpop.f32.mrb[0].mxu0
        %v1777 = vadd.f32 %v1327, %v1776
        %v1778 = vpop.f32.mrb[0].mxu0
        %v1779 = vadd.f32 %v1323, %v1778
        %v1780 = vpop.f32.mrb[0].mxu0
        %v1781 = vadd.f32 %v1327, %v1780
        %1782 = vmatprep.mubr.bf16.mxu0 0
        %1783 = vmatmul.mubr.bf16.gmra.mrb[0].mxu0 %v1245
        %v1784 = vpop.f32.mrb[0].mxu0
        %v1785 = vadd.f32 %v1323, %v1784
        %v1786 = vpop.f32.mrb[0].mxu0
        %v1787 = vadd.f32 %v1327, %v1786
        %v1788 = vpop.f32.mrb[0].mxu0
        %v1789 = vadd.f32 %v1323, %v1788
        %v1790 = vpop.f32.mrb[0].mxu0
        %v1791 = vadd.f32 %v1327, %v1790
        %1792 = vmatprep.mubr.bf16.mxu0 0
        %1793 = vmatmul.mubr.bf16.gmra.mrb[0].mxu0 %v1246
        %v1794 = vpop.f32.mrb[0].mxu0
        %v1795 = vadd.f32 %v1323, %v1794
        %v1796 = vpop.f32.mrb[0].mxu0
        %v1797 = vadd.f32 %v1327, %v1796
        %v1798 = vpop.f32.mrb[0].mxu0
        %v1799 = vadd.f32 %v1323, %v1798
        %v1800 = vpop.f32.mrb[0].mxu0
        %v1801 = vadd.f32 %v1327, %v1800
        %1802 = vmatprep.mubr.bf16.mxu0 0
        %1803 = vmatmul.mubr.bf16.gmra.mrb[0].mxu0 %v1247
        %v1804 = vpop.f32.mrb[0].mxu0
        %v1805 = vadd.f32 %v1323, %v1804
        %v1806 = vpop.f32.mrb[0].mxu0
        %v1807 = vadd.f32 %v1327, %v1806
        %v1808 = vpop.f32.mrb[0].mxu0
        %v1809 = vadd.f32 %v1323, %v1808
        %v1810 = vpop.f32.mrb[0].mxu0
        %v1811 = vadd.f32 %v1327, %v1810
        %1812 = vmatprep.mubr.bf16.mxu0 0
        %1813 = vmatmul.mubr.bf16.gmra.mrb[0].mxu0 %v1248
        %v1814 = vpop.f32.mrb[0].mxu0
        %v1815 = vadd.f32 %v1323, %v1814
        %v1816 = vpop.f32.mrb[0].mxu0
        %v1817 = vadd.f32 %v1327, %v1816
        %v1818 = vpop.f32.mrb[0].mxu0
        %v1819 = vadd.f32 %v1323, %v1818
        %v1820 = vpop.f32.mrb[0].mxu0
        %v1821 = vadd.f32 %v1327, %v1820
        %1822 = vmatprep.mubr.bf16.mxu0 0
        %1823 = vmatmul.mubr.bf16.gmra.mrb[0].mxu0 %v1249
        %v1824 = vpop.f32.mrb[0].mxu0
        %v1825 = vadd.f32 %v1323, %v1824
        %v1826 = vpop.f32.mrb[0].mxu0
        %v1827 = vadd.f32 %v1327, %v1826
        %v1828 = vpop.f32.mrb[0].mxu0
        %v1829 = vadd.f32 %v1323, %v1828
        %v1830 = vpop.f32.mrb[0].mxu0
        %v1831 = vadd.f32 %v1327, %v1830
        %1832 = vmatprep.mubr.bf16.mxu0 0
        %1833 = vmatmul.mubr.bf16.gmra.mrb[0].mxu0 %v1250
        %v1834 = vpop.f32.mrb[0].mxu0
        %v1835 = vadd.f32 %v1323, %v1834
        %v1836 = vpop.f32.mrb[0].mxu0
        %v1837 = vadd.f32 %v1327, %v1836
        %v1838 = vpop.f32.mrb[0].mxu0
        %v1839 = vadd.f32 %v1323, %v1838
        %v1840 = vpop.f32.mrb[0].mxu0
        %v1841 = vadd.f32 %v1327, %v1840
        %1842 = vmatprep.mubr.bf16.mxu0 0
        %1843 = vmatmul.mubr.bf16.gmra.mrb[0].mxu0 %v1251
        %v1844 = vpop.f32.mrb[0].mxu0
        %v1845 = vadd.f32 %v1323, %v1844
        %v1846 = vpop.f32.mrb[0].mxu0
        %v1847 = vadd.f32 %v1327, %v1846
        %v1848 = vpop.f32.mrb[0].mxu0
        %v1849 = vadd.f32 %v1323, %v1848
        %v1850 = vpop.f32.mrb[0].mxu0
        %v1851 = vadd.f32 %v1327, %v1850
        %1852 = vmatprep.mubr.bf16.mxu0 0
        %1853 = vmatmul.mubr.bf16.gmra.mrb[0].mxu0 %v1252
        %v1854 = vpop.f32.mrb[0].mxu0
        %v1855 = vadd.f32 %v1323, %v1854
        %v1856 = vpop.f32.mrb[0].mxu0
        %v1857 = vadd.f32 %v1327, %v1856
        %v1858 = vpop.f32.mrb[0].mxu0
        %v1859 = vadd.f32 %v1323, %v1858
        %v1860 = vpop.f32.mrb[0].mxu0
        %v1861 = vadd.f32 %v1327, %v1860
        %1862 = vmatprep.mubr.bf16.mxu0 0
        %1863 = vmatmul.mubr.bf16.gmra.mrb[0].mxu0 %v1253
        %v1864 = vpop.f32.mrb[0].mxu0
        %v1865 = vadd.f32 %v1323, %v1864
        %v1866 = vpop.f32.mrb[0].mxu0
        %v1867 = vadd.f32 %v1327, %v1866
        %v1868 = vpop.f32.mrb[0].mxu0
        %v1869 = vadd.f32 %v1323, %v1868
        %v1870 = vpop.f32.mrb[0].mxu0
        %v1871 = vadd.f32 %v1327, %v1870
        %1872 = vdwg.mxu0
        %1873 = vmatprep.subr.bf16.mxu0 %v1555
        %1874 = vmatpush1.bf16.msra.mxu0 %v1554
        %1875 = vmatprep.subr.bf16.mxu0 %v1563
        %1876 = vmatpush1.bf16.msra.mxu0 %v1562
        %1877 = vmatprep.subr.bf16.mxu0 %v1571
        %1878 = vmatpush1.bf16.msra.mxu0 %v1570
        %1879 = vmatprep.subr.bf16.mxu0 %v1579
        %1880 = vmatpush1.bf16.msra.mxu0 %v1578
        %1881 = vmatprep.subr.bf16.mxu0 %v1587
        %1882 = vmatpush1.bf16.msra.mxu0 %v1586
        %1883 = vmatprep.subr.bf16.mxu0 %v1595
        %1884 = vmatpush1.bf16.msra.mxu0 %v1594
        %1885 = vmatprep.subr.bf16.mxu0 %v1603
        %1886 = vmatpush1.bf16.msra.mxu0 %v1602
        %1887 = vmatprep.subr.bf16.mxu0 %v1611
        %1888 = vmatpush1.bf16.msra.mxu0 %v1610
        %1889 = vmatprep.subr.bf16.mxu0 0
        %1890 = vmatpush1.bf16.msra.mxu0 0
        %1891 = vmatprep.subr.bf16.mxu0 0
        %1892 = vmatpush1.bf16.msra.mxu0 0
        %1893 = vmatprep.subr.bf16.mxu0 0
        %1894 = vmatpush1.bf16.msra.mxu0 0
        %1895 = vmatprep.subr.bf16.mxu0 0
        %1896 = vmatpush1.bf16.msra.mxu0 0
        %1897 = vmatprep.subr.bf16.mxu0 0
        %1898 = vmatpush1.bf16.msra.mxu0 0
        %1899 = vmatprep.subr.bf16.mxu0 0
        %1900 = vmatpush1.bf16.msra.mxu0 0
        %1901 = vmatprep.subr.bf16.mxu0 0
        %1902 = vmatpush1.bf16.msra.mxu0 0
        %1903 = vmatprep.subr.bf16.mxu0 0
        %1904 = vmatpush1.bf16.msra.mxu0 0
        %1905 = vmatprep.mubr.bf16.mxu0 0
        %1906 = vmatmul.mubr.bf16.gmra.mrb[0].mxu0 %v1238
        %v1907 = vpop.f32.mrb[0].mxu0
        %v1908 = vadd.f32 %v1331, %v1907
        %v1909 = vpop.f32.mrb[0].mxu0
        %v1910 = vadd.f32 %v1335, %v1909
        %v1911 = vpop.f32.mrb[0].mxu0
        %v1912 = vadd.f32 %v1331, %v1911
        %v1913 = vpop.f32.mrb[0].mxu0
        %v1914 = vadd.f32 %v1335, %v1913
        %1915 = vmatprep.mubr.bf16.mxu0 0
        %1916 = vmatmul.mubr.bf16.gmra.mrb[0].mxu0 %v1239
        %v1917 = vpop.f32.mrb[0].mxu0
        %v1918 = vadd.f32 %v1331, %v1917
        %v1919 = vpop.f32.mrb[0].mxu0
        %v1920 = vadd.f32 %v1335, %v1919
        %v1921 = vpop.f32.mrb[0].mxu0
        %v1922 = vadd.f32 %v1331, %v1921
        %v1923 = vpop.f32.mrb[0].mxu0
        %v1924 = vadd.f32 %v1335, %v1923
        %1925 = vmatprep.mubr.bf16.mxu0 0
        %1926 = vmatmul.mubr.bf16.gmra.mrb[0].mxu0 %v1240
        %v1927 = vpop.f32.mrb[0].mxu0
        %v1928 = vadd.f32 %v1331, %v1927
        %v1929 = vpop.f32.mrb[0].mxu0
        %v1930 = vadd.f32 %v1335, %v1929
        %v1931 = vpop.f32.mrb[0].mxu0
        %v1932 = vadd.f32 %v1331, %v1931
        %v1933 = vpop.f32.mrb[0].mxu0
        %v1934 = vadd.f32 %v1335, %v1933
        %1935 = vmatprep.mubr.bf16.mxu0 0
        %1936 = vmatmul.mubr.bf16.gmra.mrb[0].mxu0 %v1241
        %v1937 = vpop.f32.mrb[0].mxu0
        %v1938 = vadd.f32 %v1331, %v1937
        %v1939 = vpop.f32.mrb[0].mxu0
        %v1940 = vadd.f32 %v1335, %v1939
        %v1941 = vpop.f32.mrb[0].mxu0
        %v1942 = vadd.f32 %v1331, %v1941
        %v1943 = vpop.f32.mrb[0].mxu0
        %v1944 = vadd.f32 %v1335, %v1943
        %1945 = vmatprep.mubr.bf16.mxu0 0
        %1946 = vmatmul.mubr.bf16.gmra.mrb[0].mxu0 %v1242
        %v1947 = vpop.f32.mrb[0].mxu0
        %v1948 = vadd.f32 %v1331, %v1947
        %v1949 = vpop.f32.mrb[0].mxu0
        %v1950 = vadd.f32 %v1335, %v1949
        %v1951 = vpop.f32.mrb[0].mxu0
        %v1952 = vadd.f32 %v1331, %v1951
        %v1953 = vpop.f32.mrb[0].mxu0
        %v1954 = vadd.f32 %v1335, %v1953
        %1955 = vmatprep.mubr.bf16.mxu0 0
        %1956 = vmatmul.mubr.bf16.gmra.mrb[0].mxu0 %v1243
        %v1957 = vpop.f32.mrb[0].mxu0
        %v1958 = vadd.f32 %v1331, %v1957
        %v1959 = vpop.f32.mrb[0].mxu0
        %v1960 = vadd.f32 %v1335, %v1959
        %v1961 = vpop.f32.mrb[0].mxu0
        %v1962 = vadd.f32 %v1331, %v1961
        %v1963 = vpop.f32.mrb[0].mxu0
        %v1964 = vadd.f32 %v1335, %v1963
        %1965 = vmatprep.mubr.bf16.mxu0 0
        %1966 = vmatmul.mubr.bf16.gmra.mrb[0].mxu0 %v1244
        %v1967 = vpop.f32.mrb[0].mxu0
        %v1968 = vadd.f32 %v1331, %v1967
        %v1969 = vpop.f32.mrb[0].mxu0
        %v1970 = vadd.f32 %v1335, %v1969
        %v1971 = vpop.f32.mrb[0].mxu0
        %v1972 = vadd.f32 %v1331, %v1971
        %v1973 = vpop.f32.mrb[0].mxu0
        %v1974 = vadd.f32 %v1335, %v1973
        %1975 = vmatprep.mubr.bf16.mxu0 0
        %1976 = vmatmul.mubr.bf16.gmra.mrb[0].mxu0 %v1245
        %v1977 = vpop.f32.mrb[0].mxu0
        %v1978 = vadd.f32 %v1331, %v1977
        %v1979 = vpop.f32.mrb[0].mxu0
        %v1980 = vadd.f32 %v1335, %v1979
        %v1981 = vpop.f32.mrb[0].mxu0
        %v1982 = vadd.f32 %v1331, %v1981
        %v1983 = vpop.f32.mrb[0].mxu0
        %v1984 = vadd.f32 %v1335, %v1983
        %1985 = vmatprep.mubr.bf16.mxu0 0
        %1986 = vmatmul.mubr.bf16.gmra.mrb[0].mxu0 %v1246
        %v1987 = vpop.f32.mrb[0].mxu0
        %v1988 = vadd.f32 %v1331, %v1987
        %v1989 = vpop.f32.mrb[0].mxu0
        %v1990 = vadd.f32 %v1335, %v1989
        %v1991 = vpop.f32.mrb[0].mxu0
        %v1992 = vadd.f32 %v1331, %v1991
        %v1993 = vpop.f32.mrb[0].mxu0
        %v1994 = vadd.f32 %v1335, %v1993
        %1995 = vmatprep.mubr.bf16.mxu0 0
        %1996 = vmatmul.mubr.bf16.gmra.mrb[0].mxu0 %v1247
        %v1997 = vpop.f32.mrb[0].mxu0
        %v1998 = vadd.f32 %v1331, %v1997
        %v1999 = vpop.f32.mrb[0].mxu0
        %v2000 = vadd.f32 %v1335, %v1999
        %v2001 = vpop.f32.mrb[0].mxu0
        %v2002 = vadd.f32 %v1331, %v2001
        %v2003 = vpop.f32.mrb[0].mxu0
        %v2004 = vadd.f32 %v1335, %v2003
        %2005 = vmatprep.mubr.bf16.mxu0 0
        %2006 = vmatmul.mubr.bf16.gmra.mrb[0].mxu0 %v1248
        %v2007 = vpop.f32.mrb[0].mxu0
        %v2008 = vadd.f32 %v1331, %v2007
        %v2009 = vpop.f32.mrb[0].mxu0
        %v2010 = vadd.f32 %v1335, %v2009
        %v2011 = vpop.f32.mrb[0].mxu0
        %v2012 = vadd.f32 %v1331, %v2011
        %v2013 = vpop.f32.mrb[0].mxu0
        %v2014 = vadd.f32 %v1335, %v2013
        %2015 = vmatprep.mubr.bf16.mxu0 0
        %2016 = vmatmul.mubr.bf16.gmra.mrb[0].mxu0 %v1249
        %v2017 = vpop.f32.mrb[0].mxu0
        %v2018 = vadd.f32 %v1331, %v2017
        %v2019 = vpop.f32.mrb[0].mxu0
        %v2020 = vadd.f32 %v1335, %v2019
        %v2021 = vpop.f32.mrb[0].mxu0
        %v2022 = vadd.f32 %v1331, %v2021
        %v2023 = vpop.f32.mrb[0].mxu0
        %v2024 = vadd.f32 %v1335, %v2023
        %2025 = vmatprep.mubr.bf16.mxu0 0
        %2026 = vmatmul.mubr.bf16.gmra.mrb[0].mxu0 %v1250
        %v2027 = vpop.f32.mrb[0].mxu0
        %v2028 = vadd.f32 %v1331, %v2027
        %v2029 = vpop.f32.mrb[0].mxu0
        %v2030 = vadd.f32 %v1335, %v2029
        %v2031 = vpop.f32.mrb[0].mxu0
        %v2032 = vadd.f32 %v1331, %v2031
        %v2033 = vpop.f32.mrb[0].mxu0
        %v2034 = vadd.f32 %v1335, %v2033
        %2035 = vmatprep.mubr.bf16.mxu0 0
        %2036 = vmatmul.mubr.bf16.gmra.mrb[0].mxu0 %v1251
        %v2037 = vpop.f32.mrb[0].mxu0
        %v2038 = vadd.f32 %v1331, %v2037
        %v2039 = vpop.f32.mrb[0].mxu0
        %v2040 = vadd.f32 %v1335, %v2039
        %v2041 = vpop.f32.mrb[0].mxu0
        %v2042 = vadd.f32 %v1331, %v2041
        %v2043 = vpop.f32.mrb[0].mxu0
        %v2044 = vadd.f32 %v1335, %v2043
        %2045 = vmatprep.mubr.bf16.mxu0 0
        %2046 = vmatmul.mubr.bf16.gmra.mrb[0].mxu0 %v1252
        %v2047 = vpop.f32.mrb[0].mxu0
        %v2048 = vadd.f32 %v1331, %v2047
        %v2049 = vpop.f32.mrb[0].mxu0
        %v2050 = vadd.f32 %v1335, %v2049
        %v2051 = vpop.f32.mrb[0].mxu0
        %v2052 = vadd.f32 %v1331, %v2051
        %v2053 = vpop.f32.mrb[0].mxu0
        %v2054 = vadd.f32 %v1335, %v2053
        %2055 = vmatprep.mubr.bf16.mxu0 0
        %2056 = vmatmul.mubr.bf16.gmra.mrb[0].mxu0 %v1253
        %v2057 = vpop.f32.mrb[0].mxu0
        %v2058 = vadd.f32 %v1331, %v2057
        %v2059 = vpop.f32.mrb[0].mxu0
        %v2060 = vadd.f32 %v1335, %v2059
        %v2061 = vpop.f32.mrb[0].mxu0
        %v2062 = vadd.f32 %v1331, %v2061
        %v2063 = vpop.f32.mrb[0].mxu0
        %v2064 = vadd.f32 %v1335, %v2063
        %2065 = vdwg.mxu0
        %2066 = vmatprep.subr.bf16.mxu0 %v1557
        %2067 = vmatpush1.bf16.msra.mxu0 %v1556
        %2068 = vmatprep.subr.bf16.mxu0 %v1565
        %2069 = vmatpush1.bf16.msra.mxu0 %v1564
        %2070 = vmatprep.subr.bf16.mxu0 %v1573
        %2071 = vmatpush1.bf16.msra.mxu0 %v1572
        %2072 = vmatprep.subr.bf16.mxu0 %v1581
        %2073 = vmatpush1.bf16.msra.mxu0 %v1580
        %2074 = vmatprep.subr.bf16.mxu0 %v1589
        %2075 = vmatpush1.bf16.msra.mxu0 %v1588
        %2076 = vmatprep.subr.bf16.mxu0 %v1597
        %2077 = vmatpush1.bf16.msra.mxu0 %v1596
        %2078 = vmatprep.subr.bf16.mxu0 %v1605
        %2079 = vmatpush1.bf16.msra.mxu0 %v1604
        %2080 = vmatprep.subr.bf16.mxu0 %v1613
        %2081 = vmatpush1.bf16.msra.mxu0 %v1612
        %2082 = vmatprep.subr.bf16.mxu0 0
        %2083 = vmatpush1.bf16.msra.mxu0 0
        %2084 = vmatprep.subr.bf16.mxu0 0
        %2085 = vmatpush1.bf16.msra.mxu0 0
        %2086 = vmatprep.subr.bf16.mxu0 0
        %2087 = vmatpush1.bf16.msra.mxu0 0
        %2088 = vmatprep.subr.bf16.mxu0 0
        %2089 = vmatpush1.bf16.msra.mxu0 0
        %2090 = vmatprep.subr.bf16.mxu0 0
        %2091 = vmatpush1.bf16.msra.mxu0 0
        %2092 = vmatprep.subr.bf16.mxu0 0
        %2093 = vmatpush1.bf16.msra.mxu0 0
        %2094 = vmatprep.subr.bf16.mxu0 0
        %2095 = vmatpush1.bf16.msra.mxu0 0
        %2096 = vmatprep.subr.bf16.mxu0 0
        %2097 = vmatpush1.bf16.msra.mxu0 0
        %2098 = vmatprep.mubr.bf16.mxu0 0
        %2099 = vmatmul.mubr.bf16.gmra.mrb[0].mxu0 %v1238
        %v2100 = vpop.f32.mrb[0].mxu0
        %v2101 = vadd.f32 %v1339, %v2100
        %v2102 = vpop.f32.mrb[0].mxu0
        %v2103 = vadd.f32 %v1343, %v2102
        %v2104 = vpop.f32.mrb[0].mxu0
        %v2105 = vadd.f32 %v1339, %v2104
        %v2106 = vpop.f32.mrb[0].mxu0
        %v2107 = vadd.f32 %v1343, %v2106
        %2108 = vmatprep.mubr.bf16.mxu0 0
        %2109 = vmatmul.mubr.bf16.gmra.mrb[0].mxu0 %v1239
        %v2110 = vpop.f32.mrb[0].mxu0
        %v2111 = vadd.f32 %v1339, %v2110
        %v2112 = vpop.f32.mrb[0].mxu0
        %v2113 = vadd.f32 %v1343, %v2112
        %v2114 = vpop.f32.mrb[0].mxu0
        %v2115 = vadd.f32 %v1339, %v2114
        %v2116 = vpop.f32.mrb[0].mxu0
        %v2117 = vadd.f32 %v1343, %v2116
        %2118 = vmatprep.mubr.bf16.mxu0 0
        %2119 = vmatmul.mubr.bf16.gmra.mrb[0].mxu0 %v1240
        %v2120 = vpop.f32.mrb[0].mxu0
        %v2121 = vadd.f32 %v1339, %v2120
        %v2122 = vpop.f32.mrb[0].mxu0
        %v2123 = vadd.f32 %v1343, %v2122
        %v2124 = vpop.f32.mrb[0].mxu0
        %v2125 = vadd.f32 %v1339, %v2124
        %v2126 = vpop.f32.mrb[0].mxu0
        %v2127 = vadd.f32 %v1343, %v2126
        %2128 = vmatprep.mubr.bf16.mxu0 0
        %2129 = vmatmul.mubr.bf16.gmra.mrb[0].mxu0 %v1241
        %v2130 = vpop.f32.mrb[0].mxu0
        %v2131 = vadd.f32 %v1339, %v2130
        %v2132 = vpop.f32.mrb[0].mxu0
        %v2133 = vadd.f32 %v1343, %v2132
        %v2134 = vpop.f32.mrb[0].mxu0
        %v2135 = vadd.f32 %v1339, %v2134
        %v2136 = vpop.f32.mrb[0].mxu0
        %v2137 = vadd.f32 %v1343, %v2136
        %2138 = vmatprep.mubr.bf16.mxu0 0
        %2139 = vmatmul.mubr.bf16.gmra.mrb[0].mxu0 %v1242
        %v2140 = vpop.f32.mrb[0].mxu0
        %v2141 = vadd.f32 %v1339, %v2140
        %v2142 = vpop.f32.mrb[0].mxu0
        %v2143 = vadd.f32 %v1343, %v2142
        %v2144 = vpop.f32.mrb[0].mxu0
        %v2145 = vadd.f32 %v1339, %v2144
        %v2146 = vpop.f32.mrb[0].mxu0
        %v2147 = vadd.f32 %v1343, %v2146
        %2148 = vmatprep.mubr.bf16.mxu0 0
        %2149 = vmatmul.mubr.bf16.gmra.mrb[0].mxu0 %v1243
        %v2150 = vpop.f32.mrb[0].mxu0
        %v2151 = vadd.f32 %v1339, %v2150
        %v2152 = vpop.f32.mrb[0].mxu0
        %v2153 = vadd.f32 %v1343, %v2152
        %v2154 = vpop.f32.mrb[0].mxu0
        %v2155 = vadd.f32 %v1339, %v2154
        %v2156 = vpop.f32.mrb[0].mxu0
        %v2157 = vadd.f32 %v1343, %v2156
        %2158 = vmatprep.mubr.bf16.mxu0 0
        %2159 = vmatmul.mubr.bf16.gmra.mrb[0].mxu0 %v1244
        %v2160 = vpop.f32.mrb[0].mxu0
        %v2161 = vadd.f32 %v1339, %v2160
        %v2162 = vpop.f32.mrb[0].mxu0
        %v2163 = vadd.f32 %v1343, %v2162
        %v2164 = vpop.f32.mrb[0].mxu0
        %v2165 = vadd.f32 %v1339, %v2164
        %v2166 = vpop.f32.mrb[0].mxu0
        %v2167 = vadd.f32 %v1343, %v2166
        %2168 = vmatprep.mubr.bf16.mxu0 0
        %2169 = vmatmul.mubr.bf16.gmra.mrb[0].mxu0 %v1245
        %v2170 = vpop.f32.mrb[0].mxu0
        %v2171 = vadd.f32 %v1339, %v2170
        %v2172 = vpop.f32.mrb[0].mxu0
        %v2173 = vadd.f32 %v1343, %v2172
        %v2174 = vpop.f32.mrb[0].mxu0
        %v2175 = vadd.f32 %v1339, %v2174
        %v2176 = vpop.f32.mrb[0].mxu0
        %v2177 = vadd.f32 %v1343, %v2176
        %2178 = vmatprep.mubr.bf16.mxu0 0
        %2179 = vmatmul.mubr.bf16.gmra.mrb[0].mxu0 %v1246
        %v2180 = vpop.f32.mrb[0].mxu0
        %v2181 = vadd.f32 %v1339, %v2180
        %v2182 = vpop.f32.mrb[0].mxu0
        %v2183 = vadd.f32 %v1343, %v2182
        %v2184 = vpop.f32.mrb[0].mxu0
        %v2185 = vadd.f32 %v1339, %v2184
        %v2186 = vpop.f32.mrb[0].mxu0
        %v2187 = vadd.f32 %v1343, %v2186
        %2188 = vmatprep.mubr.bf16.mxu0 0
        %2189 = vmatmul.mubr.bf16.gmra.mrb[0].mxu0 %v1247
        %v2190 = vpop.f32.mrb[0].mxu0
        %v2191 = vadd.f32 %v1339, %v2190
        %v2192 = vpop.f32.mrb[0].mxu0
        %v2193 = vadd.f32 %v1343, %v2192
        %v2194 = vpop.f32.mrb[0].mxu0
        %v2195 = vadd.f32 %v1339, %v2194
        %v2196 = vpop.f32.mrb[0].mxu0
        %v2197 = vadd.f32 %v1343, %v2196
        %2198 = vmatprep.mubr.bf16.mxu0 0
        %2199 = vmatmul.mubr.bf16.gmra.mrb[0].mxu0 %v1248
        %v2200 = vpop.f32.mrb[0].mxu0
        %v2201 = vadd.f32 %v1339, %v2200
        %v2202 = vpop.f32.mrb[0].mxu0
        %v2203 = vadd.f32 %v1343, %v2202
        %v2204 = vpop.f32.mrb[0].mxu0
        %v2205 = vadd.f32 %v1339, %v2204
        %v2206 = vpop.f32.mrb[0].mxu0
        %v2207 = vadd.f32 %v1343, %v2206
        %2208 = vmatprep.mubr.bf16.mxu0 0
        %2209 = vmatmul.mubr.bf16.gmra.mrb[0].mxu0 %v1249
        %v2210 = vpop.f32.mrb[0].mxu0
        %v2211 = vadd.f32 %v1339, %v2210
        %v2212 = vpop.f32.mrb[0].mxu0
        %v2213 = vadd.f32 %v1343, %v2212
        %v2214 = vpop.f32.mrb[0].mxu0
        %v2215 = vadd.f32 %v1339, %v2214
        %v2216 = vpop.f32.mrb[0].mxu0
        %v2217 = vadd.f32 %v1343, %v2216
        %2218 = vmatprep.mubr.bf16.mxu0 0
        %2219 = vmatmul.mubr.bf16.gmra.mrb[0].mxu0 %v1250
        %v2220 = vpop.f32.mrb[0].mxu0
        %v2221 = vadd.f32 %v1339, %v2220
        %v2222 = vpop.f32.mrb[0].mxu0
        %v2223 = vadd.f32 %v1343, %v2222
        %v2224 = vpop.f32.mrb[0].mxu0
        %v2225 = vadd.f32 %v1339, %v2224
        %v2226 = vpop.f32.mrb[0].mxu0
        %v2227 = vadd.f32 %v1343, %v2226
        %2228 = vmatprep.mubr.bf16.mxu0 0
        %2229 = vmatmul.mubr.bf16.gmra.mrb[0].mxu0 %v1251
        %v2230 = vpop.f32.mrb[0].mxu0
        %v2231 = vadd.f32 %v1339, %v2230
        %v2232 = vpop.f32.mrb[0].mxu0
        %v2233 = vadd.f32 %v1343, %v2232
        %v2234 = vpop.f32.mrb[0].mxu0
        %v2235 = vadd.f32 %v1339, %v2234
        %v2236 = vpop.f32.mrb[0].mxu0
        %v2237 = vadd.f32 %v1343, %v2236
        %2238 = vmatprep.mubr.bf16.mxu0 0
        %2239 = vmatmul.mubr.bf16.gmra.mrb[0].mxu0 %v1252
        %v2240 = vpop.f32.mrb[0].mxu0
        %v2241 = vadd.f32 %v1339, %v2240
        %v2242 = vpop.f32.mrb[0].mxu0
        %v2243 = vadd.f32 %v1343, %v2242
        %v2244 = vpop.f32.mrb[0].mxu0
        %v2245 = vadd.f32 %v1339, %v2244
        %v2246 = vpop.f32.mrb[0].mxu0
        %v2247 = vadd.f32 %v1343, %v2246
        %2248 = vmatprep.mubr.bf16.mxu0 0
        %2249 = vmatmul.mubr.bf16.gmra.mrb[0].mxu0 %v1253
        %v2250 = vpop.f32.mrb[0].mxu0
        %v2251 = vadd.f32 %v1339, %v2250
        %v2252 = vpop.f32.mrb[0].mxu0
        %v2253 = vadd.f32 %v1343, %v2252
        %v2254 = vpop.f32.mrb[0].mxu0
        %v2255 = vadd.f32 %v1339, %v2254
        %v2256 = vpop.f32.mrb[0].mxu0
        %v2257 = vadd.f32 %v1343, %v2256
        %2258 = vdwg.mxu0
        %2259 = vmatprep.subr.bf16.mxu0 %v1559
        %2260 = vmatpush1.bf16.msra.mxu0 %v1558
        %2261 = vmatprep.subr.bf16.mxu0 %v1567
        %2262 = vmatpush1.bf16.msra.mxu0 %v1566
        %2263 = vmatprep.subr.bf16.mxu0 %v1575
        %2264 = vmatpush1.bf16.msra.mxu0 %v1574
        %2265 = vmatprep.subr.bf16.mxu0 %v1583
        %2266 = vmatpush1.bf16.msra.mxu0 %v1582
        %2267 = vmatprep.subr.bf16.mxu0 %v1591
        %2268 = vmatpush1.bf16.msra.mxu0 %v1590
        %2269 = vmatprep.subr.bf16.mxu0 %v1599
        %2270 = vmatpush1.bf16.msra.mxu0 %v1598
        %2271 = vmatprep.subr.bf16.mxu0 %v1607
        %2272 = vmatpush1.bf16.msra.mxu0 %v1606
        %2273 = vmatprep.subr.bf16.mxu0 %v1615
        %2274 = vmatpush1.bf16.msra.mxu0 %v1614
        %2275 = vmatprep.subr.bf16.mxu0 0
        %2276 = vmatpush1.bf16.msra.mxu0 0
        %2277 = vmatprep.subr.bf16.mxu0 0
        %2278 = vmatpush1.bf16.msra.mxu0 0
        %2279 = vmatprep.subr.bf16.mxu0 0
        %2280 = vmatpush1.bf16.msra.mxu0 0
        %2281 = vmatprep.subr.bf16.mxu0 0
        %2282 = vmatpush1.bf16.msra.mxu0 0
        %2283 = vmatprep.subr.bf16.mxu0 0
        %2284 = vmatpush1.bf16.msra.mxu0 0
        %2285 = vmatprep.subr.bf16.mxu0 0
        %2286 = vmatpush1.bf16.msra.mxu0 0
        %2287 = vmatprep.subr.bf16.mxu0 0
        %2288 = vmatpush1.bf16.msra.mxu0 0
        %2289 = vmatprep.subr.bf16.mxu0 0
        %2290 = vmatpush1.bf16.msra.mxu0 0
        %2291 = vmatprep.mubr.bf16.mxu0 0
        %2292 = vmatmul.mubr.bf16.gmra.mrb[0].mxu0 %v1238
        %v2293 = vpop.f32.mrb[0].mxu0
        %v2294 = vadd.f32 %v1347, %v2293
        %v2295 = vpop.f32.mrb[0].mxu0
        %v2296 = vadd.f32 %v1351, %v2295
        %v2297 = vpop.f32.mrb[0].mxu0
        %v2298 = vadd.f32 %v1347, %v2297
        %v2299 = vpop.f32.mrb[0].mxu0
        %v2300 = vadd.f32 %v1351, %v2299
        %2301 = vmatprep.mubr.bf16.mxu0 0
        %2302 = vmatmul.mubr.bf16.gmra.mrb[0].mxu0 %v1239
        %v2303 = vpop.f32.mrb[0].mxu0
        %v2304 = vadd.f32 %v1347, %v2303
        %v2305 = vpop.f32.mrb[0].mxu0
        %v2306 = vadd.f32 %v1351, %v2305
        %v2307 = vpop.f32.mrb[0].mxu0
        %v2308 = vadd.f32 %v1347, %v2307
        %v2309 = vpop.f32.mrb[0].mxu0
        %v2310 = vadd.f32 %v1351, %v2309
        %2311 = vmatprep.mubr.bf16.mxu0 0
        %2312 = vmatmul.mubr.bf16.gmra.mrb[0].mxu0 %v1240
        %v2313 = vpop.f32.mrb[0].mxu0
        %v2314 = vadd.f32 %v1347, %v2313
        %v2315 = vpop.f32.mrb[0].mxu0
        %v2316 = vadd.f32 %v1351, %v2315
        %v2317 = vpop.f32.mrb[0].mxu0
        %v2318 = vadd.f32 %v1347, %v2317
        %v2319 = vpop.f32.mrb[0].mxu0
        %v2320 = vadd.f32 %v1351, %v2319
        %2321 = vmatprep.mubr.bf16.mxu0 0
        %2322 = vmatmul.mubr.bf16.gmra.mrb[0].mxu0 %v1241
        %v2323 = vpop.f32.mrb[0].mxu0
        %v2324 = vadd.f32 %v1347, %v2323
        %v2325 = vpop.f32.mrb[0].mxu0
        %v2326 = vadd.f32 %v1351, %v2325
        %v2327 = vpop.f32.mrb[0].mxu0
        %v2328 = vadd.f32 %v1347, %v2327
        %v2329 = vpop.f32.mrb[0].mxu0
        %v2330 = vadd.f32 %v1351, %v2329
        %2331 = vmatprep.mubr.bf16.mxu0 0
        %2332 = vmatmul.mubr.bf16.gmra.mrb[0].mxu0 %v1242
        %v2333 = vpop.f32.mrb[0].mxu0
        %v2334 = vadd.f32 %v1347, %v2333
        %v2335 = vpop.f32.mrb[0].mxu0
        %v2336 = vadd.f32 %v1351, %v2335
        %v2337 = vpop.f32.mrb[0].mxu0
        %v2338 = vadd.f32 %v1347, %v2337
        %v2339 = vpop.f32.mrb[0].mxu0
        %v2340 = vadd.f32 %v1351, %v2339
        %2341 = vmatprep.mubr.bf16.mxu0 0
        %2342 = vmatmul.mubr.bf16.gmra.mrb[0].mxu0 %v1243
        %v2343 = vpop.f32.mrb[0].mxu0
        %v2344 = vadd.f32 %v1347, %v2343
        %v2345 = vpop.f32.mrb[0].mxu0
        %v2346 = vadd.f32 %v1351, %v2345
        %v2347 = vpop.f32.mrb[0].mxu0
        %v2348 = vadd.f32 %v1347, %v2347
        %v2349 = vpop.f32.mrb[0].mxu0
        %v2350 = vadd.f32 %v1351, %v2349
        %2351 = vmatprep.mubr.bf16.mxu0 0
        %2352 = vmatmul.mubr.bf16.gmra.mrb[0].mxu0 %v1244
        %v2353 = vpop.f32.mrb[0].mxu0
        %v2354 = vadd.f32 %v1347, %v2353
        %v2355 = vpop.f32.mrb[0].mxu0
        %v2356 = vadd.f32 %v1351, %v2355
        %v2357 = vpop.f32.mrb[0].mxu0
        %v2358 = vadd.f32 %v1347, %v2357
        %v2359 = vpop.f32.mrb[0].mxu0
        %v2360 = vadd.f32 %v1351, %v2359
        %2361 = vmatprep.mubr.bf16.mxu0 0
        %2362 = vmatmul.mubr.bf16.gmra.mrb[0].mxu0 %v1245
        %v2363 = vpop.f32.mrb[0].mxu0
        %v2364 = vadd.f32 %v1347, %v2363
        %v2365 = vpop.f32.mrb[0].mxu0
        %v2366 = vadd.f32 %v1351, %v2365
        %v2367 = vpop.f32.mrb[0].mxu0
        %v2368 = vadd.f32 %v1347, %v2367
        %v2369 = vpop.f32.mrb[0].mxu0
        %v2370 = vadd.f32 %v1351, %v2369
        %2371 = vmatprep.mubr.bf16.mxu0 0
        %2372 = vmatmul.mubr.bf16.gmra.mrb[0].mxu0 %v1246
        %v2373 = vpop.f32.mrb[0].mxu0
        %v2374 = vadd.f32 %v1347, %v2373
        %v2375 = vpop.f32.mrb[0].mxu0
        %v2376 = vadd.f32 %v1351, %v2375
        %v2377 = vpop.f32.mrb[0].mxu0
        %v2378 = vadd.f32 %v1347, %v2377
        %v2379 = vpop.f32.mrb[0].mxu0
        %v2380 = vadd.f32 %v1351, %v2379
        %2381 = vmatprep.mubr.bf16.mxu0 0
        %2382 = vmatmul.mubr.bf16.gmra.mrb[0].mxu0 %v1247
        %v2383 = vpop.f32.mrb[0].mxu0
        %v2384 = vadd.f32 %v1347, %v2383
        %v2385 = vpop.f32.mrb[0].mxu0
        %v2386 = vadd.f32 %v1351, %v2385
        %v2387 = vpop.f32.mrb[0].mxu0
        %v2388 = vadd.f32 %v1347, %v2387
        %v2389 = vpop.f32.mrb[0].mxu0
        %v2390 = vadd.f32 %v1351, %v2389
        %2391 = vmatprep.mubr.bf16.mxu0 0
        %2392 = vmatmul.mubr.bf16.gmra.mrb[0].mxu0 %v1248
        %v2393 = vpop.f32.mrb[0].mxu0
        %v2394 = vadd.f32 %v1347, %v2393
        %v2395 = vpop.f32.mrb[0].mxu0
        %v2396 = vadd.f32 %v1351, %v2395
        %v2397 = vpop.f32.mrb[0].mxu0
        %v2398 = vadd.f32 %v1347, %v2397
        %v2399 = vpop.f32.mrb[0].mxu0
        %v2400 = vadd.f32 %v1351, %v2399
        %2401 = vmatprep.mubr.bf16.mxu0 0
        %2402 = vmatmul.mubr.bf16.gmra.mrb[0].mxu0 %v1249
        %v2403 = vpop.f32.mrb[0].mxu0
        %v2404 = vadd.f32 %v1347, %v2403
        %v2405 = vpop.f32.mrb[0].mxu0
        %v2406 = vadd.f32 %v1351, %v2405
        %v2407 = vpop.f32.mrb[0].mxu0
        %v2408 = vadd.f32 %v1347, %v2407
        %v2409 = vpop.f32.mrb[0].mxu0
        %v2410 = vadd.f32 %v1351, %v2409
        %2411 = vmatprep.mubr.bf16.mxu0 0
        %2412 = vmatmul.mubr.bf16.gmra.mrb[0].mxu0 %v1250
        %v2413 = vpop.f32.mrb[0].mxu0
        %v2414 = vadd.f32 %v1347, %v2413
        %v2415 = vpop.f32.mrb[0].mxu0
        %v2416 = vadd.f32 %v1351, %v2415
        %v2417 = vpop.f32.mrb[0].mxu0
        %v2418 = vadd.f32 %v1347, %v2417
        %v2419 = vpop.f32.mrb[0].mxu0
        %v2420 = vadd.f32 %v1351, %v2419
        %2421 = vmatprep.mubr.bf16.mxu0 0
        %2422 = vmatmul.mubr.bf16.gmra.mrb[0].mxu0 %v1251
        %v2423 = vpop.f32.mrb[0].mxu0
        %v2424 = vadd.f32 %v1347, %v2423
        %v2425 = vpop.f32.mrb[0].mxu0
        %v2426 = vadd.f32 %v1351, %v2425
        %v2427 = vpop.f32.mrb[0].mxu0
        %v2428 = vadd.f32 %v1347, %v2427
        %v2429 = vpop.f32.mrb[0].mxu0
        %v2430 = vadd.f32 %v1351, %v2429
        %2431 = vmatprep.mubr.bf16.mxu0 0
        %2432 = vmatmul.mubr.bf16.gmra.mrb[0].mxu0 %v1252
        %v2433 = vpop.f32.mrb[0].mxu0
        %v2434 = vadd.f32 %v1347, %v2433
        %v2435 = vpop.f32.mrb[0].mxu0
        %v2436 = vadd.f32 %v1351, %v2435
        %v2437 = vpop.f32.mrb[0].mxu0
        %v2438 = vadd.f32 %v1347, %v2437
        %v2439 = vpop.f32.mrb[0].mxu0
        %v2440 = vadd.f32 %v1351, %v2439
        %2441 = vmatprep.mubr.bf16.mxu0 0
        %2442 = vmatmul.mubr.bf16.gmra.mrb[0].mxu0 %v1253
        %v2443 = vpop.f32.mrb[0].mxu0
        %v2444 = vadd.f32 %v1347, %v2443
        %v2445 = vpop.f32.mrb[0].mxu0
        %v2446 = vadd.f32 %v1351, %v2445
        %v2447 = vpop.f32.mrb[0].mxu0
        %v2448 = vadd.f32 %v1347, %v2447
        %v2449 = vpop.f32.mrb[0].mxu0
        %v2450 = vadd.f32 %v1351, %v2449
        %2451 = vdwg.mxu0
        %v2452 = vmax.f32 %v1715, 0.0
        %v2453 = vmax.f32 %v1717, 0.0
        %v2454 = vmax.f32 %v1908, 0.0
        %v2455 = vmax.f32 %v1910, 0.0
        %v2456 = vmax.f32 %v2101, 0.0
        %v2457 = vmax.f32 %v2103, 0.0
        %v2458 = vmax.f32 %v2294, 0.0
        %v2459 = vmax.f32 %v2296, 0.0
        %v2460 = vmax.f32 %v1719, 0.0
        %v2461 = vmax.f32 %v1721, 0.0
        %v2462 = vmax.f32 %v1912, 0.0
        %v2463 = vmax.f32 %v1914, 0.0
        %v2464 = vmax.f32 %v2105, 0.0
        %v2465 = vmax.f32 %v2107, 0.0
        %v2466 = vmax.f32 %v2298, 0.0
        %v2467 = vmax.f32 %v2300, 0.0
        %v2468 = vmax.f32 %v1725, 0.0
        %v2469 = vmax.f32 %v1727, 0.0
        %v2470 = vmax.f32 %v1918, 0.0
        %v2471 = vmax.f32 %v1920, 0.0
        %v2472 = vmax.f32 %v2111, 0.0
        %v2473 = vmax.f32 %v2113, 0.0
        %v2474 = vmax.f32 %v2304, 0.0
        %v2475 = vmax.f32 %v2306, 0.0
        %v2476 = vmax.f32 %v1729, 0.0
        %v2477 = vmax.f32 %v1731, 0.0
        %v2478 = vmax.f32 %v1922, 0.0
        %v2479 = vmax.f32 %v1924, 0.0
        %v2480 = vmax.f32 %v2115, 0.0
        %v2481 = vmax.f32 %v2117, 0.0
        %v2482 = vmax.f32 %v2308, 0.0
        %v2483 = vmax.f32 %v2310, 0.0
        %v2484 = vmax.f32 %v1735, 0.0
        %v2485 = vmax.f32 %v1737, 0.0
        %v2486 = vmax.f32 %v1928, 0.0
        %v2487 = vmax.f32 %v1930, 0.0
        %v2488 = vmax.f32 %v2121, 0.0
        %v2489 = vmax.f32 %v2123, 0.0
        %v2490 = vmax.f32 %v2314, 0.0
        %v2491 = vmax.f32 %v2316, 0.0
        %v2492 = vmax.f32 %v1739, 0.0
        %v2493 = vmax.f32 %v1741, 0.0
        %v2494 = vmax.f32 %v1932, 0.0
        %v2495 = vmax.f32 %v1934, 0.0
        %v2496 = vmax.f32 %v2125, 0.0
        %v2497 = vmax.f32 %v2127, 0.0
        %v2498 = vmax.f32 %v2318, 0.0
        %v2499 = vmax.f32 %v2320, 0.0
        %v2500 = vmax.f32 %v1745, 0.0
        %v2501 = vmax.f32 %v1747, 0.0
        %v2502 = vmax.f32 %v1938, 0.0
        %v2503 = vmax.f32 %v1940, 0.0
        %v2504 = vmax.f32 %v2131, 0.0
        %v2505 = vmax.f32 %v2133, 0.0
        %v2506 = vmax.f32 %v2324, 0.0
        %v2507 = vmax.f32 %v2326, 0.0
        %v2508 = vmax.f32 %v1749, 0.0
        %v2509 = vmax.f32 %v1751, 0.0
        %v2510 = vmax.f32 %v1942, 0.0
        %v2511 = vmax.f32 %v1944, 0.0
        %v2512 = vmax.f32 %v2135, 0.0
        %v2513 = vmax.f32 %v2137, 0.0
        %v2514 = vmax.f32 %v2328, 0.0
        %v2515 = vmax.f32 %v2330, 0.0
        %v2516 = vmax.f32 %v1755, 0.0
        %v2517 = vmax.f32 %v1757, 0.0
        %v2518 = vmax.f32 %v1948, 0.0
        %v2519 = vmax.f32 %v1950, 0.0
        %v2520 = vmax.f32 %v2141, 0.0
        %v2521 = vmax.f32 %v2143, 0.0
        %v2522 = vmax.f32 %v2334, 0.0
        %v2523 = vmax.f32 %v2336, 0.0
        %v2524 = vmax.f32 %v1759, 0.0
        %v2525 = vmax.f32 %v1761, 0.0
        %v2526 = vmax.f32 %v1952, 0.0
        %v2527 = vmax.f32 %v1954, 0.0
        %v2528 = vmax.f32 %v2145, 0.0
        %v2529 = vmax.f32 %v2147, 0.0
        %v2530 = vmax.f32 %v2338, 0.0
        %v2531 = vmax.f32 %v2340, 0.0
        %v2532 = vmax.f32 %v1765, 0.0
        %v2533 = vmax.f32 %v1767, 0.0
        %v2534 = vmax.f32 %v1958, 0.0
        %v2535 = vmax.f32 %v1960, 0.0
        %v2536 = vmax.f32 %v2151, 0.0
        %v2537 = vmax.f32 %v2153, 0.0
        %v2538 = vmax.f32 %v2344, 0.0
        %v2539 = vmax.f32 %v2346, 0.0
        %v2540 = vmax.f32 %v1769, 0.0
        %v2541 = vmax.f32 %v1771, 0.0
        %v2542 = vmax.f32 %v1962, 0.0
        %v2543 = vmax.f32 %v1964, 0.0
        %v2544 = vmax.f32 %v2155, 0.0
        %v2545 = vmax.f32 %v2157, 0.0
        %v2546 = vmax.f32 %v2348, 0.0
        %v2547 = vmax.f32 %v2350, 0.0
        %v2548 = vmax.f32 %v1775, 0.0
        %v2549 = vmax.f32 %v1777, 0.0
        %v2550 = vmax.f32 %v1968, 0.0
        %v2551 = vmax.f32 %v1970, 0.0
        %v2552 = vmax.f32 %v2161, 0.0
        %v2553 = vmax.f32 %v2163, 0.0
        %v2554 = vmax.f32 %v2354, 0.0
        %v2555 = vmax.f32 %v2356, 0.0
        %v2556 = vmax.f32 %v1779, 0.0
        %v2557 = vmax.f32 %v1781, 0.0
        %v2558 = vmax.f32 %v1972, 0.0
        %v2559 = vmax.f32 %v1974, 0.0
        %v2560 = vmax.f32 %v2165, 0.0
        %v2561 = vmax.f32 %v2167, 0.0
        %v2562 = vmax.f32 %v2358, 0.0
        %v2563 = vmax.f32 %v2360, 0.0
        %v2564 = vmax.f32 %v1785, 0.0
        %v2565 = vmax.f32 %v1787, 0.0
        %v2566 = vmax.f32 %v1978, 0.0
        %v2567 = vmax.f32 %v1980, 0.0
        %v2568 = vmax.f32 %v2171, 0.0
        %v2569 = vmax.f32 %v2173, 0.0
        %v2570 = vmax.f32 %v2364, 0.0
        %v2571 = vmax.f32 %v2366, 0.0
        %v2572 = vmax.f32 %v1789, 0.0
        %v2573 = vmax.f32 %v1791, 0.0
        %v2574 = vmax.f32 %v1982, 0.0
        %v2575 = vmax.f32 %v1984, 0.0
        %v2576 = vmax.f32 %v2175, 0.0
        %v2577 = vmax.f32 %v2177, 0.0
        %v2578 = vmax.f32 %v2368, 0.0
        %v2579 = vmax.f32 %v2370, 0.0
        %v2580 = vmax.f32 %v1795, 0.0
        %v2581 = vmax.f32 %v1797, 0.0
        %v2582 = vmax.f32 %v1988, 0.0
        %v2583 = vmax.f32 %v1990, 0.0
        %v2584 = vmax.f32 %v2181, 0.0
        %v2585 = vmax.f32 %v2183, 0.0
        %v2586 = vmax.f32 %v2374, 0.0
        %v2587 = vmax.f32 %v2376, 0.0
        %v2588 = vmax.f32 %v1799, 0.0
        %v2589 = vmax.f32 %v1801, 0.0
        %v2590 = vmax.f32 %v1992, 0.0
        %v2591 = vmax.f32 %v1994, 0.0
        %v2592 = vmax.f32 %v2185, 0.0
        %v2593 = vmax.f32 %v2187, 0.0
        %v2594 = vmax.f32 %v2378, 0.0
        %v2595 = vmax.f32 %v2380, 0.0
        %v2596 = vmax.f32 %v1805, 0.0
        %v2597 = vmax.f32 %v1807, 0.0
        %v2598 = vmax.f32 %v1998, 0.0
        %v2599 = vmax.f32 %v2000, 0.0
        %v2600 = vmax.f32 %v2191, 0.0
        %v2601 = vmax.f32 %v2193, 0.0
        %v2602 = vmax.f32 %v2384, 0.0
        %v2603 = vmax.f32 %v2386, 0.0
        %v2604 = vmax.f32 %v1809, 0.0
        %v2605 = vmax.f32 %v1811, 0.0
        %v2606 = vmax.f32 %v2002, 0.0
        %v2607 = vmax.f32 %v2004, 0.0
        %v2608 = vmax.f32 %v2195, 0.0
        %v2609 = vmax.f32 %v2197, 0.0
        %v2610 = vmax.f32 %v2388, 0.0
        %v2611 = vmax.f32 %v2390, 0.0
        %v2612 = vmax.f32 %v1815, 0.0
        %v2613 = vmax.f32 %v1817, 0.0
        %v2614 = vmax.f32 %v2008, 0.0
        %v2615 = vmax.f32 %v2010, 0.0
        %v2616 = vmax.f32 %v2201, 0.0
        %v2617 = vmax.f32 %v2203, 0.0
        %v2618 = vmax.f32 %v2394, 0.0
        %v2619 = vmax.f32 %v2396, 0.0
        %v2620 = vmax.f32 %v1819, 0.0
        %v2621 = vmax.f32 %v1821, 0.0
        %v2622 = vmax.f32 %v2012, 0.0
        %v2623 = vmax.f32 %v2014, 0.0
        %v2624 = vmax.f32 %v2205, 0.0
        %v2625 = vmax.f32 %v2207, 0.0
        %v2626 = vmax.f32 %v2398, 0.0
        %v2627 = vmax.f32 %v2400, 0.0
        %v2628 = vmax.f32 %v1825, 0.0
        %v2629 = vmax.f32 %v1827, 0.0
        %v2630 = vmax.f32 %v2018, 0.0
        %v2631 = vmax.f32 %v2020, 0.0
        %v2632 = vmax.f32 %v2211, 0.0
        %v2633 = vmax.f32 %v2213, 0.0
        %v2634 = vmax.f32 %v2404, 0.0
        %v2635 = vmax.f32 %v2406, 0.0
        %v2636 = vmax.f32 %v1829, 0.0
        %v2637 = vmax.f32 %v1831, 0.0
        %v2638 = vmax.f32 %v2022, 0.0
        %v2639 = vmax.f32 %v2024, 0.0
        %v2640 = vmax.f32 %v2215, 0.0
        %v2641 = vmax.f32 %v2217, 0.0
        %v2642 = vmax.f32 %v2408, 0.0
        %v2643 = vmax.f32 %v2410, 0.0
        %v2644 = vmax.f32 %v1835, 0.0
        %v2645 = vmax.f32 %v1837, 0.0
        %v2646 = vmax.f32 %v2028, 0.0
        %v2647 = vmax.f32 %v2030, 0.0
        %v2648 = vmax.f32 %v2221, 0.0
        %v2649 = vmax.f32 %v2223, 0.0
        %v2650 = vmax.f32 %v2414, 0.0
        %v2651 = vmax.f32 %v2416, 0.0
        %v2652 = vmax.f32 %v1839, 0.0
        %v2653 = vmax.f32 %v1841, 0.0
        %v2654 = vmax.f32 %v2032, 0.0
        %v2655 = vmax.f32 %v2034, 0.0
        %v2656 = vmax.f32 %v2225, 0.0
        %v2657 = vmax.f32 %v2227, 0.0
        %v2658 = vmax.f32 %v2418, 0.0
        %v2659 = vmax.f32 %v2420, 0.0
        %v2660 = vmax.f32 %v1845, 0.0
        %v2661 = vmax.f32 %v1847, 0.0
        %v2662 = vmax.f32 %v2038, 0.0
        %v2663 = vmax.f32 %v2040, 0.0
        %v2664 = vmax.f32 %v2231, 0.0
        %v2665 = vmax.f32 %v2233, 0.0
        %v2666 = vmax.f32 %v2424, 0.0
        %v2667 = vmax.f32 %v2426, 0.0
        %v2668 = vmax.f32 %v1849, 0.0
        %v2669 = vmax.f32 %v1851, 0.0
        %v2670 = vmax.f32 %v2042, 0.0
        %v2671 = vmax.f32 %v2044, 0.0
        %v2672 = vmax.f32 %v2235, 0.0
        %v2673 = vmax.f32 %v2237, 0.0
        %v2674 = vmax.f32 %v2428, 0.0
        %v2675 = vmax.f32 %v2430, 0.0
        %v2676 = vmax.f32 %v1855, 0.0
        %v2677 = vmax.f32 %v1857, 0.0
        %v2678 = vmax.f32 %v2048, 0.0
        %v2679 = vmax.f32 %v2050, 0.0
        %v2680 = vmax.f32 %v2241, 0.0
        %v2681 = vmax.f32 %v2243, 0.0
        %v2682 = vmax.f32 %v2434, 0.0
        %v2683 = vmax.f32 %v2436, 0.0
        %v2684 = vmax.f32 %v1859, 0.0
        %v2685 = vmax.f32 %v1861, 0.0
        %v2686 = vmax.f32 %v2052, 0.0
        %v2687 = vmax.f32 %v2054, 0.0
        %v2688 = vmax.f32 %v2245, 0.0
        %v2689 = vmax.f32 %v2247, 0.0
        %v2690 = vmax.f32 %v2438, 0.0
        %v2691 = vmax.f32 %v2440, 0.0
        %v2692 = vmax.f32 %v1865, 0.0
        %v2693 = vmax.f32 %v1867, 0.0
        %v2694 = vmax.f32 %v2058, 0.0
        %v2695 = vmax.f32 %v2060, 0.0
        %v2696 = vmax.f32 %v2251, 0.0
        %v2697 = vmax.f32 %v2253, 0.0
        %v2698 = vmax.f32 %v2444, 0.0
        %v2699 = vmax.f32 %v2446, 0.0
        %v2700 = vmax.f32 %v1869, 0.0
        %v2701 = vmax.f32 %v1871, 0.0
        %v2702 = vmax.f32 %v2062, 0.0
        %v2703 = vmax.f32 %v2064, 0.0
        %v2704 = vmax.f32 %v2255, 0.0
        %v2705 = vmax.f32 %v2257, 0.0
        %v2706 = vmax.f32 %v2448, 0.0
        %v2707 = vmax.f32 %v2450, 0.0
        %v2708 = vlaneseq
        %v2709 = vshrl.u32 %v2708, 7
        %v2710 = vadd.s32 %v2709, 8
        %v2711 = vadd.s32 %v2709, 16
        %v2712 = vadd.s32 %v2709, 24
        %v2713 = vadd.s32 %v2709, 32
        %v2714 = vadd.s32 %v2709, 40
        %v2715 = vadd.s32 %v2709, 48
        %v2716 = vadd.s32 %v2709, 56
        %v2717 = vadd.s32 %v2709, 64
        %v2718 = vadd.s32 %v2709, 72
        %v2719 = vadd.s32 %v2709, 80
        %v2720 = vadd.s32 %v2709, 88
        %v2721 = vadd.s32 %v2709, 96
        %v2722 = vadd.s32 %v2709, 104
        %v2723 = vadd.s32 %v2709, 112
        %v2724 = vadd.s32 %v2709, 120
        %s2725 = smul.u32 %s30, 128
        %v2726 = vstv %s2725
        %v2727 = vadd.s32 %v2726, %v2709
        %v2728 = vadd.s32 %v2726, %v2710
        %v2729 = vadd.s32 %v2726, %v2711
        %v2730 = vadd.s32 %v2726, %v2712
        %v2731 = vadd.s32 %v2726, %v2713
        %v2732 = vadd.s32 %v2726, %v2714
        %v2733 = vadd.s32 %v2726, %v2715
        %v2734 = vadd.s32 %v2726, %v2716
        %v2735 = vadd.s32 %v2726, %v2717
        %v2736 = vadd.s32 %v2726, %v2718
        %v2737 = vadd.s32 %v2726, %v2719
        %v2738 = vadd.s32 %v2726, %v2720
        %v2739 = vadd.s32 %v2726, %v2721
        %v2740 = vadd.s32 %v2726, %v2722
        %v2741 = vadd.s32 %v2726, %v2723
        %v2742 = vadd.s32 %v2726, %v2724
        %vm2743 = vcmp.lt.s32.totalorder %v2727, 200
        %vm2744 = vcmp.lt.s32.totalorder %v2728, 200
        %vm2745 = vcmp.lt.s32.totalorder %v2729, 200
        %vm2746 = vcmp.lt.s32.totalorder %v2730, 200
        %vm2747 = vcmp.lt.s32.totalorder %v2731, 200
        %vm2748 = vcmp.lt.s32.totalorder %v2732, 200
        %vm2749 = vcmp.lt.s32.totalorder %v2733, 200
        %vm2750 = vcmp.lt.s32.totalorder %v2734, 200
        %vm2751 = vcmp.lt.s32.totalorder %v2735, 200
        %vm2752 = vcmp.lt.s32.totalorder %v2736, 200
        %vm2753 = vcmp.lt.s32.totalorder %v2737, 200
        %vm2754 = vcmp.lt.s32.totalorder %v2738, 200
        %vm2755 = vcmp.lt.s32.totalorder %v2739, 200
        %vm2756 = vcmp.lt.s32.totalorder %v2740, 200
        %vm2757 = vcmp.lt.s32.totalorder %v2741, 200
        %vm2758 = vcmp.lt.s32.totalorder %v2742, 200
        %v2759 = vsel %vm2743, 1, 0
        %v2760 = vsel %vm2744, 1, 0
        %v2761 = vsel %vm2745, 1, 0
        %v2762 = vsel %vm2746, 1, 0
        %v2763 = vsel %vm2747, 1, 0
        %v2764 = vsel %vm2748, 1, 0
        %v2765 = vsel %vm2749, 1, 0
        %v2766 = vsel %vm2750, 1, 0
        %v2767 = vsel %vm2751, 1, 0
        %v2768 = vsel %vm2752, 1, 0
        %v2769 = vsel %vm2753, 1, 0
        %v2770 = vsel %vm2754, 1, 0
        %v2771 = vsel %vm2755, 1, 0
        %v2772 = vsel %vm2756, 1, 0
        %v2773 = vsel %vm2757, 1, 0
        %v2774 = vsel %vm2758, 1, 0
        %vm2775 = vcmp.eq.s32.totalorder %v2759, 1
        %vm2776 = vcmp.eq.s32.totalorder %v2760, 1
        %vm2777 = vcmp.eq.s32.totalorder %v2761, 1
        %vm2778 = vcmp.eq.s32.totalorder %v2762, 1
        %vm2779 = vcmp.eq.s32.totalorder %v2763, 1
        %vm2780 = vcmp.eq.s32.totalorder %v2764, 1
        %vm2781 = vcmp.eq.s32.totalorder %v2765, 1
        %vm2782 = vcmp.eq.s32.totalorder %v2766, 1
        %vm2783 = vcmp.eq.s32.totalorder %v2767, 1
        %vm2784 = vcmp.eq.s32.totalorder %v2768, 1
        %vm2785 = vcmp.eq.s32.totalorder %v2769, 1
        %vm2786 = vcmp.eq.s32.totalorder %v2770, 1
        %vm2787 = vcmp.eq.s32.totalorder %v2771, 1
        %vm2788 = vcmp.eq.s32.totalorder %v2772, 1
        %vm2789 = vcmp.eq.s32.totalorder %v2773, 1
        %vm2790 = vcmp.eq.s32.totalorder %v2774, 1
        %v2791 = vsel %vm2775, %v2452, -inf
        %v2792 = vsel %vm2775, %v2453, -inf
        %v2793 = vsel %vm2775, %v2454, -inf
        %v2794 = vsel %vm2775, %v2455, -inf
        %v2795 = vsel %vm2775, %v2456, -inf
        %v2796 = vsel %vm2775, %v2457, -inf
        %v2797 = vsel %vm2775, %v2458, -inf
        %v2798 = vsel %vm2775, %v2459, -inf
        %v2799 = vsel %vm2776, %v2460, -inf
        %v2800 = vsel %vm2776, %v2461, -inf
        %v2801 = vsel %vm2776, %v2462, -inf
        %v2802 = vsel %vm2776, %v2463, -inf
        %v2803 = vsel %vm2776, %v2464, -inf
        %v2804 = vsel %vm2776, %v2465, -inf
        %v2805 = vsel %vm2776, %v2466, -inf
        %v2806 = vsel %vm2776, %v2467, -inf
        %v2807 = vsel %vm2777, %v2468, -inf
        %v2808 = vsel %vm2777, %v2469, -inf
        %v2809 = vsel %vm2777, %v2470, -inf
        %v2810 = vsel %vm2777, %v2471, -inf
        %v2811 = vsel %vm2777, %v2472, -inf
        %v2812 = vsel %vm2777, %v2473, -inf
        %v2813 = vsel %vm2777, %v2474, -inf
        %v2814 = vsel %vm2777, %v2475, -inf
        %v2815 = vsel %vm2778, %v2476, -inf
        %v2816 = vsel %vm2778, %v2477, -inf
        %v2817 = vsel %vm2778, %v2478, -inf
        %v2818 = vsel %vm2778, %v2479, -inf
        %v2819 = vsel %vm2778, %v2480, -inf
        %v2820 = vsel %vm2778, %v2481, -inf
        %v2821 = vsel %vm2778, %v2482, -inf
        %v2822 = vsel %vm2778, %v2483, -inf
        %v2823 = vsel %vm2779, %v2484, -inf
        %v2824 = vsel %vm2779, %v2485, -inf
        %v2825 = vsel %vm2779, %v2486, -inf
        %v2826 = vsel %vm2779, %v2487, -inf
        %v2827 = vsel %vm2779, %v2488, -inf
        %v2828 = vsel %vm2779, %v2489, -inf
        %v2829 = vsel %vm2779, %v2490, -inf
        %v2830 = vsel %vm2779, %v2491, -inf
        %v2831 = vsel %vm2780, %v2492, -inf
        %v2832 = vsel %vm2780, %v2493, -inf
        %v2833 = vsel %vm2780, %v2494, -inf
        %v2834 = vsel %vm2780, %v2495, -inf
        %v2835 = vsel %vm2780, %v2496, -inf
        %v2836 = vsel %vm2780, %v2497, -inf
        %v2837 = vsel %vm2780, %v2498, -inf
        %v2838 = vsel %vm2780, %v2499, -inf
        %v2839 = vsel %vm2781, %v2500, -inf
        %v2840 = vsel %vm2781, %v2501, -inf
        %v2841 = vsel %vm2781, %v2502, -inf
        %v2842 = vsel %vm2781, %v2503, -inf
        %v2843 = vsel %vm2781, %v2504, -inf
        %v2844 = vsel %vm2781, %v2505, -inf
        %v2845 = vsel %vm2781, %v2506, -inf
        %v2846 = vsel %vm2781, %v2507, -inf
        %v2847 = vsel %vm2782, %v2508, -inf
        %v2848 = vsel %vm2782, %v2509, -inf
        %v2849 = vsel %vm2782, %v2510, -inf
        %v2850 = vsel %vm2782, %v2511, -inf
        %v2851 = vsel %vm2782, %v2512, -inf
        %v2852 = vsel %vm2782, %v2513, -inf
        %v2853 = vsel %vm2782, %v2514, -inf
        %v2854 = vsel %vm2782, %v2515, -inf
        %v2855 = vsel %vm2783, %v2516, -inf
        %v2856 = vsel %vm2783, %v2517, -inf
        %v2857 = vsel %vm2783, %v2518, -inf
        %v2858 = vsel %vm2783, %v2519, -inf
        %v2859 = vsel %vm2783, %v2520, -inf
        %v2860 = vsel %vm2783, %v2521, -inf
        %v2861 = vsel %vm2783, %v2522, -inf
        %v2862 = vsel %vm2783, %v2523, -inf
        %v2863 = vsel %vm2784, %v2524, -inf
        %v2864 = vsel %vm2784, %v2525, -inf
        %v2865 = vsel %vm2784, %v2526, -inf
        %v2866 = vsel %vm2784, %v2527, -inf
        %v2867 = vsel %vm2784, %v2528, -inf
        %v2868 = vsel %vm2784, %v2529, -inf
        %v2869 = vsel %vm2784, %v2530, -inf
        %v2870 = vsel %vm2784, %v2531, -inf
        %v2871 = vsel %vm2785, %v2532, -inf
        %v2872 = vsel %vm2785, %v2533, -inf
        %v2873 = vsel %vm2785, %v2534, -inf
        %v2874 = vsel %vm2785, %v2535, -inf
        %v2875 = vsel %vm2785, %v2536, -inf
        %v2876 = vsel %vm2785, %v2537, -inf
        %v2877 = vsel %vm2785, %v2538, -inf
        %v2878 = vsel %vm2785, %v2539, -inf
        %v2879 = vsel %vm2786, %v2540, -inf
        %v2880 = vsel %vm2786, %v2541, -inf
        %v2881 = vsel %vm2786, %v2542, -inf
        %v2882 = vsel %vm2786, %v2543, -inf
        %v2883 = vsel %vm2786, %v2544, -inf
        %v2884 = vsel %vm2786, %v2545, -inf
        %v2885 = vsel %vm2786, %v2546, -inf
        %v2886 = vsel %vm2786, %v2547, -inf
        %v2887 = vsel %vm2787, %v2548, -inf
        %v2888 = vsel %vm2787, %v2549, -inf
        %v2889 = vsel %vm2787, %v2550, -inf
        %v2890 = vsel %vm2787, %v2551, -inf
        %v2891 = vsel %vm2787, %v2552, -inf
        %v2892 = vsel %vm2787, %v2553, -inf
        %v2893 = vsel %vm2787, %v2554, -inf
        %v2894 = vsel %vm2787, %v2555, -inf
        %v2895 = vsel %vm2788, %v2556, -inf
        %v2896 = vsel %vm2788, %v2557, -inf
        %v2897 = vsel %vm2788, %v2558, -inf
        %v2898 = vsel %vm2788, %v2559, -inf
        %v2899 = vsel %vm2788, %v2560, -inf
        %v2900 = vsel %vm2788, %v2561, -inf
        %v2901 = vsel %vm2788, %v2562, -inf
        %v2902 = vsel %vm2788, %v2563, -inf
        %v2903 = vsel %vm2789, %v2564, -inf
        %v2904 = vsel %vm2789, %v2565, -inf
        %v2905 = vsel %vm2789, %v2566, -inf
        %v2906 = vsel %vm2789, %v2567, -inf
        %v2907 = vsel %vm2789, %v2568, -inf
        %v2908 = vsel %vm2789, %v2569, -inf
        %v2909 = vsel %vm2789, %v2570, -inf
        %v2910 = vsel %vm2789, %v2571, -inf
        %v2911 = vsel %vm2790, %v2572, -inf
        %v2912 = vsel %vm2790, %v2573, -inf
        %v2913 = vsel %vm2790, %v2574, -inf
        %v2914 = vsel %vm2790, %v2575, -inf
        %v2915 = vsel %vm2790, %v2576, -inf
        %v2916 = vsel %vm2790, %v2577, -inf
        %v2917 = vsel %vm2790, %v2578, -inf
        %v2918 = vsel %vm2790, %v2579, -inf
        %v2919 = vsel %vm2775, %v2580, -inf
        %v2920 = vsel %vm2775, %v2581, -inf
        %v2921 = vsel %vm2775, %v2582, -inf
        %v2922 = vsel %vm2775, %v2583, -inf
        %v2923 = vsel %vm2775, %v2584, -inf
        %v2924 = vsel %vm2775, %v2585, -inf
        %v2925 = vsel %vm2775, %v2586, -inf
        %v2926 = vsel %vm2775, %v2587, -inf
        %v2927 = vsel %vm2776, %v2588, -inf
        %v2928 = vsel %vm2776, %v2589, -inf
        %v2929 = vsel %vm2776, %v2590, -inf
        %v2930 = vsel %vm2776, %v2591, -inf
        %v2931 = vsel %vm2776, %v2592, -inf
        %v2932 = vsel %vm2776, %v2593, -inf
        %v2933 = vsel %vm2776, %v2594, -inf
        %v2934 = vsel %vm2776, %v2595, -inf
        %v2935 = vsel %vm2777, %v2596, -inf
        %v2936 = vsel %vm2777, %v2597, -inf
        %v2937 = vsel %vm2777, %v2598, -inf
        %v2938 = vsel %vm2777, %v2599, -inf
        %v2939 = vsel %vm2777, %v2600, -inf
        %v2940 = vsel %vm2777, %v2601, -inf
        %v2941 = vsel %vm2777, %v2602, -inf
        %v2942 = vsel %vm2777, %v2603, -inf
        %v2943 = vsel %vm2778, %v2604, -inf
        %v2944 = vsel %vm2778, %v2605, -inf
        %v2945 = vsel %vm2778, %v2606, -inf
        %v2946 = vsel %vm2778, %v2607, -inf
        %v2947 = vsel %vm2778, %v2608, -inf
        %v2948 = vsel %vm2778, %v2609, -inf
        %v2949 = vsel %vm2778, %v2610, -inf
        %v2950 = vsel %vm2778, %v2611, -inf
        %v2951 = vsel %vm2779, %v2612, -inf
        %v2952 = vsel %vm2779, %v2613, -inf
        %v2953 = vsel %vm2779, %v2614, -inf
        %v2954 = vsel %vm2779, %v2615, -inf
        %v2955 = vsel %vm2779, %v2616, -inf
        %v2956 = vsel %vm2779, %v2617, -inf
        %v2957 = vsel %vm2779, %v2618, -inf
        %v2958 = vsel %vm2779, %v2619, -inf
        %v2959 = vsel %vm2780, %v2620, -inf
        %v2960 = vsel %vm2780, %v2621, -inf
        %v2961 = vsel %vm2780, %v2622, -inf
        %v2962 = vsel %vm2780, %v2623, -inf
        %v2963 = vsel %vm2780, %v2624, -inf
        %v2964 = vsel %vm2780, %v2625, -inf
        %v2965 = vsel %vm2780, %v2626, -inf
        %v2966 = vsel %vm2780, %v2627, -inf
        %v2967 = vsel %vm2781, %v2628, -inf
        %v2968 = vsel %vm2781, %v2629, -inf
        %v2969 = vsel %vm2781, %v2630, -inf
        %v2970 = vsel %vm2781, %v2631, -inf
        %v2971 = vsel %vm2781, %v2632, -inf
        %v2972 = vsel %vm2781, %v2633, -inf
        %v2973 = vsel %vm2781, %v2634, -inf
        %v2974 = vsel %vm2781, %v2635, -inf
        %v2975 = vsel %vm2782, %v2636, -inf
        %v2976 = vsel %vm2782, %v2637, -inf
        %v2977 = vsel %vm2782, %v2638, -inf
        %v2978 = vsel %vm2782, %v2639, -inf
        %v2979 = vsel %vm2782, %v2640, -inf
        %v2980 = vsel %vm2782, %v2641, -inf
        %v2981 = vsel %vm2782, %v2642, -inf
        %v2982 = vsel %vm2782, %v2643, -inf
        %v2983 = vsel %vm2783, %v2644, -inf
        %v2984 = vsel %vm2783, %v2645, -inf
        %v2985 = vsel %vm2783, %v2646, -inf
        %v2986 = vsel %vm2783, %v2647, -inf
        %v2987 = vsel %vm2783, %v2648, -inf
        %v2988 = vsel %vm2783, %v2649, -inf
        %v2989 = vsel %vm2783, %v2650, -inf
        %v2990 = vsel %vm2783, %v2651, -inf
        %v2991 = vsel %vm2784, %v2652, -inf
        %v2992 = vsel %vm2784, %v2653, -inf
        %v2993 = vsel %vm2784, %v2654, -inf
        %v2994 = vsel %vm2784, %v2655, -inf
        %v2995 = vsel %vm2784, %v2656, -inf
        %v2996 = vsel %vm2784, %v2657, -inf
        %v2997 = vsel %vm2784, %v2658, -inf
        %v2998 = vsel %vm2784, %v2659, -inf
        %v2999 = vsel %vm2785, %v2660, -inf
        %v3000 = vsel %vm2785, %v2661, -inf
        %v3001 = vsel %vm2785, %v2662, -inf
        %v3002 = vsel %vm2785, %v2663, -inf
        %v3003 = vsel %vm2785, %v2664, -inf
        %v3004 = vsel %vm2785, %v2665, -inf
        %v3005 = vsel %vm2785, %v2666, -inf
        %v3006 = vsel %vm2785, %v2667, -inf
        %v3007 = vsel %vm2786, %v2668, -inf
        %v3008 = vsel %vm2786, %v2669, -inf
        %v3009 = vsel %vm2786, %v2670, -inf
        %v3010 = vsel %vm2786, %v2671, -inf
        %v3011 = vsel %vm2786, %v2672, -inf
        %v3012 = vsel %vm2786, %v2673, -inf
        %v3013 = vsel %vm2786, %v2674, -inf
        %v3014 = vsel %vm2786, %v2675, -inf
        %v3015 = vsel %vm2787, %v2676, -inf
        %v3016 = vsel %vm2787, %v2677, -inf
        %v3017 = vsel %vm2787, %v2678, -inf
        %v3018 = vsel %vm2787, %v2679, -inf
        %v3019 = vsel %vm2787, %v2680, -inf
        %v3020 = vsel %vm2787, %v2681, -inf
        %v3021 = vsel %vm2787, %v2682, -inf
        %v3022 = vsel %vm2787, %v2683, -inf
        %v3023 = vsel %vm2788, %v2684, -inf
        %v3024 = vsel %vm2788, %v2685, -inf
        %v3025 = vsel %vm2788, %v2686, -inf
        %v3026 = vsel %vm2788, %v2687, -inf
        %v3027 = vsel %vm2788, %v2688, -inf
        %v3028 = vsel %vm2788, %v2689, -inf
        %v3029 = vsel %vm2788, %v2690, -inf
        %v3030 = vsel %vm2788, %v2691, -inf
        %v3031 = vsel %vm2789, %v2692, -inf
        %v3032 = vsel %vm2789, %v2693, -inf
        %v3033 = vsel %vm2789, %v2694, -inf
        %v3034 = vsel %vm2789, %v2695, -inf
        %v3035 = vsel %vm2789, %v2696, -inf
        %v3036 = vsel %vm2789, %v2697, -inf
        %v3037 = vsel %vm2789, %v2698, -inf
        %v3038 = vsel %vm2789, %v2699, -inf
        %v3039 = vsel %vm2790, %v2700, -inf
        %v3040 = vsel %vm2790, %v2701, -inf
        %v3041 = vsel %vm2790, %v2702, -inf
        %v3042 = vsel %vm2790, %v2703, -inf
        %v3043 = vsel %vm2790, %v2704, -inf
        %v3044 = vsel %vm2790, %v2705, -inf
        %v3045 = vsel %vm2790, %v2706, -inf
        %v3046 = vsel %vm2790, %v2707, -inf
        %v3047 = vmax.f32 %v2791, %v2799
        %v3048 = vmax.f32 %v3047, %v2807
        %v3049 = vmax.f32 %v3048, %v2815
        %v3050 = vmax.f32 %v3049, %v2823
        %v3051 = vmax.f32 %v3050, %v2831
        %v3052 = vmax.f32 %v3051, %v2839
        %v3053 = vmax.f32 %v3052, %v2847
        %v3054 = vmax.f32 %v3053, %v2855
        %v3055 = vmax.f32 %v3054, %v2863
        %v3056 = vmax.f32 %v3055, %v2871
        %v3057 = vmax.f32 %v3056, %v2879
        %v3058 = vmax.f32 %v3057, %v2887
        %v3059 = vmax.f32 %v3058, %v2895
        %v3060 = vmax.f32 %v3059, %v2903
        %v3061 = vmax.f32 %v3060, %v2911
        %v3062 = vrot.slane %v3061, 4
        %v3063 = vmax.f32 %v3061, %v3062
        %v3064 = vrot.slane %v3063, 2
        %v3065 = vmax.f32 %v3063, %v3064
        %v3066 = vrot.slane %v3065, 1
        %v3067 = vmax.f32 %v3065, %v3066
        %v3068 = vmax.f32 %v2792, %v2800
        %v3069 = vmax.f32 %v3068, %v2808
        %v3070 = vmax.f32 %v3069, %v2816
        %v3071 = vmax.f32 %v3070, %v2824
        %v3072 = vmax.f32 %v3071, %v2832
        %v3073 = vmax.f32 %v3072, %v2840
        %v3074 = vmax.f32 %v3073, %v2848
        %v3075 = vmax.f32 %v3074, %v2856
        %v3076 = vmax.f32 %v3075, %v2864
        %v3077 = vmax.f32 %v3076, %v2872
        %v3078 = vmax.f32 %v3077, %v2880
        %v3079 = vmax.f32 %v3078, %v2888
        %v3080 = vmax.f32 %v3079, %v2896
        %v3081 = vmax.f32 %v3080, %v2904
        %v3082 = vmax.f32 %v3081, %v2912
        %v3083 = vrot.slane %v3082, 4
        %v3084 = vmax.f32 %v3082, %v3083
        %v3085 = vrot.slane %v3084, 2
        %v3086 = vmax.f32 %v3084, %v3085
        %v3087 = vrot.slane %v3086, 1
        %v3088 = vmax.f32 %v3086, %v3087
        %v3089 = vmax.f32 %v2793, %v2801
        %v3090 = vmax.f32 %v3089, %v2809
        %v3091 = vmax.f32 %v3090, %v2817
        %v3092 = vmax.f32 %v3091, %v2825
        %v3093 = vmax.f32 %v3092, %v2833
        %v3094 = vmax.f32 %v3093, %v2841
        %v3095 = vmax.f32 %v3094, %v2849
        %v3096 = vmax.f32 %v3095, %v2857
        %v3097 = vmax.f32 %v3096, %v2865
        %v3098 = vmax.f32 %v3097, %v2873
        %v3099 = vmax.f32 %v3098, %v2881
        %v3100 = vmax.f32 %v3099, %v2889
        %v3101 = vmax.f32 %v3100, %v2897
        %v3102 = vmax.f32 %v3101, %v2905
        %v3103 = vmax.f32 %v3102, %v2913
        %v3104 = vrot.slane %v3103, 4
        %v3105 = vmax.f32 %v3103, %v3104
        %v3106 = vrot.slane %v3105, 2
        %v3107 = vmax.f32 %v3105, %v3106
        %v3108 = vrot.slane %v3107, 1
        %v3109 = vmax.f32 %v3107, %v3108
        %v3110 = vmax.f32 %v2794, %v2802
        %v3111 = vmax.f32 %v3110, %v2810
        %v3112 = vmax.f32 %v3111, %v2818
        %v3113 = vmax.f32 %v3112, %v2826
        %v3114 = vmax.f32 %v3113, %v2834
        %v3115 = vmax.f32 %v3114, %v2842
        %v3116 = vmax.f32 %v3115, %v2850
        %v3117 = vmax.f32 %v3116, %v2858
        %v3118 = vmax.f32 %v3117, %v2866
        %v3119 = vmax.f32 %v3118, %v2874
        %v3120 = vmax.f32 %v3119, %v2882
        %v3121 = vmax.f32 %v3120, %v2890
        %v3122 = vmax.f32 %v3121, %v2898
        %v3123 = vmax.f32 %v3122, %v2906
        %v3124 = vmax.f32 %v3123, %v2914
        %v3125 = vrot.slane %v3124, 4
        %v3126 = vmax.f32 %v3124, %v3125
        %v3127 = vrot.slane %v3126, 2
        %v3128 = vmax.f32 %v3126, %v3127
        %v3129 = vrot.slane %v3128, 1
        %v3130 = vmax.f32 %v3128, %v3129
        %v3131 = vmax.f32 %v2795, %v2803
        %v3132 = vmax.f32 %v3131, %v2811
        %v3133 = vmax.f32 %v3132, %v2819
        %v3134 = vmax.f32 %v3133, %v2827
        %v3135 = vmax.f32 %v3134, %v2835
        %v3136 = vmax.f32 %v3135, %v2843
        %v3137 = vmax.f32 %v3136, %v2851
        %v3138 = vmax.f32 %v3137, %v2859
        %v3139 = vmax.f32 %v3138, %v2867
        %v3140 = vmax.f32 %v3139, %v2875
        %v3141 = vmax.f32 %v3140, %v2883
        %v3142 = vmax.f32 %v3141, %v2891
        %v3143 = vmax.f32 %v3142, %v2899
        %v3144 = vmax.f32 %v3143, %v2907
        %v3145 = vmax.f32 %v3144, %v2915
        %v3146 = vrot.slane %v3145, 4
        %v3147 = vmax.f32 %v3145, %v3146
        %v3148 = vrot.slane %v3147, 2
        %v3149 = vmax.f32 %v3147, %v3148
        %v3150 = vrot.slane %v3149, 1
        %v3151 = vmax.f32 %v3149, %v3150
        %v3152 = vmax.f32 %v2796, %v2804
        %v3153 = vmax.f32 %v3152, %v2812
        %v3154 = vmax.f32 %v3153, %v2820
        %v3155 = vmax.f32 %v3154, %v2828
        %v3156 = vmax.f32 %v3155, %v2836
        %v3157 = vmax.f32 %v3156, %v2844
        %v3158 = vmax.f32 %v3157, %v2852
        %v3159 = vmax.f32 %v3158, %v2860
        %v3160 = vmax.f32 %v3159, %v2868
        %v3161 = vmax.f32 %v3160, %v2876
        %v3162 = vmax.f32 %v3161, %v2884
        %v3163 = vmax.f32 %v3162, %v2892
        %v3164 = vmax.f32 %v3163, %v2900
        %v3165 = vmax.f32 %v3164, %v2908
        %v3166 = vmax.f32 %v3165, %v2916
        %v3167 = vrot.slane %v3166, 4
        %v3168 = vmax.f32 %v3166, %v3167
        %v3169 = vrot.slane %v3168, 2
        %v3170 = vmax.f32 %v3168, %v3169
        %v3171 = vrot.slane %v3170, 1
        %v3172 = vmax.f32 %v3170, %v3171
        %v3173 = vmax.f32 %v2797, %v2805
        %v3174 = vmax.f32 %v3173, %v2813
        %v3175 = vmax.f32 %v3174, %v2821
        %v3176 = vmax.f32 %v3175, %v2829
        %v3177 = vmax.f32 %v3176, %v2837
        %v3178 = vmax.f32 %v3177, %v2845
        %v3179 = vmax.f32 %v3178, %v2853
        %v3180 = vmax.f32 %v3179, %v2861
        %v3181 = vmax.f32 %v3180, %v2869
        %v3182 = vmax.f32 %v3181, %v2877
        %v3183 = vmax.f32 %v3182, %v2885
        %v3184 = vmax.f32 %v3183, %v2893
        %v3185 = vmax.f32 %v3184, %v2901
        %v3186 = vmax.f32 %v3185, %v2909
        %v3187 = vmax.f32 %v3186, %v2917
        %v3188 = vrot.slane %v3187, 4
        %v3189 = vmax.f32 %v3187, %v3188
        %v3190 = vrot.slane %v3189, 2
        %v3191 = vmax.f32 %v3189, %v3190
        %v3192 = vrot.slane %v3191, 1
        %v3193 = vmax.f32 %v3191, %v3192
        %v3194 = vmax.f32 %v2798, %v2806
        %v3195 = vmax.f32 %v3194, %v2814
        %v3196 = vmax.f32 %v3195, %v2822
        %v3197 = vmax.f32 %v3196, %v2830
        %v3198 = vmax.f32 %v3197, %v2838
        %v3199 = vmax.f32 %v3198, %v2846
        %v3200 = vmax.f32 %v3199, %v2854
        %v3201 = vmax.f32 %v3200, %v2862
        %v3202 = vmax.f32 %v3201, %v2870
        %v3203 = vmax.f32 %v3202, %v2878
        %v3204 = vmax.f32 %v3203, %v2886
        %v3205 = vmax.f32 %v3204, %v2894
        %v3206 = vmax.f32 %v3205, %v2902
        %v3207 = vmax.f32 %v3206, %v2910
        %v3208 = vmax.f32 %v3207, %v2918
        %v3209 = vrot.slane %v3208, 4
        %v3210 = vmax.f32 %v3208, %v3209
        %v3211 = vrot.slane %v3210, 2
        %v3212 = vmax.f32 %v3210, %v3211
        %v3213 = vrot.slane %v3212, 1
        %v3214 = vmax.f32 %v3212, %v3213
        %v3215 = vmax.f32 %v2919, %v2927
        %v3216 = vmax.f32 %v3215, %v2935
        %v3217 = vmax.f32 %v3216, %v2943
        %v3218 = vmax.f32 %v3217, %v2951
        %v3219 = vmax.f32 %v3218, %v2959
        %v3220 = vmax.f32 %v3219, %v2967
        %v3221 = vmax.f32 %v3220, %v2975
        %v3222 = vmax.f32 %v3221, %v2983
        %v3223 = vmax.f32 %v3222, %v2991
        %v3224 = vmax.f32 %v3223, %v2999
        %v3225 = vmax.f32 %v3224, %v3007
        %v3226 = vmax.f32 %v3225, %v3015
        %v3227 = vmax.f32 %v3226, %v3023
        %v3228 = vmax.f32 %v3227, %v3031
        %v3229 = vmax.f32 %v3228, %v3039
        %v3230 = vrot.slane %v3229, 4
        %v3231 = vmax.f32 %v3229, %v3230
        %v3232 = vrot.slane %v3231, 2
        %v3233 = vmax.f32 %v3231, %v3232
        %v3234 = vrot.slane %v3233, 1
        %v3235 = vmax.f32 %v3233, %v3234
        %v3236 = vmax.f32 %v2920, %v2928
        %v3237 = vmax.f32 %v3236, %v2936
        %v3238 = vmax.f32 %v3237, %v2944
        %v3239 = vmax.f32 %v3238, %v2952
        %v3240 = vmax.f32 %v3239, %v2960
        %v3241 = vmax.f32 %v3240, %v2968
        %v3242 = vmax.f32 %v3241, %v2976
        %v3243 = vmax.f32 %v3242, %v2984
        %v3244 = vmax.f32 %v3243, %v2992
        %v3245 = vmax.f32 %v3244, %v3000
        %v3246 = vmax.f32 %v3245, %v3008
        %v3247 = vmax.f32 %v3246, %v3016
        %v3248 = vmax.f32 %v3247, %v3024
        %v3249 = vmax.f32 %v3248, %v3032
        %v3250 = vmax.f32 %v3249, %v3040
        %v3251 = vrot.slane %v3250, 4
        %v3252 = vmax.f32 %v3250, %v3251
        %v3253 = vrot.slane %v3252, 2
        %v3254 = vmax.f32 %v3252, %v3253
        %v3255 = vrot.slane %v3254, 1
        %v3256 = vmax.f32 %v3254, %v3255
        %v3257 = vmax.f32 %v2921, %v2929
        %v3258 = vmax.f32 %v3257, %v2937
        %v3259 = vmax.f32 %v3258, %v2945
        %v3260 = vmax.f32 %v3259, %v2953
        %v3261 = vmax.f32 %v3260, %v2961
        %v3262 = vmax.f32 %v3261, %v2969
        %v3263 = vmax.f32 %v3262, %v2977
        %v3264 = vmax.f32 %v3263, %v2985
        %v3265 = vmax.f32 %v3264, %v2993
        %v3266 = vmax.f32 %v3265, %v3001
        %v3267 = vmax.f32 %v3266, %v3009
        %v3268 = vmax.f32 %v3267, %v3017
        %v3269 = vmax.f32 %v3268, %v3025
        %v3270 = vmax.f32 %v3269, %v3033
        %v3271 = vmax.f32 %v3270, %v3041
        %v3272 = vrot.slane %v3271, 4
        %v3273 = vmax.f32 %v3271, %v3272
        %v3274 = vrot.slane %v3273, 2
        %v3275 = vmax.f32 %v3273, %v3274
        %v3276 = vrot.slane %v3275, 1
        %v3277 = vmax.f32 %v3275, %v3276
        %v3278 = vmax.f32 %v2922, %v2930
        %v3279 = vmax.f32 %v3278, %v2938
        %v3280 = vmax.f32 %v3279, %v2946
        %v3281 = vmax.f32 %v3280, %v2954
        %v3282 = vmax.f32 %v3281, %v2962
        %v3283 = vmax.f32 %v3282, %v2970
        %v3284 = vmax.f32 %v3283, %v2978
        %v3285 = vmax.f32 %v3284, %v2986
        %v3286 = vmax.f32 %v3285, %v2994
        %v3287 = vmax.f32 %v3286, %v3002
        %v3288 = vmax.f32 %v3287, %v3010
        %v3289 = vmax.f32 %v3288, %v3018
        %v3290 = vmax.f32 %v3289, %v3026
        %v3291 = vmax.f32 %v3290, %v3034
        %v3292 = vmax.f32 %v3291, %v3042
        %v3293 = vrot.slane %v3292, 4
        %v3294 = vmax.f32 %v3292, %v3293
        %v3295 = vrot.slane %v3294, 2
        %v3296 = vmax.f32 %v3294, %v3295
        %v3297 = vrot.slane %v3296, 1
        %v3298 = vmax.f32 %v3296, %v3297
        %v3299 = vmax.f32 %v2923, %v2931
        %v3300 = vmax.f32 %v3299, %v2939
        %v3301 = vmax.f32 %v3300, %v2947
        %v3302 = vmax.f32 %v3301, %v2955
        %v3303 = vmax.f32 %v3302, %v2963
        %v3304 = vmax.f32 %v3303, %v2971
        %v3305 = vmax.f32 %v3304, %v2979
        %v3306 = vmax.f32 %v3305, %v2987
        %v3307 = vmax.f32 %v3306, %v2995
        %v3308 = vmax.f32 %v3307, %v3003
        %v3309 = vmax.f32 %v3308, %v3011
        %v3310 = vmax.f32 %v3309, %v3019
        %v3311 = vmax.f32 %v3310, %v3027
        %v3312 = vmax.f32 %v3311, %v3035
        %v3313 = vmax.f32 %v3312, %v3043
        %v3314 = vrot.slane %v3313, 4
        %v3315 = vmax.f32 %v3313, %v3314
        %v3316 = vrot.slane %v3315, 2
        %v3317 = vmax.f32 %v3315, %v3316
        %v3318 = vrot.slane %v3317, 1
        %v3319 = vmax.f32 %v3317, %v3318
        %v3320 = vmax.f32 %v2924, %v2932
        %v3321 = vmax.f32 %v3320, %v2940
        %v3322 = vmax.f32 %v3321, %v2948
        %v3323 = vmax.f32 %v3322, %v2956
        %v3324 = vmax.f32 %v3323, %v2964
        %v3325 = vmax.f32 %v3324, %v2972
        %v3326 = vmax.f32 %v3325, %v2980
        %v3327 = vmax.f32 %v3326, %v2988
        %v3328 = vmax.f32 %v3327, %v2996
        %v3329 = vmax.f32 %v3328, %v3004
        %v3330 = vmax.f32 %v3329, %v3012
        %v3331 = vmax.f32 %v3330, %v3020
        %v3332 = vmax.f32 %v3331, %v3028
        %v3333 = vmax.f32 %v3332, %v3036
        %v3334 = vmax.f32 %v3333, %v3044
        %v3335 = vrot.slane %v3334, 4
        %v3336 = vmax.f32 %v3334, %v3335
        %v3337 = vrot.slane %v3336, 2
        %v3338 = vmax.f32 %v3336, %v3337
        %v3339 = vrot.slane %v3338, 1
        %v3340 = vmax.f32 %v3338, %v3339
        %v3341 = vmax.f32 %v2925, %v2933
        %v3342 = vmax.f32 %v3341, %v2941
        %v3343 = vmax.f32 %v3342, %v2949
        %v3344 = vmax.f32 %v3343, %v2957
        %v3345 = vmax.f32 %v3344, %v2965
        %v3346 = vmax.f32 %v3345, %v2973
        %v3347 = vmax.f32 %v3346, %v2981
        %v3348 = vmax.f32 %v3347, %v2989
        %v3349 = vmax.f32 %v3348, %v2997
        %v3350 = vmax.f32 %v3349, %v3005
        %v3351 = vmax.f32 %v3350, %v3013
        %v3352 = vmax.f32 %v3351, %v3021
        %v3353 = vmax.f32 %v3352, %v3029
        %v3354 = vmax.f32 %v3353, %v3037
        %v3355 = vmax.f32 %v3354, %v3045
        %v3356 = vrot.slane %v3355, 4
        %v3357 = vmax.f32 %v3355, %v3356
        %v3358 = vrot.slane %v3357, 2
        %v3359 = vmax.f32 %v3357, %v3358
        %v3360 = vrot.slane %v3359, 1
        %v3361 = vmax.f32 %v3359, %v3360
        %v3362 = vmax.f32 %v2926, %v2934
        %v3363 = vmax.f32 %v3362, %v2942
        %v3364 = vmax.f32 %v3363, %v2950
        %v3365 = vmax.f32 %v3364, %v2958
        %v3366 = vmax.f32 %v3365, %v2966
        %v3367 = vmax.f32 %v3366, %v2974
        %v3368 = vmax.f32 %v3367, %v2982
        %v3369 = vmax.f32 %v3368, %v2990
        %v3370 = vmax.f32 %v3369, %v2998
        %v3371 = vmax.f32 %v3370, %v3006
        %v3372 = vmax.f32 %v3371, %v3014
        %v3373 = vmax.f32 %v3372, %v3022
        %v3374 = vmax.f32 %v3373, %v3030
        %v3375 = vmax.f32 %v3374, %v3038
        %v3376 = vmax.f32 %v3375, %v3046
        %v3377 = vrot.slane %v3376, 4
        %v3378 = vmax.f32 %v3376, %v3377
        %v3379 = vrot.slane %v3378, 2
        %v3380 = vmax.f32 %v3378, %v3379
        %v3381 = vrot.slane %v3380, 1
        %v3382 = vmax.f32 %v3380, %v3381
        %v3383 = vld [vmem:[#allocation2] sm:$0xff]
        %v3384 = vld [vmem:[#allocation2 + $0x8] sm:$0xff]
        %v3401 = vcombine.low %v3067, %v3088
        %v3402 = vcombine.low %v3109, %v3130
        %v3404 = vunpack.c.l.s4 1983009808
        %v3405 = vunpack.c.0.s8 %v3404
        %v3406 = vlaneseq
        %v3407 = vshrl.u32 %v3406, 7
        %v3408 = vsub.s32 %v3405, %v3407
        %v3409 = vrot.slane %v3401, %v3408
        %v3411 = vunpack.c.l.s4 1983009808
        %v3412 = vunpack.c.0.s8 %v3411
        %v3413 = vlaneseq
        %v3414 = vshrl.u32 %v3413, 7
        %v3415 = vsub.s32 %v3412, %v3414
        %v3416 = vrot.slane %v3402, %v3415
        %v3417 = vcombine.low %v3409, %v3416
        %v3418 = vcombine.low %v3151, %v3172
        %v3419 = vcombine.low %v3193, %v3214
        %v3421 = vunpack.c.l.s4 1983009808
        %v3422 = vunpack.c.0.s8 %v3421
        %v3423 = vlaneseq
        %v3424 = vshrl.u32 %v3423, 7
        %v3425 = vsub.s32 %v3422, %v3424
        %v3426 = vrot.slane %v3418, %v3425
        %v3428 = vunpack.c.l.s4 1983009808
        %v3429 = vunpack.c.0.s8 %v3428
        %v3430 = vlaneseq
        %v3431 = vshrl.u32 %v3430, 7
        %v3432 = vsub.s32 %v3429, %v3431
        %v3433 = vrot.slane %v3419, %v3432
        %v3434 = vcombine.low %v3426, %v3433
        %v3435 = vcombine.low %v3235, %v3256
        %v3436 = vcombine.low %v3277, %v3298
        %v3438 = vunpack.c.l.s4 1983009808
        %v3439 = vunpack.c.0.s8 %v3438
        %v3440 = vlaneseq
        %v3441 = vshrl.u32 %v3440, 7
        %v3442 = vsub.s32 %v3439, %v3441
        %v3443 = vrot.slane %v3435, %v3442
        %v3445 = vunpack.c.l.s4 1983009808
        %v3446 = vunpack.c.0.s8 %v3445
        %v3447 = vlaneseq
        %v3448 = vshrl.u32 %v3447, 7
        %v3449 = vsub.s32 %v3446, %v3448
        %v3450 = vrot.slane %v3436, %v3449
        %v3451 = vcombine.low %v3443, %v3450
        %v3452 = vcombine.low %v3319, %v3340
        %v3453 = vcombine.low %v3361, %v3382
        %v3455 = vunpack.c.l.s4 1983009808
        %v3456 = vunpack.c.0.s8 %v3455
        %v3457 = vlaneseq
        %v3458 = vshrl.u32 %v3457, 7
        %v3459 = vsub.s32 %v3456, %v3458
        %v3460 = vrot.slane %v3452, %v3459
        %v3462 = vunpack.c.l.s4 1983009808
        %v3463 = vunpack.c.0.s8 %v3462
        %v3464 = vlaneseq
        %v3465 = vshrl.u32 %v3464, 7
        %v3466 = vsub.s32 %v3463, %v3465
        %v3467 = vrot.slane %v3453, %v3466
        %v3468 = vcombine.low %v3460, %v3467
        %vm3469 = vcmask 1044484
        %v3470 = vsel %vm3469, %v3417, %v3417
        %vm3471 = vcmask 1046534
        %v3472 = vsel %vm3471, %v3417, %v3470
        %v3473 = vrot.slane %v3451, 7
        %vm3474 = vcmask 1041409
        %v3475 = vsel %vm3474, %v3473, %v3472
        %vm3476 = vcmask 1043459
        %v3477 = vsel %vm3476, %v3473, %v3475
        %vm3478 = vcmask 1045509
        %v3479 = vsel %vm3478, %v3473, %v3477
        %vm3480 = vcmask 1047559
        %v3481 = vsel %vm3480, %v3473, %v3479
        %v3482 = vsel %vm3469, %v3434, %v3434
        %v3483 = vsel %vm3471, %v3434, %v3482
        %v3484 = vrot.slane %v3468, 7
        %v3485 = vsel %vm3474, %v3484, %v3483
        %v3486 = vsel %vm3476, %v3484, %v3485
        %v3487 = vsel %vm3478, %v3484, %v3486
        %v3488 = vsel %vm3480, %v3484, %v3487
        %v3491 = vmax.f32 %v3383, %v3481
        %v3492 = vmax.f32 %v3384, %v3488
        %3493 = vst [vmem:[#allocation2] sm:$0xff] %v3491
        %3494 = vst [vmem:[#allocation2 + $0x8] sm:$0xff] %v3492
        %p3495 = scmp.eq.s32.totalorder %s30, 1
        // Predicated region
        $region119: #{tnet_forward.1} parent=105 // pred_check
          %p3496 = pneg %p3495
        $region120: #{tnet_forward.1} parent=105 // pred_check_branch
          %3498 = sbr.rel (%p3496) target = $region122
        $region121: #{tnet_forward.1} parent=105 // pred_region
          %v3499 = vld [vmem:[#allocation2] sm:$0xff]
          %v3500 = vld [vmem:[#allocation2 + $0x8] sm:$0xff]
          %v3503 = vcombine.high %v3499, %v3499
          %v3505 = vunpack.c.l.s4 1983009808
          %v3506 = vunpack.c.0.s8 %v3505
          %v3507 = vlaneseq
          %v3508 = vshrl.u32 %v3507, 7
          %v3509 = vsub.s32 %v3506, %v3508
          %v3510 = vrot.slane %v3499, %v3509
          %v3512 = vunpack.c.l.s4 1983009808
          %v3513 = vunpack.c.0.s8 %v3512
          %v3514 = vlaneseq
          %v3515 = vshrl.u32 %v3514, 7
          %v3516 = vsub.s32 %v3513, %v3515
          %v3517 = vrot.slane %v3503, %v3516
          %v3518 = vcombine.high %v3510, %v3510
          %v3519 = vcombine.high %v3517, %v3517
          %v3520 = vcombine.high %v3500, %v3500
          %v3522 = vunpack.c.l.s4 1983009808
          %v3523 = vunpack.c.0.s8 %v3522
          %v3524 = vlaneseq
          %v3525 = vshrl.u32 %v3524, 7
          %v3526 = vsub.s32 %v3523, %v3525
          %v3527 = vrot.slane %v3500, %v3526
          %v3529 = vunpack.c.l.s4 1983009808
          %v3530 = vunpack.c.0.s8 %v3529
          %v3531 = vlaneseq
          %v3532 = vshrl.u32 %v3531, 7
          %v3533 = vsub.s32 %v3530, %v3532
          %v3534 = vrot.slane %v3520, %v3533
          %v3535 = vcombine.high %v3527, %v3527
          %v3536 = vcombine.high %v3534, %v3534
          %v3545 = vpack.c.bf16 %v3510, %v3510
          %v3546 = vpack.c.bf16 %v3518, %v3518
          %v3547 = vpack.c.bf16 %v3517, %v3517
          %v3548 = vpack.c.bf16 %v3519, %v3519
          %v3549 = vpack.c.bf16 %v3527, %v3527
          %v3550 = vpack.c.bf16 %v3535, %v3535
          %v3551 = vpack.c.bf16 %v3534, %v3534
          %v3552 = vpack.c.bf16 %v3536, %v3536
          %v3553 = vld [vmem:[%s7] sm:$0xff]
          %v3554 = vld [vmem:[%s7 + $0x8] sm:$0xff]
          %v3555 = vld [vmem:[%s7 + $0x10] sm:$0xff]
          %v3556 = vld [vmem:[%s7 + $0x18] sm:$0xff]
          %v3557 = vld [vmem:[%s7 + $0x20] sm:$0xff]
          %v3558 = vld [vmem:[%s7 + $0x28] sm:$0xff]
          %v3559 = vld [vmem:[%s7 + $0x30] sm:$0xff]
          %v3560 = vld [vmem:[%s7 + $0x38] sm:$0xff]
          %v3561 = vld [vmem:[%s7 + $0x40] sm:$0xff]
          %v3562 = vld [vmem:[%s7 + $0x48] sm:$0xff]
          %v3563 = vld [vmem:[%s7 + $0x50] sm:$0xff]
          %v3564 = vld [vmem:[%s7 + $0x58] sm:$0xff]
          %v3565 = vld [vmem:[%s7 + $0x60] sm:$0xff]
          %v3566 = vld [vmem:[%s7 + $0x68] sm:$0xff]
          %v3567 = vld [vmem:[%s7 + $0x70] sm:$0xff]
          %v3568 = vld [vmem:[%s7 + $0x78] sm:$0xff]
          %v3569 = vld [vmem:[%s7 + $0x80] sm:$0xff]
          %v3570 = vld [vmem:[%s7 + $0x88] sm:$0xff]
          %v3571 = vld [vmem:[%s7 + $0x90] sm:$0xff]
          %v3572 = vld [vmem:[%s7 + $0x98] sm:$0xff]
          %v3573 = vld [vmem:[%s7 + $0xa0] sm:$0xff]
          %v3574 = vld [vmem:[%s7 + $0xa8] sm:$0xff]
          %v3575 = vld [vmem:[%s7 + $0xb0] sm:$0xff]
          %v3576 = vld [vmem:[%s7 + $0xb8] sm:$0xff]
          %v3577 = vld [vmem:[%s7 + $0xc0] sm:$0xff]
          %v3578 = vld [vmem:[%s7 + $0xc8] sm:$0xff]
          %v3579 = vld [vmem:[%s7 + $0xd0] sm:$0xff]
          %v3580 = vld [vmem:[%s7 + $0xd8] sm:$0xff]
          %v3581 = vld [vmem:[%s7 + $0xe0] sm:$0xff]
          %v3582 = vld [vmem:[%s7 + $0xe8] sm:$0xff]
          %v3583 = vld [vmem:[%s7 + $0xf0] sm:$0xff]
          %v3584 = vld [vmem:[%s7 + $0xf8] sm:$0xff]
          %v3585 = vld [vmem:[%s7 + $0x100] sm:$0xff]
          %v3586 = vld [vmem:[%s7 + $0x108] sm:$0xff]
          %v3587 = vld [vmem:[%s7 + $0x110] sm:$0xff]
          %v3588 = vld [vmem:[%s7 + $0x118] sm:$0xff]
          %v3589 = vld [vmem:[%s7 + $0x120] sm:$0xff]
          %v3590 = vld [vmem:[%s7 + $0x128] sm:$0xff]
          %v3591 = vld [vmem:[%s7 + $0x130] sm:$0xff]
          %v3592 = vld [vmem:[%s7 + $0x138] sm:$0xff]
          %v3593 = vld [vmem:[%s7 + $0x140] sm:$0xff]
          %v3594 = vld [vmem:[%s7 + $0x148] sm:$0xff]
          %v3595 = vld [vmem:[%s7 + $0x150] sm:$0xff]
          %v3596 = vld [vmem:[%s7 + $0x158] sm:$0xff]
          %v3597 = vld [vmem:[%s7 + $0x160] sm:$0xff]
          %v3598 = vld [vmem:[%s7 + $0x168] sm:$0xff]
          %v3599 = vld [vmem:[%s7 + $0x170] sm:$0xff]
          %v3600 = vld [vmem:[%s7 + $0x178] sm:$0xff]
          %v3601 = vld [vmem:[%s7 + $0x180] sm:$0xff]
          %v3602 = vld [vmem:[%s7 + $0x188] sm:$0xff]
          %v3603 = vld [vmem:[%s7 + $0x190] sm:$0xff]
          %v3604 = vld [vmem:[%s7 + $0x198] sm:$0xff]
          %v3605 = vld [vmem:[%s7 + $0x1a0] sm:$0xff]
          %v3606 = vld [vmem:[%s7 + $0x1a8] sm:$0xff]
          %v3607 = vld [vmem:[%s7 + $0x1b0] sm:$0xff]
          %v3608 = vld [vmem:[%s7 + $0x1b8] sm:$0xff]
          %v3609 = vld [vmem:[%s7 + $0x1c0] sm:$0xff]
          %v3610 = vld [vmem:[%s7 + $0x1c8] sm:$0xff]
          %v3611 = vld [vmem:[%s7 + $0x1d0] sm:$0xff]
          %v3612 = vld [vmem:[%s7 + $0x1d8] sm:$0xff]
          %v3613 = vld [vmem:[%s7 + $0x1e0] sm:$0xff]
          %v3614 = vld [vmem:[%s7 + $0x1e8] sm:$0xff]
          %v3615 = vld [vmem:[%s7 + $0x1f0] sm:$0xff]
          %v3616 = vld [vmem:[%s7 + $0x1f8] sm:$0xff]
          %v3617 = vld [vmem:[%s7 + $0x200] sm:$0xff]
          %v3618 = vld [vmem:[%s7 + $0x208] sm:$0xff]
          %v3619 = vld [vmem:[%s7 + $0x210] sm:$0xff]
          %v3620 = vld [vmem:[%s7 + $0x218] sm:$0xff]
          %v3621 = vld [vmem:[%s7 + $0x220] sm:$0xff]
          %v3622 = vld [vmem:[%s7 + $0x228] sm:$0xff]
          %v3623 = vld [vmem:[%s7 + $0x230] sm:$0xff]
          %v3624 = vld [vmem:[%s7 + $0x238] sm:$0xff]
          %v3625 = vld [vmem:[%s7 + $0x240] sm:$0xff]
          %v3626 = vld [vmem:[%s7 + $0x248] sm:$0xff]
          %v3627 = vld [vmem:[%s7 + $0x250] sm:$0xff]
          %v3628 = vld [vmem:[%s7 + $0x258] sm:$0xff]
          %v3629 = vld [vmem:[%s7 + $0x260] sm:$0xff]
          %v3630 = vld [vmem:[%s7 + $0x268] sm:$0xff]
          %v3631 = vld [vmem:[%s7 + $0x270] sm:$0xff]
          %v3632 = vld [vmem:[%s7 + $0x278] sm:$0xff]
          %v3633 = vld [vmem:[%s7 + $0x280] sm:$0xff]
          %v3634 = vld [vmem:[%s7 + $0x288] sm:$0xff]
          %v3635 = vld [vmem:[%s7 + $0x290] sm:$0xff]
          %v3636 = vld [vmem:[%s7 + $0x298] sm:$0xff]
          %v3637 = vld [vmem:[%s7 + $0x2a0] sm:$0xff]
          %v3638 = vld [vmem:[%s7 + $0x2a8] sm:$0xff]
          %v3639 = vld [vmem:[%s7 + $0x2b0] sm:$0xff]
          %v3640 = vld [vmem:[%s7 + $0x2b8] sm:$0xff]
          %v3641 = vld [vmem:[%s7 + $0x2c0] sm:$0xff]
          %v3642 = vld [vmem:[%s7 + $0x2c8] sm:$0xff]
          %v3643 = vld [vmem:[%s7 + $0x2d0] sm:$0xff]
          %v3644 = vld [vmem:[%s7 + $0x2d8] sm:$0xff]
          %v3645 = vld [vmem:[%s7 + $0x2e0] sm:$0xff]
          %v3646 = vld [vmem:[%s7 + $0x2e8] sm:$0xff]
          %v3647 = vld [vmem:[%s7 + $0x2f0] sm:$0xff]
          %v3648 = vld [vmem:[%s7 + $0x2f8] sm:$0xff]
          %v3649 = vld [vmem:[%s7 + $0x300] sm:$0xff]
          %v3650 = vld [vmem:[%s7 + $0x308] sm:$0xff]
          %v3651 = vld [vmem:[%s7 + $0x310] sm:$0xff]
          %v3652 = vld [vmem:[%s7 + $0x318] sm:$0xff]
          %v3653 = vld [vmem:[%s7 + $0x320] sm:$0xff]
          %v3654 = vld [vmem:[%s7 + $0x328] sm:$0xff]
          %v3655 = vld [vmem:[%s7 + $0x330] sm:$0xff]
          %v3656 = vld [vmem:[%s7 + $0x338] sm:$0xff]
          %v3657 = vld [vmem:[%s7 + $0x340] sm:$0xff]
          %v3658 = vld [vmem:[%s7 + $0x348] sm:$0xff]
          %v3659 = vld [vmem:[%s7 + $0x350] sm:$0xff]
          %v3660 = vld [vmem:[%s7 + $0x358] sm:$0xff]
          %v3661 = vld [vmem:[%s7 + $0x360] sm:$0xff]
          %v3662 = vld [vmem:[%s7 + $0x368] sm:$0xff]
          %v3663 = vld [vmem:[%s7 + $0x370] sm:$0xff]
          %v3664 = vld [vmem:[%s7 + $0x378] sm:$0xff]
          %v3665 = vld [vmem:[%s7 + $0x380] sm:$0xff]
          %v3666 = vld [vmem:[%s7 + $0x388] sm:$0xff]
          %v3667 = vld [vmem:[%s7 + $0x390] sm:$0xff]
          %v3668 = vld [vmem:[%s7 + $0x398] sm:$0xff]
          %v3669 = vld [vmem:[%s7 + $0x3a0] sm:$0xff]
          %v3670 = vld [vmem:[%s7 + $0x3a8] sm:$0xff]
          %v3671 = vld [vmem:[%s7 + $0x3b0] sm:$0xff]
          %v3672 = vld [vmem:[%s7 + $0x3b8] sm:$0xff]
          %v3673 = vld [vmem:[%s7 + $0x3c0] sm:$0xff]
          %v3674 = vld [vmem:[%s7 + $0x3c8] sm:$0xff]
          %v3675 = vld [vmem:[%s7 + $0x3d0] sm:$0xff]
          %v3676 = vld [vmem:[%s7 + $0x3d8] sm:$0xff]
          %v3677 = vld [vmem:[%s7 + $0x3e0] sm:$0xff]
          %v3678 = vld [vmem:[%s7 + $0x3e8] sm:$0xff]
          %v3679 = vld [vmem:[%s7 + $0x3f0] sm:$0xff]
          %v3680 = vld [vmem:[%s7 + $0x3f8] sm:$0xff]
          %v3681 = vld [vmem:[%s7 + $0x400] sm:$0xff]
          %v3682 = vld [vmem:[%s7 + $0x408] sm:$0xff]
          %v3683 = vld [vmem:[%s7 + $0x410] sm:$0xff]
          %v3684 = vld [vmem:[%s7 + $0x418] sm:$0xff]
          %v3685 = vld [vmem:[%s7 + $0x420] sm:$0xff]
          %v3686 = vld [vmem:[%s7 + $0x428] sm:$0xff]
          %v3687 = vld [vmem:[%s7 + $0x430] sm:$0xff]
          %v3688 = vld [vmem:[%s7 + $0x438] sm:$0xff]
          %v3689 = vld [vmem:[%s7 + $0x440] sm:$0xff]
          %v3690 = vld [vmem:[%s7 + $0x448] sm:$0xff]
          %v3691 = vld [vmem:[%s7 + $0x450] sm:$0xff]
          %v3692 = vld [vmem:[%s7 + $0x458] sm:$0xff]
          %v3693 = vld [vmem:[%s7 + $0x460] sm:$0xff]
          %v3694 = vld [vmem:[%s7 + $0x468] sm:$0xff]
          %v3695 = vld [vmem:[%s7 + $0x470] sm:$0xff]
          %v3696 = vld [vmem:[%s7 + $0x478] sm:$0xff]
          %v3697 = vld [vmem:[%s7 + $0x480] sm:$0xff]
          %v3698 = vld [vmem:[%s7 + $0x488] sm:$0xff]
          %v3699 = vld [vmem:[%s7 + $0x490] sm:$0xff]
          %v3700 = vld [vmem:[%s7 + $0x498] sm:$0xff]
          %v3701 = vld [vmem:[%s7 + $0x4a0] sm:$0xff]
          %v3702 = vld [vmem:[%s7 + $0x4a8] sm:$0xff]
          %v3703 = vld [vmem:[%s7 + $0x4b0] sm:$0xff]
          %v3704 = vld [vmem:[%s7 + $0x4b8] sm:$0xff]
          %v3705 = vld [vmem:[%s7 + $0x4c0] sm:$0xff]
          %v3706 = vld [vmem:[%s7 + $0x4c8] sm:$0xff]
          %v3707 = vld [vmem:[%s7 + $0x4d0] sm:$0xff]
          %v3708 = vld [vmem:[%s7 + $0x4d8] sm:$0xff]
          %v3709 = vld [vmem:[%s7 + $0x4e0] sm:$0xff]
          %v3710 = vld [vmem:[%s7 + $0x4e8] sm:$0xff]
          %v3711 = vld [vmem:[%s7 + $0x4f0] sm:$0xff]
          %v3712 = vld [vmem:[%s7 + $0x4f8] sm:$0xff]
          %v3713 = vld [vmem:[%s7 + $0x500] sm:$0xff]
          %v3714 = vld [vmem:[%s7 + $0x508] sm:$0xff]
          %v3715 = vld [vmem:[%s7 + $0x510] sm:$0xff]
          %v3716 = vld [vmem:[%s7 + $0x518] sm:$0xff]
          %v3717 = vld [vmem:[%s7 + $0x520] sm:$0xff]
          %v3718 = vld [vmem:[%s7 + $0x528] sm:$0xff]
          %v3719 = vld [vmem:[%s7 + $0x530] sm:$0xff]
          %v3720 = vld [vmem:[%s7 + $0x538] sm:$0xff]
          %v3721 = vld [vmem:[%s7 + $0x540] sm:$0xff]
          %v3722 = vld [vmem:[%s7 + $0x548] sm:$0xff]
          %v3723 = vld [vmem:[%s7 + $0x550] sm:$0xff]
          %v3724 = vld [vmem:[%s7 + $0x558] sm:$0xff]
          %v3725 = vld [vmem:[%s7 + $0x560] sm:$0xff]
          %v3726 = vld [vmem:[%s7 + $0x568] sm:$0xff]
          %v3727 = vld [vmem:[%s7 + $0x570] sm:$0xff]
          %v3728 = vld [vmem:[%s7 + $0x578] sm:$0xff]
          %v3729 = vld [vmem:[%s7 + $0x580] sm:$0xff]
          %v3730 = vld [vmem:[%s7 + $0x588] sm:$0xff]
          %v3731 = vld [vmem:[%s7 + $0x590] sm:$0xff]
          %v3732 = vld [vmem:[%s7 + $0x598] sm:$0xff]
          %v3733 = vld [vmem:[%s7 + $0x5a0] sm:$0xff]
          %v3734 = vld [vmem:[%s7 + $0x5a8] sm:$0xff]
          %v3735 = vld [vmem:[%s7 + $0x5b0] sm:$0xff]
          %v3736 = vld [vmem:[%s7 + $0x5b8] sm:$0xff]
          %v3737 = vld [vmem:[%s7 + $0x5c0] sm:$0xff]
          %v3738 = vld [vmem:[%s7 + $0x5c8] sm:$0xff]
          %v3739 = vld [vmem:[%s7 + $0x5d0] sm:$0xff]
          %v3740 = vld [vmem:[%s7 + $0x5d8] sm:$0xff]
          %v3741 = vld [vmem:[%s7 + $0x5e0] sm:$0xff]
          %v3742 = vld [vmem:[%s7 + $0x5e8] sm:$0xff]
          %v3743 = vld [vmem:[%s7 + $0x5f0] sm:$0xff]
          %v3744 = vld [vmem:[%s7 + $0x5f8] sm:$0xff]
          %v3745 = vld [vmem:[%s7 + $0x600] sm:$0xff]
          %v3746 = vld [vmem:[%s7 + $0x608] sm:$0xff]
          %v3747 = vld [vmem:[%s7 + $0x610] sm:$0xff]
          %v3748 = vld [vmem:[%s7 + $0x618] sm:$0xff]
          %v3749 = vld [vmem:[%s7 + $0x620] sm:$0xff]
          %v3750 = vld [vmem:[%s7 + $0x628] sm:$0xff]
          %v3751 = vld [vmem:[%s7 + $0x630] sm:$0xff]
          %v3752 = vld [vmem:[%s7 + $0x638] sm:$0xff]
          %v3753 = vld [vmem:[%s7 + $0x640] sm:$0xff]
          %v3754 = vld [vmem:[%s7 + $0x648] sm:$0xff]
          %v3755 = vld [vmem:[%s7 + $0x650] sm:$0xff]
          %v3756 = vld [vmem:[%s7 + $0x658] sm:$0xff]
          %v3757 = vld [vmem:[%s7 + $0x660] sm:$0xff]
          %v3758 = vld [vmem:[%s7 + $0x668] sm:$0xff]
          %v3759 = vld [vmem:[%s7 + $0x670] sm:$0xff]
          %v3760 = vld [vmem:[%s7 + $0x678] sm:$0xff]
          %v3761 = vld [vmem:[%s7 + $0x680] sm:$0xff]
          %v3762 = vld [vmem:[%s7 + $0x688] sm:$0xff]
          %v3763 = vld [vmem:[%s7 + $0x690] sm:$0xff]
          %v3764 = vld [vmem:[%s7 + $0x698] sm:$0xff]
          %v3765 = vld [vmem:[%s7 + $0x6a0] sm:$0xff]
          %v3766 = vld [vmem:[%s7 + $0x6a8] sm:$0xff]
          %v3767 = vld [vmem:[%s7 + $0x6b0] sm:$0xff]
          %v3768 = vld [vmem:[%s7 + $0x6b8] sm:$0xff]
          %v3769 = vld [vmem:[%s7 + $0x6c0] sm:$0xff]
          %v3770 = vld [vmem:[%s7 + $0x6c8] sm:$0xff]
          %v3771 = vld [vmem:[%s7 + $0x6d0] sm:$0xff]
          %v3772 = vld [vmem:[%s7 + $0x6d8] sm:$0xff]
          %v3773 = vld [vmem:[%s7 + $0x6e0] sm:$0xff]
          %v3774 = vld [vmem:[%s7 + $0x6e8] sm:$0xff]
          %v3775 = vld [vmem:[%s7 + $0x6f0] sm:$0xff]
          %v3776 = vld [vmem:[%s7 + $0x6f8] sm:$0xff]
          %v3777 = vld [vmem:[%s7 + $0x700] sm:$0xff]
          %v3778 = vld [vmem:[%s7 + $0x708] sm:$0xff]
          %v3779 = vld [vmem:[%s7 + $0x710] sm:$0xff]
          %v3780 = vld [vmem:[%s7 + $0x718] sm:$0xff]
          %v3781 = vld [vmem:[%s7 + $0x720] sm:$0xff]
          %v3782 = vld [vmem:[%s7 + $0x728] sm:$0xff]
          %v3783 = vld [vmem:[%s7 + $0x730] sm:$0xff]
          %v3784 = vld [vmem:[%s7 + $0x738] sm:$0xff]
          %v3785 = vld [vmem:[%s7 + $0x740] sm:$0xff]
          %v3786 = vld [vmem:[%s7 + $0x748] sm:$0xff]
          %v3787 = vld [vmem:[%s7 + $0x750] sm:$0xff]
          %v3788 = vld [vmem:[%s7 + $0x758] sm:$0xff]
          %v3789 = vld [vmem:[%s7 + $0x760] sm:$0xff]
          %v3790 = vld [vmem:[%s7 + $0x768] sm:$0xff]
          %v3791 = vld [vmem:[%s7 + $0x770] sm:$0xff]
          %v3792 = vld [vmem:[%s7 + $0x778] sm:$0xff]
          %v3793 = vld [vmem:[%s7 + $0x780] sm:$0xff]
          %v3794 = vld [vmem:[%s7 + $0x788] sm:$0xff]
          %v3795 = vld [vmem:[%s7 + $0x790] sm:$0xff]
          %v3796 = vld [vmem:[%s7 + $0x798] sm:$0xff]
          %v3797 = vld [vmem:[%s7 + $0x7a0] sm:$0xff]
          %v3798 = vld [vmem:[%s7 + $0x7a8] sm:$0xff]
          %v3799 = vld [vmem:[%s7 + $0x7b0] sm:$0xff]
          %v3800 = vld [vmem:[%s7 + $0x7b8] sm:$0xff]
          %v3801 = vld [vmem:[%s7 + $0x7c0] sm:$0xff]
          %v3802 = vld [vmem:[%s7 + $0x7c8] sm:$0xff]
          %v3803 = vld [vmem:[%s7 + $0x7d0] sm:$0xff]
          %v3804 = vld [vmem:[%s7 + $0x7d8] sm:$0xff]
          %v3805 = vld [vmem:[%s7 + $0x7e0] sm:$0xff]
          %v3806 = vld [vmem:[%s7 + $0x7e8] sm:$0xff]
          %v3807 = vld [vmem:[%s7 + $0x7f0] sm:$0xff]
          %v3808 = vld [vmem:[%s7 + $0x7f8] sm:$0xff]
          %v3809 = vld [vmem:[%s8] sm:$0xf]
          %v3811 = vlaneseq
          %v3812 = vshrl.u32 %v3811, 7
          %v3813 = vsub.s32 0, %v3812
          %v3814 = vrot.slane %v3809, %v3813
          %v3815 = vlaneseq
          %v3816 = vshrl.u32 %v3815, 7
          %v3817 = vsub.s32 1, %v3816
          %v3818 = vrot.slane %v3809, %v3817
          %v3819 = vlaneseq
          %v3820 = vshrl.u32 %v3819, 7
          %v3821 = vsub.s32 2, %v3820
          %v3822 = vrot.slane %v3809, %v3821
          %v3823 = vlaneseq
          %v3824 = vshrl.u32 %v3823, 7
          %v3825 = vsub.s32 3, %v3824
          %v3826 = vrot.slane %v3809, %v3825
          %v4087 = vunpack.c.l.b16 %v3553
          %v4088 = vunpack.c.h.b16 %v3553
          %v4089 = vunpack.c.l.b16 %v3554
          %v4090 = vunpack.c.h.b16 %v3554
          %v4091 = vunpack.c.l.b16 %v3555
          %v4092 = vunpack.c.h.b16 %v3555
          %v4093 = vunpack.c.l.b16 %v3556
          %v4094 = vunpack.c.h.b16 %v3556
          %v4095 = vunpack.c.l.b16 %v3557
          %v4096 = vunpack.c.h.b16 %v3557
          %v4097 = vunpack.c.l.b16 %v3558
          %v4098 = vunpack.c.h.b16 %v3558
          %v4099 = vunpack.c.l.b16 %v3559
          %v4100 = vunpack.c.h.b16 %v3559
          %v4101 = vunpack.c.l.b16 %v3560
          %v4102 = vunpack.c.h.b16 %v3560
          %v4103 = vunpack.c.l.b16 %v3561
          %v4104 = vunpack.c.h.b16 %v3561
          %v4105 = vunpack.c.l.b16 %v3562
          %v4106 = vunpack.c.h.b16 %v3562
          %v4107 = vunpack.c.l.b16 %v3563
          %v4108 = vunpack.c.h.b16 %v3563
          %v4109 = vunpack.c.l.b16 %v3564
          %v4110 = vunpack.c.h.b16 %v3564
          %v4111 = vunpack.c.l.b16 %v3565
          %v4112 = vunpack.c.h.b16 %v3565
          %v4113 = vunpack.c.l.b16 %v3566
          %v4114 = vunpack.c.h.b16 %v3566
          %v4115 = vunpack.c.l.b16 %v3567
          %v4116 = vunpack.c.h.b16 %v3567
          %v4117 = vunpack.c.l.b16 %v3568
          %v4118 = vunpack.c.h.b16 %v3568
          %v4119 = vunpack.c.l.b16 %v3569
          %v4120 = vunpack.c.h.b16 %v3569
          %v4121 = vunpack.c.l.b16 %v3570
          %v4122 = vunpack.c.h.b16 %v3570
          %v4123 = vunpack.c.l.b16 %v3571
          %v4124 = vunpack.c.h.b16 %v3571
          %v4125 = vunpack.c.l.b16 %v3572
          %v4126 = vunpack.c.h.b16 %v3572
          %v4127 = vunpack.c.l.b16 %v3573
          %v4128 = vunpack.c.h.b16 %v3573
          %v4129 = vunpack.c.l.b16 %v3574
          %v4130 = vunpack.c.h.b16 %v3574
          %v4131 = vunpack.c.l.b16 %v3575
          %v4132 = vunpack.c.h.b16 %v3575
          %v4133 = vunpack.c.l.b16 %v3576
          %v4134 = vunpack.c.h.b16 %v3576
          %v4135 = vunpack.c.l.b16 %v3577
          %v4136 = vunpack.c.h.b16 %v3577
          %v4137 = vunpack.c.l.b16 %v3578
          %v4138 = vunpack.c.h.b16 %v3578
          %v4139 = vunpack.c.l.b16 %v3579
          %v4140 = vunpack.c.h.b16 %v3579
          %v4141 = vunpack.c.l.b16 %v3580
          %v4142 = vunpack.c.h.b16 %v3580
          %v4143 = vunpack.c.l.b16 %v3581
          %v4144 = vunpack.c.h.b16 %v3581
          %v4145 = vunpack.c.l.b16 %v3582
          %v4146 = vunpack.c.h.b16 %v3582
          %v4147 = vunpack.c.l.b16 %v3583
          %v4148 = vunpack.c.h.b16 %v3583
          %v4149 = vunpack.c.l.b16 %v3584
          %v4150 = vunpack.c.h.b16 %v3584
          %v4151 = vunpack.c.l.b16 %v3585
          %v4152 = vunpack.c.h.b16 %v3585
          %v4153 = vunpack.c.l.b16 %v3586
          %v4154 = vunpack.c.h.b16 %v3586
          %v4155 = vunpack.c.l.b16 %v3587
          %v4156 = vunpack.c.h.b16 %v3587
          %v4157 = vunpack.c.l.b16 %v3588
          %v4158 = vunpack.c.h.b16 %v3588
          %v4159 = vunpack.c.l.b16 %v3589
          %v4160 = vunpack.c.h.b16 %v3589
          %v4161 = vunpack.c.l.b16 %v3590
          %v4162 = vunpack.c.h.b16 %v3590
          %v4163 = vunpack.c.l.b16 %v3591
          %v4164 = vunpack.c.h.b16 %v3591
          %v4165 = vunpack.c.l.b16 %v3592
          %v4166 = vunpack.c.h.b16 %v3592
          %v4167 = vunpack.c.l.b16 %v3593
          %v4168 = vunpack.c.h.b16 %v3593
          %v4169 = vunpack.c.l.b16 %v3594
          %v4170 = vunpack.c.h.b16 %v3594
          %v4171 = vunpack.c.l.b16 %v3595
          %v4172 = vunpack.c.h.b16 %v3595
          %v4173 = vunpack.c.l.b16 %v3596
          %v4174 = vunpack.c.h.b16 %v3596
          %v4175 = vunpack.c.l.b16 %v3597
          %v4176 = vunpack.c.h.b16 %v3597
          %v4177 = vunpack.c.l.b16 %v3598
          %v4178 = vunpack.c.h.b16 %v3598
          %v4179 = vunpack.c.l.b16 %v3599
          %v4180 = vunpack.c.h.b16 %v3599
          %v4181 = vunpack.c.l.b16 %v3600
          %v4182 = vunpack.c.h.b16 %v3600
          %v4183 = vunpack.c.l.b16 %v3601
          %v4184 = vunpack.c.h.b16 %v3601
          %v4185 = vunpack.c.l.b16 %v3602
          %v4186 = vunpack.c.h.b16 %v3602
          %v4187 = vunpack.c.l.b16 %v3603
          %v4188 = vunpack.c.h.b16 %v3603
          %v4189 = vunpack.c.l.b16 %v3604
          %v4190 = vunpack.c.h.b16 %v3604
          %v4191 = vunpack.c.l.b16 %v3605
          %v4192 = vunpack.c.h.b16 %v3605
          %v4193 = vunpack.c.l.b16 %v3606
          %v4194 = vunpack.c.h.b16 %v3606
          %v4195 = vunpack.c.l.b16 %v3607
          %v4196 = vunpack.c.h.b16 %v3607
          %v4197 = vunpack.c.l.b16 %v3608
          %v4198 = vunpack.c.h.b16 %v3608
          %v4199 = vunpack.c.l.b16 %v3609
          %v4200 = vunpack.c.h.b16 %v3609
          %v4201 = vunpack.c.l.b16 %v3610
          %v4202 = vunpack.c.h.b16 %v3610
          %v4203 = vunpack.c.l.b16 %v3611
          %v4204 = vunpack.c.h.b16 %v3611
          %v4205 = vunpack.c.l.b16 %v3612
          %v4206 = vunpack.c.h.b16 %v3612
          %v4207 = vunpack.c.l.b16 %v3613
          %v4208 = vunpack.c.h.b16 %v3613
          %v4209 = vunpack.c.l.b16 %v3614
          %v4210 = vunpack.c.h.b16 %v3614
          %v4211 = vunpack.c.l.b16 %v3615
          %v4212 = vunpack.c.h.b16 %v3615
          %v4213 = vunpack.c.l.b16 %v3616
          %v4214 = vunpack.c.h.b16 %v3616
          %v4215 = vunpack.c.l.b16 %v3617
          %v4216 = vunpack.c.h.b16 %v3617
          %v4217 = vunpack.c.l.b16 %v3618
          %v4218 = vunpack.c.h.b16 %v3618
          %v4219 = vunpack.c.l.b16 %v3619
          %v4220 = vunpack.c.h.b16 %v3619
          %v4221 = vunpack.c.l.b16 %v3620
          %v4222 = vunpack.c.h.b16 %v3620
          %v4223 = vunpack.c.l.b16 %v3621
          %v4224 = vunpack.c.h.b16 %v3621
          %v4225 = vunpack.c.l.b16 %v3622
          %v4226 = vunpack.c.h.b16 %v3622
          %v4227 = vunpack.c.l.b16 %v3623
          %v4228 = vunpack.c.h.b16 %v3623
          %v4229 = vunpack.c.l.b16 %v3624
          %v4230 = vunpack.c.h.b16 %v3624
          %v4231 = vunpack.c.l.b16 %v3625
          %v4232 = vunpack.c.h.b16 %v3625
          %v4233 = vunpack.c.l.b16 %v3626
          %v4234 = vunpack.c.h.b16 %v3626
          %v4235 = vunpack.c.l.b16 %v3627
          %v4236 = vunpack.c.h.b16 %v3627
          %v4237 = vunpack.c.l.b16 %v3628
          %v4238 = vunpack.c.h.b16 %v3628
          %v4239 = vunpack.c.l.b16 %v3629
          %v4240 = vunpack.c.h.b16 %v3629
          %v4241 = vunpack.c.l.b16 %v3630
          %v4242 = vunpack.c.h.b16 %v3630
          %v4243 = vunpack.c.l.b16 %v3631
          %v4244 = vunpack.c.h.b16 %v3631
          %v4245 = vunpack.c.l.b16 %v3632
          %v4246 = vunpack.c.h.b16 %v3632
          %v4247 = vunpack.c.l.b16 %v3633
          %v4248 = vunpack.c.h.b16 %v3633
          %v4249 = vunpack.c.l.b16 %v3634
          %v4250 = vunpack.c.h.b16 %v3634
          %v4251 = vunpack.c.l.b16 %v3635
          %v4252 = vunpack.c.h.b16 %v3635
          %v4253 = vunpack.c.l.b16 %v3636
          %v4254 = vunpack.c.h.b16 %v3636
          %v4255 = vunpack.c.l.b16 %v3637
          %v4256 = vunpack.c.h.b16 %v3637
          %v4257 = vunpack.c.l.b16 %v3638
          %v4258 = vunpack.c.h.b16 %v3638
          %v4259 = vunpack.c.l.b16 %v3639
          %v4260 = vunpack.c.h.b16 %v3639
          %v4261 = vunpack.c.l.b16 %v3640
          %v4262 = vunpack.c.h.b16 %v3640
          %v4263 = vunpack.c.l.b16 %v3641
          %v4264 = vunpack.c.h.b16 %v3641
          %v4265 = vunpack.c.l.b16 %v3642
          %v4266 = vunpack.c.h.b16 %v3642
          %v4267 = vunpack.c.l.b16 %v3643
          %v4268 = vunpack.c.h.b16 %v3643
          %v4269 = vunpack.c.l.b16 %v3644
          %v4270 = vunpack.c.h.b16 %v3644
          %v4271 = vunpack.c.l.b16 %v3645
          %v4272 = vunpack.c.h.b16 %v3645
          %v4273 = vunpack.c.l.b16 %v3646
          %v4274 = vunpack.c.h.b16 %v3646
          %v4275 = vunpack.c.l.b16 %v3647
          %v4276 = vunpack.c.h.b16 %v3647
          %v4277 = vunpack.c.l.b16 %v3648
          %v4278 = vunpack.c.h.b16 %v3648
          %v4279 = vunpack.c.l.b16 %v3649
          %v4280 = vunpack.c.h.b16 %v3649
          %v4281 = vunpack.c.l.b16 %v3650
          %v4282 = vunpack.c.h.b16 %v3650
          %v4283 = vunpack.c.l.b16 %v3651
          %v4284 = vunpack.c.h.b16 %v3651
          %v4285 = vunpack.c.l.b16 %v3652
          %v4286 = vunpack.c.h.b16 %v3652
          %v4287 = vunpack.c.l.b16 %v3653
          %v4288 = vunpack.c.h.b16 %v3653
          %v4289 = vunpack.c.l.b16 %v3654
          %v4290 = vunpack.c.h.b16 %v3654
          %v4291 = vunpack.c.l.b16 %v3655
          %v4292 = vunpack.c.h.b16 %v3655
          %v4293 = vunpack.c.l.b16 %v3656
          %v4294 = vunpack.c.h.b16 %v3656
          %v4295 = vunpack.c.l.b16 %v3657
          %v4296 = vunpack.c.h.b16 %v3657
          %v4297 = vunpack.c.l.b16 %v3658
          %v4298 = vunpack.c.h.b16 %v3658
          %v4299 = vunpack.c.l.b16 %v3659
          %v4300 = vunpack.c.h.b16 %v3659
          %v4301 = vunpack.c.l.b16 %v3660
          %v4302 = vunpack.c.h.b16 %v3660
          %v4303 = vunpack.c.l.b16 %v3661
          %v4304 = vunpack.c.h.b16 %v3661
          %v4305 = vunpack.c.l.b16 %v3662
          %v4306 = vunpack.c.h.b16 %v3662
          %v4307 = vunpack.c.l.b16 %v3663
          %v4308 = vunpack.c.h.b16 %v3663
          %v4309 = vunpack.c.l.b16 %v3664
          %v4310 = vunpack.c.h.b16 %v3664
          %v4311 = vunpack.c.l.b16 %v3665
          %v4312 = vunpack.c.h.b16 %v3665
          %v4313 = vunpack.c.l.b16 %v3666
          %v4314 = vunpack.c.h.b16 %v3666
          %v4315 = vunpack.c.l.b16 %v3667
          %v4316 = vunpack.c.h.b16 %v3667
          %v4317 = vunpack.c.l.b16 %v3668
          %v4318 = vunpack.c.h.b16 %v3668
          %v4319 = vunpack.c.l.b16 %v3669
          %v4320 = vunpack.c.h.b16 %v3669
          %v4321 = vunpack.c.l.b16 %v3670
          %v4322 = vunpack.c.h.b16 %v3670
          %v4323 = vunpack.c.l.b16 %v3671
          %v4324 = vunpack.c.h.b16 %v3671
          %v4325 = vunpack.c.l.b16 %v3672
          %v4326 = vunpack.c.h.b16 %v3672
          %v4327 = vunpack.c.l.b16 %v3673
          %v4328 = vunpack.c.h.b16 %v3673
          %v4329 = vunpack.c.l.b16 %v3674
          %v4330 = vunpack.c.h.b16 %v3674
          %v4331 = vunpack.c.l.b16 %v3675
          %v4332 = vunpack.c.h.b16 %v3675
          %v4333 = vunpack.c.l.b16 %v3676
          %v4334 = vunpack.c.h.b16 %v3676
          %v4335 = vunpack.c.l.b16 %v3677
          %v4336 = vunpack.c.h.b16 %v3677
          %v4337 = vunpack.c.l.b16 %v3678
          %v4338 = vunpack.c.h.b16 %v3678
          %v4339 = vunpack.c.l.b16 %v3679
          %v4340 = vunpack.c.h.b16 %v3679
          %v4341 = vunpack.c.l.b16 %v3680
          %v4342 = vunpack.c.h.b16 %v3680
          %v4343 = vunpack.c.l.b16 %v3681
          %v4344 = vunpack.c.h.b16 %v3681
          %v4345 = vunpack.c.l.b16 %v3682
          %v4346 = vunpack.c.h.b16 %v3682
          %v4347 = vunpack.c.l.b16 %v3683
          %v4348 = vunpack.c.h.b16 %v3683
          %v4349 = vunpack.c.l.b16 %v3684
          %v4350 = vunpack.c.h.b16 %v3684
          %v4351 = vunpack.c.l.b16 %v3685
          %v4352 = vunpack.c.h.b16 %v3685
          %v4353 = vunpack.c.l.b16 %v3686
          %v4354 = vunpack.c.h.b16 %v3686
          %v4355 = vunpack.c.l.b16 %v3687
          %v4356 = vunpack.c.h.b16 %v3687
          %v4357 = vunpack.c.l.b16 %v3688
          %v4358 = vunpack.c.h.b16 %v3688
          %v4359 = vunpack.c.l.b16 %v3689
          %v4360 = vunpack.c.h.b16 %v3689
          %v4361 = vunpack.c.l.b16 %v3690
          %v4362 = vunpack.c.h.b16 %v3690
          %v4363 = vunpack.c.l.b16 %v3691
          %v4364 = vunpack.c.h.b16 %v3691
          %v4365 = vunpack.c.l.b16 %v3692
          %v4366 = vunpack.c.h.b16 %v3692
          %v4367 = vunpack.c.l.b16 %v3693
          %v4368 = vunpack.c.h.b16 %v3693
          %v4369 = vunpack.c.l.b16 %v3694
          %v4370 = vunpack.c.h.b16 %v3694
          %v4371 = vunpack.c.l.b16 %v3695
          %v4372 = vunpack.c.h.b16 %v3695
          %v4373 = vunpack.c.l.b16 %v3696
          %v4374 = vunpack.c.h.b16 %v3696
          %v4375 = vunpack.c.l.b16 %v3697
          %v4376 = vunpack.c.h.b16 %v3697
          %v4377 = vunpack.c.l.b16 %v3698
          %v4378 = vunpack.c.h.b16 %v3698
          %v4379 = vunpack.c.l.b16 %v3699
          %v4380 = vunpack.c.h.b16 %v3699
          %v4381 = vunpack.c.l.b16 %v3700
          %v4382 = vunpack.c.h.b16 %v3700
          %v4383 = vunpack.c.l.b16 %v3701
          %v4384 = vunpack.c.h.b16 %v3701
          %v4385 = vunpack.c.l.b16 %v3702
          %v4386 = vunpack.c.h.b16 %v3702
          %v4387 = vunpack.c.l.b16 %v3703
          %v4388 = vunpack.c.h.b16 %v3703
          %v4389 = vunpack.c.l.b16 %v3704
          %v4390 = vunpack.c.h.b16 %v3704
          %v4391 = vunpack.c.l.b16 %v3705
          %v4392 = vunpack.c.h.b16 %v3705
          %v4393 = vunpack.c.l.b16 %v3706
          %v4394 = vunpack.c.h.b16 %v3706
          %v4395 = vunpack.c.l.b16 %v3707
          %v4396 = vunpack.c.h.b16 %v3707
          %v4397 = vunpack.c.l.b16 %v3708
          %v4398 = vunpack.c.h.b16 %v3708
          %v4399 = vunpack.c.l.b16 %v3709
          %v4400 = vunpack.c.h.b16 %v3709
          %v4401 = vunpack.c.l.b16 %v3710
          %v4402 = vunpack.c.h.b16 %v3710
          %v4403 = vunpack.c.l.b16 %v3711
          %v4404 = vunpack.c.h.b16 %v3711
          %v4405 = vunpack.c.l.b16 %v3712
          %v4406 = vunpack.c.h.b16 %v3712
          %v4407 = vunpack.c.l.b16 %v3713
          %v4408 = vunpack.c.h.b16 %v3713
          %v4409 = vunpack.c.l.b16 %v3714
          %v4410 = vunpack.c.h.b16 %v3714
          %v4411 = vunpack.c.l.b16 %v3715
          %v4412 = vunpack.c.h.b16 %v3715
          %v4413 = vunpack.c.l.b16 %v3716
          %v4414 = vunpack.c.h.b16 %v3716
          %v4415 = vunpack.c.l.b16 %v3717
          %v4416 = vunpack.c.h.b16 %v3717
          %v4417 = vunpack.c.l.b16 %v3718
          %v4418 = vunpack.c.h.b16 %v3718
          %v4419 = vunpack.c.l.b16 %v3719
          %v4420 = vunpack.c.h.b16 %v3719
          %v4421 = vunpack.c.l.b16 %v3720
          %v4422 = vunpack.c.h.b16 %v3720
          %v4423 = vunpack.c.l.b16 %v3721
          %v4424 = vunpack.c.h.b16 %v3721
          %v4425 = vunpack.c.l.b16 %v3722
          %v4426 = vunpack.c.h.b16 %v3722
          %v4427 = vunpack.c.l.b16 %v3723
          %v4428 = vunpack.c.h.b16 %v3723
          %v4429 = vunpack.c.l.b16 %v3724
          %v4430 = vunpack.c.h.b16 %v3724
          %v4431 = vunpack.c.l.b16 %v3725
          %v4432 = vunpack.c.h.b16 %v3725
          %v4433 = vunpack.c.l.b16 %v3726
          %v4434 = vunpack.c.h.b16 %v3726
          %v4435 = vunpack.c.l.b16 %v3727
          %v4436 = vunpack.c.h.b16 %v3727
          %v4437 = vunpack.c.l.b16 %v3728
          %v4438 = vunpack.c.h.b16 %v3728
          %v4439 = vunpack.c.l.b16 %v3729
          %v4440 = vunpack.c.h.b16 %v3729
          %v4441 = vunpack.c.l.b16 %v3730
          %v4442 = vunpack.c.h.b16 %v3730
          %v4443 = vunpack.c.l.b16 %v3731
          %v4444 = vunpack.c.h.b16 %v3731
          %v4445 = vunpack.c.l.b16 %v3732
          %v4446 = vunpack.c.h.b16 %v3732
          %v4447 = vunpack.c.l.b16 %v3733
          %v4448 = vunpack.c.h.b16 %v3733
          %v4449 = vunpack.c.l.b16 %v3734
          %v4450 = vunpack.c.h.b16 %v3734
          %v4451 = vunpack.c.l.b16 %v3735
          %v4452 = vunpack.c.h.b16 %v3735
          %v4453 = vunpack.c.l.b16 %v3736
          %v4454 = vunpack.c.h.b16 %v3736
          %v4455 = vunpack.c.l.b16 %v3737
          %v4456 = vunpack.c.h.b16 %v3737
          %v4457 = vunpack.c.l.b16 %v3738
          %v4458 = vunpack.c.h.b16 %v3738
          %v4459 = vunpack.c.l.b16 %v3739
          %v4460 = vunpack.c.h.b16 %v3739
          %v4461 = vunpack.c.l.b16 %v3740
          %v4462 = vunpack.c.h.b16 %v3740
          %v4463 = vunpack.c.l.b16 %v3741
          %v4464 = vunpack.c.h.b16 %v3741
          %v4465 = vunpack.c.l.b16 %v3742
          %v4466 = vunpack.c.h.b16 %v3742
          %v4467 = vunpack.c.l.b16 %v3743
          %v4468 = vunpack.c.h.b16 %v3743
          %v4469 = vunpack.c.l.b16 %v3744
          %v4470 = vunpack.c.h.b16 %v3744
          %v4471 = vunpack.c.l.b16 %v3745
          %v4472 = vunpack.c.h.b16 %v3745
          %v4473 = vunpack.c.l.b16 %v3746
          %v4474 = vunpack.c.h.b16 %v3746
          %v4475 = vunpack.c.l.b16 %v3747
          %v4476 = vunpack.c.h.b16 %v3747
          %v4477 = vunpack.c.l.b16 %v3748
          %v4478 = vunpack.c.h.b16 %v3748
          %v4479 = vunpack.c.l.b16 %v3749
          %v4480 = vunpack.c.h.b16 %v3749
          %v4481 = vunpack.c.l.b16 %v3750
          %v4482 = vunpack.c.h.b16 %v3750
          %v4483 = vunpack.c.l.b16 %v3751
          %v4484 = vunpack.c.h.b16 %v3751
          %v4485 = vunpack.c.l.b16 %v3752
          %v4486 = vunpack.c.h.b16 %v3752
          %v4487 = vunpack.c.l.b16 %v3753
          %v4488 = vunpack.c.h.b16 %v3753
          %v4489 = vunpack.c.l.b16 %v3754
          %v4490 = vunpack.c.h.b16 %v3754
          %v4491 = vunpack.c.l.b16 %v3755
          %v4492 = vunpack.c.h.b16 %v3755
          %v4493 = vunpack.c.l.b16 %v3756
          %v4494 = vunpack.c.h.b16 %v3756
          %v4495 = vunpack.c.l.b16 %v3757
          %v4496 = vunpack.c.h.b16 %v3757
          %v4497 = vunpack.c.l.b16 %v3758
          %v4498 = vunpack.c.h.b16 %v3758
          %v4499 = vunpack.c.l.b16 %v3759
          %v4500 = vunpack.c.h.b16 %v3759
          %v4501 = vunpack.c.l.b16 %v3760
          %v4502 = vunpack.c.h.b16 %v3760
          %v4503 = vunpack.c.l.b16 %v3761
          %v4504 = vunpack.c.h.b16 %v3761
          %v4505 = vunpack.c.l.b16 %v3762
          %v4506 = vunpack.c.h.b16 %v3762
          %v4507 = vunpack.c.l.b16 %v3763
          %v4508 = vunpack.c.h.b16 %v3763
          %v4509 = vunpack.c.l.b16 %v3764
          %v4510 = vunpack.c.h.b16 %v3764
          %v4511 = vunpack.c.l.b16 %v3765
          %v4512 = vunpack.c.h.b16 %v3765
          %v4513 = vunpack.c.l.b16 %v3766
          %v4514 = vunpack.c.h.b16 %v3766
          %v4515 = vunpack.c.l.b16 %v3767
          %v4516 = vunpack.c.h.b16 %v3767
          %v4517 = vunpack.c.l.b16 %v3768
          %v4518 = vunpack.c.h.b16 %v3768
          %v4519 = vunpack.c.l.b16 %v3769
          %v4520 = vunpack.c.h.b16 %v3769
          %v4521 = vunpack.c.l.b16 %v3770
          %v4522 = vunpack.c.h.b16 %v3770
          %v4523 = vunpack.c.l.b16 %v3771
          %v4524 = vunpack.c.h.b16 %v3771
          %v4525 = vunpack.c.l.b16 %v3772
          %v4526 = vunpack.c.h.b16 %v3772
          %v4527 = vunpack.c.l.b16 %v3773
          %v4528 = vunpack.c.h.b16 %v3773
          %v4529 = vunpack.c.l.b16 %v3774
          %v4530 = vunpack.c.h.b16 %v3774
          %v4531 = vunpack.c.l.b16 %v3775
          %v4532 = vunpack.c.h.b16 %v3775
          %v4533 = vunpack.c.l.b16 %v3776
          %v4534 = vunpack.c.h.b16 %v3776
          %v4535 = vunpack.c.l.b16 %v3777
          %v4536 = vunpack.c.h.b16 %v3777
          %v4537 = vunpack.c.l.b16 %v3778
          %v4538 = vunpack.c.h.b16 %v3778
          %v4539 = vunpack.c.l.b16 %v3779
          %v4540 = vunpack.c.h.b16 %v3779
          %v4541 = vunpack.c.l.b16 %v3780
          %v4542 = vunpack.c.h.b16 %v3780
          %v4543 = vunpack.c.l.b16 %v3781
          %v4544 = vunpack.c.h.b16 %v3781
          %v4545 = vunpack.c.l.b16 %v3782
          %v4546 = vunpack.c.h.b16 %v3782
          %v4547 = vunpack.c.l.b16 %v3783
          %v4548 = vunpack.c.h.b16 %v3783
          %v4549 = vunpack.c.l.b16 %v3784
          %v4550 = vunpack.c.h.b16 %v3784
          %v4551 = vunpack.c.l.b16 %v3785
          %v4552 = vunpack.c.h.b16 %v3785
          %v4553 = vunpack.c.l.b16 %v3786
          %v4554 = vunpack.c.h.b16 %v3786
          %v4555 = vunpack.c.l.b16 %v3787
          %v4556 = vunpack.c.h.b16 %v3787
          %v4557 = vunpack.c.l.b16 %v3788
          %v4558 = vunpack.c.h.b16 %v3788
          %v4559 = vunpack.c.l.b16 %v3789
          %v4560 = vunpack.c.h.b16 %v3789
          %v4561 = vunpack.c.l.b16 %v3790
          %v4562 = vunpack.c.h.b16 %v3790
          %v4563 = vunpack.c.l.b16 %v3791
          %v4564 = vunpack.c.h.b16 %v3791
          %v4565 = vunpack.c.l.b16 %v3792
          %v4566 = vunpack.c.h.b16 %v3792
          %v4567 = vunpack.c.l.b16 %v3793
          %v4568 = vunpack.c.h.b16 %v3793
          %v4569 = vunpack.c.l.b16 %v3794
          %v4570 = vunpack.c.h.b16 %v3794
          %v4571 = vunpack.c.l.b16 %v3795
          %v4572 = vunpack.c.h.b16 %v3795
          %v4573 = vunpack.c.l.b16 %v3796
          %v4574 = vunpack.c.h.b16 %v3796
          %v4575 = vunpack.c.l.b16 %v3797
          %v4576 = vunpack.c.h.b16 %v3797
          %v4577 = vunpack.c.l.b16 %v3798
          %v4578 = vunpack.c.h.b16 %v3798
          %v4579 = vunpack.c.l.b16 %v3799
          %v4580 = vunpack.c.h.b16 %v3799
          %v4581 = vunpack.c.l.b16 %v3800
          %v4582 = vunpack.c.h.b16 %v3800
          %v4583 = vunpack.c.l.b16 %v3801
          %v4584 = vunpack.c.h.b16 %v3801
          %v4585 = vunpack.c.l.b16 %v3802
          %v4586 = vunpack.c.h.b16 %v3802
          %v4587 = vunpack.c.l.b16 %v3803
          %v4588 = vunpack.c.h.b16 %v3803
          %v4589 = vunpack.c.l.b16 %v3804
          %v4590 = vunpack.c.h.b16 %v3804
          %v4591 = vunpack.c.l.b16 %v3805
          %v4592 = vunpack.c.h.b16 %v3805
          %v4593 = vunpack.c.l.b16 %v3806
          %v4594 = vunpack.c.h.b16 %v3806
          %v4595 = vunpack.c.l.b16 %v3807
          %v4596 = vunpack.c.h.b16 %v3807
          %v4597 = vunpack.c.l.b16 %v3808
          %v4598 = vunpack.c.h.b16 %v3808
          %v4599 = vpack.c.b16 %v4091, %v4087
          %v4600 = vpack.c.b16 %v4092, %v4088
          %v4601 = vpack.c.b16 %v4093, %v4089
          %v4602 = vpack.c.b16 %v4094, %v4090
          %v4603 = vpack.c.b16 %v4099, %v4095
          %v4604 = vpack.c.b16 %v4100, %v4096
          %v4605 = vpack.c.b16 %v4101, %v4097
          %v4606 = vpack.c.b16 %v4102, %v4098
          %v4607 = vpack.c.b16 %v4107, %v4103
          %v4608 = vpack.c.b16 %v4108, %v4104
          %v4609 = vpack.c.b16 %v4109, %v4105
          %v4610 = vpack.c.b16 %v4110, %v4106
          %v4611 = vpack.c.b16 %v4115, %v4111
          %v4612 = vpack.c.b16 %v4116, %v4112
          %v4613 = vpack.c.b16 %v4117, %v4113
          %v4614 = vpack.c.b16 %v4118, %v4114
          %v4615 = vpack.c.b16 %v4123, %v4119
          %v4616 = vpack.c.b16 %v4124, %v4120
          %v4617 = vpack.c.b16 %v4125, %v4121
          %v4618 = vpack.c.b16 %v4126, %v4122
          %v4619 = vpack.c.b16 %v4131, %v4127
          %v4620 = vpack.c.b16 %v4132, %v4128
          %v4621 = vpack.c.b16 %v4133, %v4129
          %v4622 = vpack.c.b16 %v4134, %v4130
          %v4623 = vpack.c.b16 %v4139, %v4135
          %v4624 = vpack.c.b16 %v4140, %v4136
          %v4625 = vpack.c.b16 %v4141, %v4137
          %v4626 = vpack.c.b16 %v4142, %v4138
          %v4627 = vpack.c.b16 %v4147, %v4143
          %v4628 = vpack.c.b16 %v4148, %v4144
          %v4629 = vpack.c.b16 %v4149, %v4145
          %v4630 = vpack.c.b16 %v4150, %v4146
          %v4631 = vpack.c.b16 %v4155, %v4151
          %v4632 = vpack.c.b16 %v4156, %v4152
          %v4633 = vpack.c.b16 %v4157, %v4153
          %v4634 = vpack.c.b16 %v4158, %v4154
          %v4635 = vpack.c.b16 %v4163, %v4159
          %v4636 = vpack.c.b16 %v4164, %v4160
          %v4637 = vpack.c.b16 %v4165, %v4161
          %v4638 = vpack.c.b16 %v4166, %v4162
          %v4639 = vpack.c.b16 %v4171, %v4167
          %v4640 = vpack.c.b16 %v4172, %v4168
          %v4641 = vpack.c.b16 %v4173, %v4169
          %v4642 = vpack.c.b16 %v4174, %v4170
          %v4643 = vpack.c.b16 %v4179, %v4175
          %v4644 = vpack.c.b16 %v4180, %v4176
          %v4645 = vpack.c.b16 %v4181, %v4177
          %v4646 = vpack.c.b16 %v4182, %v4178
          %v4647 = vpack.c.b16 %v4187, %v4183
          %v4648 = vpack.c.b16 %v4188, %v4184
          %v4649 = vpack.c.b16 %v4189, %v4185
          %v4650 = vpack.c.b16 %v4190, %v4186
          %v4651 = vpack.c.b16 %v4195, %v4191
          %v4652 = vpack.c.b16 %v4196, %v4192
          %v4653 = vpack.c.b16 %v4197, %v4193
          %v4654 = vpack.c.b16 %v4198, %v4194
          %v4655 = vpack.c.b16 %v4203, %v4199
          %v4656 = vpack.c.b16 %v4204, %v4200
          %v4657 = vpack.c.b16 %v4205, %v4201
          %v4658 = vpack.c.b16 %v4206, %v4202
          %v4659 = vpack.c.b16 %v4211, %v4207
          %v4660 = vpack.c.b16 %v4212, %v4208
          %v4661 = vpack.c.b16 %v4213, %v4209
          %v4662 = vpack.c.b16 %v4214, %v4210
          %v4663 = vpack.c.b16 %v4219, %v4215
          %v4664 = vpack.c.b16 %v4220, %v4216
          %v4665 = vpack.c.b16 %v4221, %v4217
          %v4666 = vpack.c.b16 %v4222, %v4218
          %v4667 = vpack.c.b16 %v4227, %v4223
          %v4668 = vpack.c.b16 %v4228, %v4224
          %v4669 = vpack.c.b16 %v4229, %v4225
          %v4670 = vpack.c.b16 %v4230, %v4226
          %v4671 = vpack.c.b16 %v4235, %v4231
          %v4672 = vpack.c.b16 %v4236, %v4232
          %v4673 = vpack.c.b16 %v4237, %v4233
          %v4674 = vpack.c.b16 %v4238, %v4234
          %v4675 = vpack.c.b16 %v4243, %v4239
          %v4676 = vpack.c.b16 %v4244, %v4240
          %v4677 = vpack.c.b16 %v4245, %v4241
          %v4678 = vpack.c.b16 %v4246, %v4242
          %v4679 = vpack.c.b16 %v4251, %v4247
          %v4680 = vpack.c.b16 %v4252, %v4248
          %v4681 = vpack.c.b16 %v4253, %v4249
          %v4682 = vpack.c.b16 %v4254, %v4250
          %v4683 = vpack.c.b16 %v4259, %v4255
          %v4684 = vpack.c.b16 %v4260, %v4256
          %v4685 = vpack.c.b16 %v4261, %v4257
          %v4686 = vpack.c.b16 %v4262, %v4258
          %v4687 = vpack.c.b16 %v4267, %v4263
          %v4688 = vpack.c.b16 %v4268, %v4264
          %v4689 = vpack.c.b16 %v4269, %v4265
          %v4690 = vpack.c.b16 %v4270, %v4266
          %v4691 = vpack.c.b16 %v4275, %v4271
          %v4692 = vpack.c.b16 %v4276, %v4272
          %v4693 = vpack.c.b16 %v4277, %v4273
          %v4694 = vpack.c.b16 %v4278, %v4274
          %v4695 = vpack.c.b16 %v4283, %v4279
          %v4696 = vpack.c.b16 %v4284, %v4280
          %v4697 = vpack.c.b16 %v4285, %v4281
          %v4698 = vpack.c.b16 %v4286, %v4282
          %v4699 = vpack.c.b16 %v4291, %v4287
          %v4700 = vpack.c.b16 %v4292, %v4288
          %v4701 = vpack.c.b16 %v4293, %v4289
          %v4702 = vpack.c.b16 %v4294, %v4290
          %v4703 = vpack.c.b16 %v4299, %v4295
          %v4704 = vpack.c.b16 %v4300, %v4296
          %v4705 = vpack.c.b16 %v4301, %v4297
          %v4706 = vpack.c.b16 %v4302, %v4298
          %v4707 = vpack.c.b16 %v4307, %v4303
          %v4708 = vpack.c.b16 %v4308, %v4304
          %v4709 = vpack.c.b16 %v4309, %v4305
          %v4710 = vpack.c.b16 %v4310, %v4306
          %v4711 = vpack.c.b16 %v4315, %v4311
          %v4712 = vpack.c.b16 %v4316, %v4312
          %v4713 = vpack.c.b16 %v4317, %v4313
          %v4714 = vpack.c.b16 %v4318, %v4314
          %v4715 = vpack.c.b16 %v4323, %v4319
          %v4716 = vpack.c.b16 %v4324, %v4320
          %v4717 = vpack.c.b16 %v4325, %v4321
          %v4718 = vpack.c.b16 %v4326, %v4322
          %v4719 = vpack.c.b16 %v4331, %v4327
          %v4720 = vpack.c.b16 %v4332, %v4328
          %v4721 = vpack.c.b16 %v4333, %v4329
          %v4722 = vpack.c.b16 %v4334, %v4330
          %v4723 = vpack.c.b16 %v4339, %v4335
          %v4724 = vpack.c.b16 %v4340, %v4336
          %v4725 = vpack.c.b16 %v4341, %v4337
          %v4726 = vpack.c.b16 %v4342, %v4338
          %v4727 = vpack.c.b16 %v4347, %v4343
          %v4728 = vpack.c.b16 %v4348, %v4344
          %v4729 = vpack.c.b16 %v4349, %v4345
          %v4730 = vpack.c.b16 %v4350, %v4346
          %v4731 = vpack.c.b16 %v4355, %v4351
          %v4732 = vpack.c.b16 %v4356, %v4352
          %v4733 = vpack.c.b16 %v4357, %v4353
          %v4734 = vpack.c.b16 %v4358, %v4354
          %v4735 = vpack.c.b16 %v4363, %v4359
          %v4736 = vpack.c.b16 %v4364, %v4360
          %v4737 = vpack.c.b16 %v4365, %v4361
          %v4738 = vpack.c.b16 %v4366, %v4362
          %v4739 = vpack.c.b16 %v4371, %v4367
          %v4740 = vpack.c.b16 %v4372, %v4368
          %v4741 = vpack.c.b16 %v4373, %v4369
          %v4742 = vpack.c.b16 %v4374, %v4370
          %v4743 = vpack.c.b16 %v4379, %v4375
          %v4744 = vpack.c.b16 %v4380, %v4376
          %v4745 = vpack.c.b16 %v4381, %v4377
          %v4746 = vpack.c.b16 %v4382, %v4378
          %v4747 = vpack.c.b16 %v4387, %v4383
          %v4748 = vpack.c.b16 %v4388, %v4384
          %v4749 = vpack.c.b16 %v4389, %v4385
          %v4750 = vpack.c.b16 %v4390, %v4386
          %v4751 = vpack.c.b16 %v4395, %v4391
          %v4752 = vpack.c.b16 %v4396, %v4392
          %v4753 = vpack.c.b16 %v4397, %v4393
          %v4754 = vpack.c.b16 %v4398, %v4394
          %v4755 = vpack.c.b16 %v4403, %v4399
          %v4756 = vpack.c.b16 %v4404, %v4400
          %v4757 = vpack.c.b16 %v4405, %v4401
          %v4758 = vpack.c.b16 %v4406, %v4402
          %v4759 = vpack.c.b16 %v4411, %v4407
          %v4760 = vpack.c.b16 %v4412, %v4408
          %v4761 = vpack.c.b16 %v4413, %v4409
          %v4762 = vpack.c.b16 %v4414, %v4410
          %v4763 = vpack.c.b16 %v4419, %v4415
          %v4764 = vpack.c.b16 %v4420, %v4416
          %v4765 = vpack.c.b16 %v4421, %v4417
          %v4766 = vpack.c.b16 %v4422, %v4418
          %v4767 = vpack.c.b16 %v4427, %v4423
          %v4768 = vpack.c.b16 %v4428, %v4424
          %v4769 = vpack.c.b16 %v4429, %v4425
          %v4770 = vpack.c.b16 %v4430, %v4426
          %v4771 = vpack.c.b16 %v4435, %v4431
          %v4772 = vpack.c.b16 %v4436, %v4432
          %v4773 = vpack.c.b16 %v4437, %v4433
          %v4774 = vpack.c.b16 %v4438, %v4434
          %v4775 = vpack.c.b16 %v4443, %v4439
          %v4776 = vpack.c.b16 %v4444, %v4440
          %v4777 = vpack.c.b16 %v4445, %v4441
          %v4778 = vpack.c.b16 %v4446, %v4442
          %v4779 = vpack.c.b16 %v4451, %v4447
          %v4780 = vpack.c.b16 %v4452, %v4448
          %v4781 = vpack.c.b16 %v4453, %v4449
          %v4782 = vpack.c.b16 %v4454, %v4450
          %v4783 = vpack.c.b16 %v4459, %v4455
          %v4784 = vpack.c.b16 %v4460, %v4456
          %v4785 = vpack.c.b16 %v4461, %v4457
          %v4786 = vpack.c.b16 %v4462, %v4458
          %v4787 = vpack.c.b16 %v4467, %v4463
          %v4788 = vpack.c.b16 %v4468, %v4464
          %v4789 = vpack.c.b16 %v4469, %v4465
          %v4790 = vpack.c.b16 %v4470, %v4466
          %v4791 = vpack.c.b16 %v4475, %v4471
          %v4792 = vpack.c.b16 %v4476, %v4472
          %v4793 = vpack.c.b16 %v4477, %v4473
          %v4794 = vpack.c.b16 %v4478, %v4474
          %v4795 = vpack.c.b16 %v4483, %v4479
          %v4796 = vpack.c.b16 %v4484, %v4480
          %v4797 = vpack.c.b16 %v4485, %v4481
          %v4798 = vpack.c.b16 %v4486, %v4482
          %v4799 = vpack.c.b16 %v4491, %v4487
          %v4800 = vpack.c.b16 %v4492, %v4488
          %v4801 = vpack.c.b16 %v4493, %v4489
          %v4802 = vpack.c.b16 %v4494, %v4490
          %v4803 = vpack.c.b16 %v4499, %v4495
          %v4804 = vpack.c.b16 %v4500, %v4496
          %v4805 = vpack.c.b16 %v4501, %v4497
          %v4806 = vpack.c.b16 %v4502, %v4498
          %v4807 = vpack.c.b16 %v4507, %v4503
          %v4808 = vpack.c.b16 %v4508, %v4504
          %v4809 = vpack.c.b16 %v4509, %v4505
          %v4810 = vpack.c.b16 %v4510, %v4506
          %v4811 = vpack.c.b16 %v4515, %v4511
          %v4812 = vpack.c.b16 %v4516, %v4512
          %v4813 = vpack.c.b16 %v4517, %v4513
          %v4814 = vpack.c.b16 %v4518, %v4514
          %v4815 = vpack.c.b16 %v4523, %v4519
          %v4816 = vpack.c.b16 %v4524, %v4520
          %v4817 = vpack.c.b16 %v4525, %v4521
          %v4818 = vpack.c.b16 %v4526, %v4522
          %v4819 = vpack.c.b16 %v4531, %v4527
          %v4820 = vpack.c.b16 %v4532, %v4528
          %v4821 = vpack.c.b16 %v4533, %v4529
          %v4822 = vpack.c.b16 %v4534, %v4530
          %v4823 = vpack.c.b16 %v4539, %v4535
          %v4824 = vpack.c.b16 %v4540, %v4536
          %v4825 = vpack.c.b16 %v4541, %v4537
          %v4826 = vpack.c.b16 %v4542, %v4538
          %v4827 = vpack.c.b16 %v4547, %v4543
          %v4828 = vpack.c.b16 %v4548, %v4544
          %v4829 = vpack.c.b16 %v4549, %v4545
          %v4830 = vpack.c.b16 %v4550, %v4546
          %v4831 = vpack.c.b16 %v4555, %v4551
          %v4832 = vpack.c.b16 %v4556, %v4552
          %v4833 = vpack.c.b16 %v4557, %v4553
          %v4834 = vpack.c.b16 %v4558, %v4554
          %v4835 = vpack.c.b16 %v4563, %v4559
          %v4836 = vpack.c.b16 %v4564, %v4560
          %v4837 = vpack.c.b16 %v4565, %v4561
          %v4838 = vpack.c.b16 %v4566, %v4562
          %v4839 = vpack.c.b16 %v4571, %v4567
          %v4840 = vpack.c.b16 %v4572, %v4568
          %v4841 = vpack.c.b16 %v4573, %v4569
          %v4842 = vpack.c.b16 %v4574, %v4570
          %v4843 = vpack.c.b16 %v4579, %v4575
          %v4844 = vpack.c.b16 %v4580, %v4576
          %v4845 = vpack.c.b16 %v4581, %v4577
          %v4846 = vpack.c.b16 %v4582, %v4578
          %v4847 = vpack.c.b16 %v4587, %v4583
          %v4848 = vpack.c.b16 %v4588, %v4584
          %v4849 = vpack.c.b16 %v4589, %v4585
          %v4850 = vpack.c.b16 %v4590, %v4586
          %v4851 = vpack.c.b16 %v4595, %v4591
          %v4852 = vpack.c.b16 %v4596, %v4592
          %v4853 = vpack.c.b16 %v4597, %v4593
          %v4854 = vpack.c.b16 %v4598, %v4594
          %5111 = vmatprep.subr.bf16.mxu0 %v4600
          %5112 = vmatpush1.bf16.msra.mxu0 %v4599
          %5113 = vmatprep.subr.bf16.mxu0 %v4604
          %5114 = vmatpush1.bf16.msra.mxu0 %v4603
          %5115 = vmatprep.subr.bf16.mxu0 %v4608
          %5116 = vmatpush1.bf16.msra.mxu0 %v4607
          %5117 = vmatprep.subr.bf16.mxu0 %v4612
          %5118 = vmatpush1.bf16.msra.mxu0 %v4611
          %5119 = vmatprep.subr.bf16.mxu0 %v4616
          %5120 = vmatpush1.bf16.msra.mxu0 %v4615
          %5121 = vmatprep.subr.bf16.mxu0 %v4620
          %5122 = vmatpush1.bf16.msra.mxu0 %v4619
          %5123 = vmatprep.subr.bf16.mxu0 %v4624
          %5124 = vmatpush1.bf16.msra.mxu0 %v4623
          %5125 = vmatprep.subr.bf16.mxu0 %v4628
          %5126 = vmatpush1.bf16.msra.mxu0 %v4627
          %5127 = vmatprep.subr.bf16.mxu0 %v4632
          %5128 = vmatpush1.bf16.msra.mxu0 %v4631
          %5129 = vmatprep.subr.bf16.mxu0 %v4636
          %5130 = vmatpush1.bf16.msra.mxu0 %v4635
          %5131 = vmatprep.subr.bf16.mxu0 %v4640
          %5132 = vmatpush1.bf16.msra.mxu0 %v4639
          %5133 = vmatprep.subr.bf16.mxu0 %v4644
          %5134 = vmatpush1.bf16.msra.mxu0 %v4643
          %5135 = vmatprep.subr.bf16.mxu0 %v4648
          %5136 = vmatpush1.bf16.msra.mxu0 %v4647
          %5137 = vmatprep.subr.bf16.mxu0 %v4652
          %5138 = vmatpush1.bf16.msra.mxu0 %v4651
          %5139 = vmatprep.subr.bf16.mxu0 %v4656
          %5140 = vmatpush1.bf16.msra.mxu0 %v4655
          %5141 = vmatprep.subr.bf16.mxu0 %v4660
          %5142 = vmatpush1.bf16.msra.mxu0 %v4659
          %5143 = vmatprep.mubr.bf16.mxu0 %v3546
          %5144 = vmatmul.mubr.bf16.gmra.mrb[0].mxu0 %v3545
          %v5145 = vpop.f32.mrb[0].mxu0
          %v5146 = vadd.f32 %v3814, %v5145
          %v5147 = vpop.f32.mrb[0].mxu0
          %v5148 = vadd.f32 %v3818, %v5147
          %v5149 = vpop.f32.mrb[0].mxu0
          %v5150 = vpop.f32.mrb[0].mxu0
          %5151 = vdwg.mxu0
          %5152 = vmatprep.subr.bf16.mxu0 %v4664
          %5153 = vmatpush1.bf16.msra.mxu0 %v4663
          %5154 = vmatprep.subr.bf16.mxu0 %v4668
          %5155 = vmatpush1.bf16.msra.mxu0 %v4667
          %5156 = vmatprep.subr.bf16.mxu0 %v4672
          %5157 = vmatpush1.bf16.msra.mxu0 %v4671
          %5158 = vmatprep.subr.bf16.mxu0 %v4676
          %5159 = vmatpush1.bf16.msra.mxu0 %v4675
          %5160 = vmatprep.subr.bf16.mxu0 %v4680
          %5161 = vmatpush1.bf16.msra.mxu0 %v4679
          %5162 = vmatprep.subr.bf16.mxu0 %v4684
          %5163 = vmatpush1.bf16.msra.mxu0 %v4683
          %5164 = vmatprep.subr.bf16.mxu0 %v4688
          %5165 = vmatpush1.bf16.msra.mxu0 %v4687
          %5166 = vmatprep.subr.bf16.mxu0 %v4692
          %5167 = vmatpush1.bf16.msra.mxu0 %v4691
          %5168 = vmatprep.subr.bf16.mxu0 %v4696
          %5169 = vmatpush1.bf16.msra.mxu0 %v4695
          %5170 = vmatprep.subr.bf16.mxu0 %v4700
          %5171 = vmatpush1.bf16.msra.mxu0 %v4699
          %5172 = vmatprep.subr.bf16.mxu0 %v4704
          %5173 = vmatpush1.bf16.msra.mxu0 %v4703
          %5174 = vmatprep.subr.bf16.mxu0 %v4708
          %5175 = vmatpush1.bf16.msra.mxu0 %v4707
          %5176 = vmatprep.subr.bf16.mxu0 %v4712
          %5177 = vmatpush1.bf16.msra.mxu0 %v4711
          %5178 = vmatprep.subr.bf16.mxu0 %v4716
          %5179 = vmatpush1.bf16.msra.mxu0 %v4715
          %5180 = vmatprep.subr.bf16.mxu0 %v4720
          %5181 = vmatpush1.bf16.msra.mxu0 %v4719
          %5182 = vmatprep.subr.bf16.mxu0 %v4724
          %5183 = vmatpush1.bf16.msra.mxu0 %v4723
          %5184 = vmatprep.mubr.bf16.mxu0 %v3548
          %5185 = vmatmul.mubr.bf16.gmra.mrb[0].mxu0 %v3547
          %v5186 = vpop.f32.mrb[0].mxu0
          %v5187 = vadd.f32 %v5146, %v5186
          %v5188 = vpop.f32.mrb[0].mxu0
          %v5189 = vadd.f32 %v5148, %v5188
          %v5190 = vpop.f32.mrb[0].mxu0
          %v5191 = vpop.f32.mrb[0].mxu0
          %5192 = vdwg.mxu0
          %5193 = vmatprep.subr.bf16.mxu0 %v4728
          %5194 = vmatpush1.bf16.msra.mxu0 %v4727
          %5195 = vmatprep.subr.bf16.mxu0 %v4732
          %5196 = vmatpush1.bf16.msra.mxu0 %v4731
          %5197 = vmatprep.subr.bf16.mxu0 %v4736
          %5198 = vmatpush1.bf16.msra.mxu0 %v4735
          %5199 = vmatprep.subr.bf16.mxu0 %v4740
          %5200 = vmatpush1.bf16.msra.mxu0 %v4739
          %5201 = vmatprep.subr.bf16.mxu0 %v4744
          %5202 = vmatpush1.bf16.msra.mxu0 %v4743
          %5203 = vmatprep.subr.bf16.mxu0 %v4748
          %5204 = vmatpush1.bf16.msra.mxu0 %v4747
          %5205 = vmatprep.subr.bf16.mxu0 %v4752
          %5206 = vmatpush1.bf16.msra.mxu0 %v4751
          %5207 = vmatprep.subr.bf16.mxu0 %v4756
          %5208 = vmatpush1.bf16.msra.mxu0 %v4755
          %5209 = vmatprep.subr.bf16.mxu0 %v4760
          %5210 = vmatpush1.bf16.msra.mxu0 %v4759
          %5211 = vmatprep.subr.bf16.mxu0 %v4764
          %5212 = vmatpush1.bf16.msra.mxu0 %v4763
          %5213 = vmatprep.subr.bf16.mxu0 %v4768
          %5214 = vmatpush1.bf16.msra.mxu0 %v4767
          %5215 = vmatprep.subr.bf16.mxu0 %v4772
          %5216 = vmatpush1.bf16.msra.mxu0 %v4771
          %5217 = vmatprep.subr.bf16.mxu0 %v4776
          %5218 = vmatpush1.bf16.msra.mxu0 %v4775
          %5219 = vmatprep.subr.bf16.mxu0 %v4780
          %5220 = vmatpush1.bf16.msra.mxu0 %v4779
          %5221 = vmatprep.subr.bf16.mxu0 %v4784
          %5222 = vmatpush1.bf16.msra.mxu0 %v4783
          %5223 = vmatprep.subr.bf16.mxu0 %v4788
          %5224 = vmatpush1.bf16.msra.mxu0 %v4787
          %5225 = vmatprep.mubr.bf16.mxu0 %v3550
          %5226 = vmatmul.mubr.bf16.gmra.mrb[0].mxu0 %v3549
          %v5227 = vpop.f32.mrb[0].mxu0
          %v5228 = vadd.f32 %v5187, %v5227
          %v5229 = vpop.f32.mrb[0].mxu0
          %v5230 = vadd.f32 %v5189, %v5229
          %v5231 = vpop.f32.mrb[0].mxu0
          %v5232 = vpop.f32.mrb[0].mxu0
          %5233 = vdwg.mxu0
          %5234 = vmatprep.subr.bf16.mxu0 %v4792
          %5235 = vmatpush1.bf16.msra.mxu0 %v4791
          %5236 = vmatprep.subr.bf16.mxu0 %v4796
          %5237 = vmatpush1.bf16.msra.mxu0 %v4795
          %5238 = vmatprep.subr.bf16.mxu0 %v4800
          %5239 = vmatpush1.bf16.msra.mxu0 %v4799
          %5240 = vmatprep.subr.bf16.mxu0 %v4804
          %5241 = vmatpush1.bf16.msra.mxu0 %v4803
          %5242 = vmatprep.subr.bf16.mxu0 %v4808
          %5243 = vmatpush1.bf16.msra.mxu0 %v4807
          %5244 = vmatprep.subr.bf16.mxu0 %v4812
          %5245 = vmatpush1.bf16.msra.mxu0 %v4811
          %5246 = vmatprep.subr.bf16.mxu0 %v4816
          %5247 = vmatpush1.bf16.msra.mxu0 %v4815
          %5248 = vmatprep.subr.bf16.mxu0 %v4820
          %5249 = vmatpush1.bf16.msra.mxu0 %v4819
          %5250 = vmatprep.subr.bf16.mxu0 %v4824
          %5251 = vmatpush1.bf16.msra.mxu0 %v4823
          %5252 = vmatprep.subr.bf16.mxu0 %v4828
          %5253 = vmatpush1.bf16.msra.mxu0 %v4827
          %5254 = vmatprep.subr.bf16.mxu0 %v4832
          %5255 = vmatpush1.bf16.msra.mxu0 %v4831
          %5256 = vmatprep.subr.bf16.mxu0 %v4836
          %5257 = vmatpush1.bf16.msra.mxu0 %v4835
          %5258 = vmatprep.subr.bf16.mxu0 %v4840
          %5259 = vmatpush1.bf16.msra.mxu0 %v4839
          %5260 = vmatprep.subr.bf16.mxu0 %v4844
          %5261 = vmatpush1.bf16.msra.mxu0 %v4843
          %5262 = vmatprep.subr.bf16.mxu0 %v4848
          %5263 = vmatpush1.bf16.msra.mxu0 %v4847
          %5264 = vmatprep.subr.bf16.mxu0 %v4852
          %5265 = vmatpush1.bf16.msra.mxu0 %v4851
          %5266 = vmatprep.mubr.bf16.mxu0 %v3552
          %5267 = vmatmul.mubr.bf16.gmra.mrb[0].mxu0 %v3551
          %v5268 = vpop.f32.mrb[0].mxu0
          %v5269 = vadd.f32 %v5228, %v5268
          %v5270 = vpop.f32.mrb[0].mxu0
          %v5271 = vadd.f32 %v5230, %v5270
          %v5272 = vpop.f32.mrb[0].mxu0
          %v5273 = vpop.f32.mrb[0].mxu0
          %5274 = vdwg.mxu0
          %5275 = vmatprep.subr.bf16.mxu0 %v4602
          %5276 = vmatpush1.bf16.msra.mxu0 %v4601
          %5277 = vmatprep.subr.bf16.mxu0 %v4606
          %5278 = vmatpush1.bf16.msra.mxu0 %v4605
          %5279 = vmatprep.subr.bf16.mxu0 %v4610
          %5280 = vmatpush1.bf16.msra.mxu0 %v4609
          %5281 = vmatprep.subr.bf16.mxu0 %v4614
          %5282 = vmatpush1.bf16.msra.mxu0 %v4613
          %5283 = vmatprep.subr.bf16.mxu0 %v4618
          %5284 = vmatpush1.bf16.msra.mxu0 %v4617
          %5285 = vmatprep.subr.bf16.mxu0 %v4622
          %5286 = vmatpush1.bf16.msra.mxu0 %v4621
          %5287 = vmatprep.subr.bf16.mxu0 %v4626
          %5288 = vmatpush1.bf16.msra.mxu0 %v4625
          %5289 = vmatprep.subr.bf16.mxu0 %v4630
          %5290 = vmatpush1.bf16.msra.mxu0 %v4629
          %5291 = vmatprep.subr.bf16.mxu0 %v4634
          %5292 = vmatpush1.bf16.msra.mxu0 %v4633
          %5293 = vmatprep.subr.bf16.mxu0 %v4638
          %5294 = vmatpush1.bf16.msra.mxu0 %v4637
          %5295 = vmatprep.subr.bf16.mxu0 %v4642
          %5296 = vmatpush1.bf16.msra.mxu0 %v4641
          %5297 = vmatprep.subr.bf16.mxu0 %v4646
          %5298 = vmatpush1.bf16.msra.mxu0 %v4645
          %5299 = vmatprep.subr.bf16.mxu0 %v4650
          %5300 = vmatpush1.bf16.msra.mxu0 %v4649
          %5301 = vmatprep.subr.bf16.mxu0 %v4654
          %5302 = vmatpush1.bf16.msra.mxu0 %v4653
          %5303 = vmatprep.subr.bf16.mxu0 %v4658
          %5304 = vmatpush1.bf16.msra.mxu0 %v4657
          %5305 = vmatprep.subr.bf16.mxu0 %v4662
          %5306 = vmatpush1.bf16.msra.mxu0 %v4661
          %5307 = vmatprep.mubr.bf16.mxu0 %v3546
          %5308 = vmatmul.mubr.bf16.gmra.mrb[0].mxu0 %v3545
          %v5309 = vpop.f32.mrb[0].mxu0
          %v5310 = vadd.f32 %v3822, %v5309
          %v5311 = vpop.f32.mrb[0].mxu0
          %v5312 = vadd.f32 %v3826, %v5311
          %v5313 = vpop.f32.mrb[0].mxu0
          %v5314 = vpop.f32.mrb[0].mxu0
          %5315 = vdwg.mxu0
          %5316 = vmatprep.subr.bf16.mxu0 %v4666
          %5317 = vmatpush1.bf16.msra.mxu0 %v4665
          %5318 = vmatprep.subr.bf16.mxu0 %v4670
          %5319 = vmatpush1.bf16.msra.mxu0 %v4669
          %5320 = vmatprep.subr.bf16.mxu0 %v4674
          %5321 = vmatpush1.bf16.msra.mxu0 %v4673
          %5322 = vmatprep.subr.bf16.mxu0 %v4678
          %5323 = vmatpush1.bf16.msra.mxu0 %v4677
          %5324 = vmatprep.subr.bf16.mxu0 %v4682
          %5325 = vmatpush1.bf16.msra.mxu0 %v4681
          %5326 = vmatprep.subr.bf16.mxu0 %v4686
          %5327 = vmatpush1.bf16.msra.mxu0 %v4685
          %5328 = vmatprep.subr.bf16.mxu0 %v4690
          %5329 = vmatpush1.bf16.msra.mxu0 %v4689
          %5330 = vmatprep.subr.bf16.mxu0 %v4694
          %5331 = vmatpush1.bf16.msra.mxu0 %v4693
          %5332 = vmatprep.subr.bf16.mxu0 %v4698
          %5333 = vmatpush1.bf16.msra.mxu0 %v4697
          %5334 = vmatprep.subr.bf16.mxu0 %v4702
          %5335 = vmatpush1.bf16.msra.mxu0 %v4701
          %5336 = vmatprep.subr.bf16.mxu0 %v4706
          %5337 = vmatpush1.bf16.msra.mxu0 %v4705
          %5338 = vmatprep.subr.bf16.mxu0 %v4710
          %5339 = vmatpush1.bf16.msra.mxu0 %v4709
          %5340 = vmatprep.subr.bf16.mxu0 %v4714
          %5341 = vmatpush1.bf16.msra.mxu0 %v4713
          %5342 = vmatprep.subr.bf16.mxu0 %v4718
          %5343 = vmatpush1.bf16.msra.mxu0 %v4717
          %5344 = vmatprep.subr.bf16.mxu0 %v4722
          %5345 = vmatpush1.bf16.msra.mxu0 %v4721
          %5346 = vmatprep.subr.bf16.mxu0 %v4726
          %5347 = vmatpush1.bf16.msra.mxu0 %v4725
          %5348 = vmatprep.mubr.bf16.mxu0 %v3548
          %5349 = vmatmul.mubr.bf16.gmra.mrb[0].mxu0 %v3547
          %v5350 = vpop.f32.mrb[0].mxu0
          %v5351 = vadd.f32 %v5310, %v5350
          %v5352 = vpop.f32.mrb[0].mxu0
          %v5353 = vadd.f32 %v5312, %v5352
          %v5354 = vpop.f32.mrb[0].mxu0
          %v5355 = vpop.f32.mrb[0].mxu0
          %5356 = vdwg.mxu0
          %5357 = vmatprep.subr.bf16.mxu0 %v4730
          %5358 = vmatpush1.bf16.msra.mxu0 %v4729
          %5359 = vmatprep.subr.bf16.mxu0 %v4734
          %5360 = vmatpush1.bf16.msra.mxu0 %v4733
          %5361 = vmatprep.subr.bf16.mxu0 %v4738
          %5362 = vmatpush1.bf16.msra.mxu0 %v4737
          %5363 = vmatprep.subr.bf16.mxu0 %v4742
          %5364 = vmatpush1.bf16.msra.mxu0 %v4741
          %5365 = vmatprep.subr.bf16.mxu0 %v4746
          %5366 = vmatpush1.bf16.msra.mxu0 %v4745
          %5367 = vmatprep.subr.bf16.mxu0 %v4750
          %5368 = vmatpush1.bf16.msra.mxu0 %v4749
          %5369 = vmatprep.subr.bf16.mxu0 %v4754
          %5370 = vmatpush1.bf16.msra.mxu0 %v4753
          %5371 = vmatprep.subr.bf16.mxu0 %v4758
          %5372 = vmatpush1.bf16.msra.mxu0 %v4757
          %5373 = vmatprep.subr.bf16.mxu0 %v4762
          %5374 = vmatpush1.bf16.msra.mxu0 %v4761
          %5375 = vmatprep.subr.bf16.mxu0 %v4766
          %5376 = vmatpush1.bf16.msra.mxu0 %v4765
          %5377 = vmatprep.subr.bf16.mxu0 %v4770
          %5378 = vmatpush1.bf16.msra.mxu0 %v4769
          %5379 = vmatprep.subr.bf16.mxu0 %v4774
          %5380 = vmatpush1.bf16.msra.mxu0 %v4773
          %5381 = vmatprep.subr.bf16.mxu0 %v4778
          %5382 = vmatpush1.bf16.msra.mxu0 %v4777
          %5383 = vmatprep.subr.bf16.mxu0 %v4782
          %5384 = vmatpush1.bf16.msra.mxu0 %v4781
          %5385 = vmatprep.subr.bf16.mxu0 %v4786
          %5386 = vmatpush1.bf16.msra.mxu0 %v4785
          %5387 = vmatprep.subr.bf16.mxu0 %v4790
          %5388 = vmatpush1.bf16.msra.mxu0 %v4789
          %5389 = vmatprep.mubr.bf16.mxu0 %v3550
          %5390 = vmatmul.mubr.bf16.gmra.mrb[0].mxu0 %v3549
          %v5391 = vpop.f32.mrb[0].mxu0
          %v5392 = vadd.f32 %v5351, %v5391
          %v5393 = vpop.f32.mrb[0].mxu0
          %v5394 = vadd.f32 %v5353, %v5393
          %v5395 = vpop.f32.mrb[0].mxu0
          %v5396 = vpop.f32.mrb[0].mxu0
          %5397 = vdwg.mxu0
          %5398 = vmatprep.subr.bf16.mxu0 %v4794
          %5399 = vmatpush1.bf16.msra.mxu0 %v4793
          %5400 = vmatprep.subr.bf16.mxu0 %v4798
          %5401 = vmatpush1.bf16.msra.mxu0 %v4797
          %5402 = vmatprep.subr.bf16.mxu0 %v4802
          %5403 = vmatpush1.bf16.msra.mxu0 %v4801
          %5404 = vmatprep.subr.bf16.mxu0 %v4806
          %5405 = vmatpush1.bf16.msra.mxu0 %v4805
          %5406 = vmatprep.subr.bf16.mxu0 %v4810
          %5407 = vmatpush1.bf16.msra.mxu0 %v4809
          %5408 = vmatprep.subr.bf16.mxu0 %v4814
          %5409 = vmatpush1.bf16.msra.mxu0 %v4813
          %5410 = vmatprep.subr.bf16.mxu0 %v4818
          %5411 = vmatpush1.bf16.msra.mxu0 %v4817
          %5412 = vmatprep.subr.bf16.mxu0 %v4822
          %5413 = vmatpush1.bf16.msra.mxu0 %v4821
          %5414 = vmatprep.subr.bf16.mxu0 %v4826
          %5415 = vmatpush1.bf16.msra.mxu0 %v4825
          %5416 = vmatprep.subr.bf16.mxu0 %v4830
          %5417 = vmatpush1.bf16.msra.mxu0 %v4829
          %5418 = vmatprep.subr.bf16.mxu0 %v4834
          %5419 = vmatpush1.bf16.msra.mxu0 %v4833
          %5420 = vmatprep.subr.bf16.mxu0 %v4838
          %5421 = vmatpush1.bf16.msra.mxu0 %v4837
          %5422 = vmatprep.subr.bf16.mxu0 %v4842
          %5423 = vmatpush1.bf16.msra.mxu0 %v4841
          %5424 = vmatprep.subr.bf16.mxu0 %v4846
          %5425 = vmatpush1.bf16.msra.mxu0 %v4845
          %5426 = vmatprep.subr.bf16.mxu0 %v4850
          %5427 = vmatpush1.bf16.msra.mxu0 %v4849
          %5428 = vmatprep.subr.bf16.mxu0 %v4854
          %5429 = vmatpush1.bf16.msra.mxu0 %v4853
          %5430 = vmatprep.mubr.bf16.mxu0 %v3552
          %5431 = vmatmul.mubr.bf16.gmra.mrb[0].mxu0 %v3551
          %v5432 = vpop.f32.mrb[0].mxu0
          %v5433 = vadd.f32 %v5392, %v5432
          %v5434 = vpop.f32.mrb[0].mxu0
          %v5435 = vadd.f32 %v5394, %v5434
          %v5436 = vpop.f32.mrb[0].mxu0
          %v5437 = vpop.f32.mrb[0].mxu0
          %5438 = vdwg.mxu0
          %v5439 = vmax.f32 %v5269, 0.0
          %v5440 = vmax.f32 %v5271, 0.0
          %v5441 = vmax.f32 %v5433, 0.0
          %v5442 = vmax.f32 %v5435, 0.0
          %v5443 = vpack.c.bf16 %v5439, %v5439
          %v5444 = vpack.c.bf16 %v5440, %v5440
          %v5445 = vpack.c.bf16 %v5441, %v5441
          %v5446 = vpack.c.bf16 %v5442, %v5442
          %v5447 = vld [vmem:[#allocation4] sm:$0xff]
          %v5448 = vld [vmem:[#allocation4 + $0x8] sm:$0xff]
          %v5449 = vld [vmem:[#allocation4 + $0x10] sm:$0xff]
          %v5450 = vld [vmem:[#allocation4 + $0x18] sm:$0xff]
          %v5451 = vld [vmem:[#allocation4 + $0x20] sm:$0xff]
          %v5452 = vld [vmem:[#allocation4 + $0x28] sm:$0xff]
          %v5453 = vld [vmem:[#allocation4 + $0x30] sm:$0xff]
          %v5454 = vld [vmem:[#allocation4 + $0x38] sm:$0xff]
          %v5455 = vld [vmem:[#allocation4 + $0x40] sm:$0xff]
          %v5456 = vld [vmem:[#allocation4 + $0x48] sm:$0xff]
          %v5457 = vld [vmem:[#allocation4 + $0x50] sm:$0xff]
          %v5458 = vld [vmem:[#allocation4 + $0x58] sm:$0xff]
          %v5459 = vld [vmem:[#allocation4 + $0x60] sm:$0xff]
          %v5460 = vld [vmem:[#allocation4 + $0x68] sm:$0xff]
          %v5461 = vld [vmem:[#allocation4 + $0x70] sm:$0xff]
          %v5462 = vld [vmem:[#allocation4 + $0x78] sm:$0xff]
          %v5463 = vld [vmem:[#allocation4 + $0x80] sm:$0xff]
          %v5464 = vld [vmem:[#allocation4 + $0x88] sm:$0xff]
          %v5465 = vld [vmem:[#allocation4 + $0x90] sm:$0xff]
          %v5466 = vld [vmem:[#allocation4 + $0x98] sm:$0xff]
          %v5467 = vld [vmem:[#allocation4 + $0xa0] sm:$0xff]
          %v5468 = vld [vmem:[#allocation4 + $0xa8] sm:$0xff]
          %v5469 = vld [vmem:[#allocation4 + $0xb0] sm:$0xff]
          %v5470 = vld [vmem:[#allocation4 + $0xb8] sm:$0xff]
          %v5471 = vld [vmem:[#allocation4 + $0xc0] sm:$0xff]
          %v5472 = vld [vmem:[#allocation4 + $0xc8] sm:$0xff]
          %v5473 = vld [vmem:[#allocation4 + $0xd0] sm:$0xff]
          %v5474 = vld [vmem:[#allocation4 + $0xd8] sm:$0xff]
          %v5475 = vld [vmem:[#allocation4 + $0xe0] sm:$0xff]
          %v5476 = vld [vmem:[#allocation4 + $0xe8] sm:$0xff]
          %v5477 = vld [vmem:[#allocation4 + $0xf0] sm:$0xff]
          %v5478 = vld [vmem:[#allocation4 + $0xf8] sm:$0xff]
          %v5479 = vld [vmem:[#allocation4 + $0x100] sm:$0xff]
          %v5480 = vld [vmem:[#allocation4 + $0x108] sm:$0xff]
          %v5481 = vld [vmem:[#allocation4 + $0x110] sm:$0xff]
          %v5482 = vld [vmem:[#allocation4 + $0x118] sm:$0xff]
          %v5483 = vld [vmem:[#allocation4 + $0x120] sm:$0xff]
          %v5484 = vld [vmem:[#allocation4 + $0x128] sm:$0xff]
          %v5485 = vld [vmem:[#allocation4 + $0x130] sm:$0xff]
          %v5486 = vld [vmem:[#allocation4 + $0x138] sm:$0xff]
          %v5487 = vld [vmem:[#allocation4 + $0x140] sm:$0xff]
          %v5488 = vld [vmem:[#allocation4 + $0x148] sm:$0xff]
          %v5489 = vld [vmem:[#allocation4 + $0x150] sm:$0xff]
          %v5490 = vld [vmem:[#allocation4 + $0x158] sm:$0xff]
          %v5491 = vld [vmem:[#allocation4 + $0x160] sm:$0xff]
          %v5492 = vld [vmem:[#allocation4 + $0x168] sm:$0xff]
          %v5493 = vld [vmem:[#allocation4 + $0x170] sm:$0xff]
          %v5494 = vld [vmem:[#allocation4 + $0x178] sm:$0xff]
          %v5495 = vld [vmem:[#allocation4 + $0x180] sm:$0xff]
          %v5496 = vld [vmem:[#allocation4 + $0x188] sm:$0xff]
          %v5497 = vld [vmem:[#allocation4 + $0x190] sm:$0xff]
          %v5498 = vld [vmem:[#allocation4 + $0x198] sm:$0xff]
          %v5499 = vld [vmem:[#allocation4 + $0x1a0] sm:$0xff]
          %v5500 = vld [vmem:[#allocation4 + $0x1a8] sm:$0xff]
          %v5501 = vld [vmem:[#allocation4 + $0x1b0] sm:$0xff]
          %v5502 = vld [vmem:[#allocation4 + $0x1b8] sm:$0xff]
          %v5503 = vld [vmem:[#allocation4 + $0x1c0] sm:$0xff]
          %v5504 = vld [vmem:[#allocation4 + $0x1c8] sm:$0xff]
          %v5505 = vld [vmem:[#allocation4 + $0x1d0] sm:$0xff]
          %v5506 = vld [vmem:[#allocation4 + $0x1d8] sm:$0xff]
          %v5507 = vld [vmem:[#allocation4 + $0x1e0] sm:$0xff]
          %v5508 = vld [vmem:[#allocation4 + $0x1e8] sm:$0xff]
          %v5509 = vld [vmem:[#allocation4 + $0x1f0] sm:$0xff]
          %v5510 = vld [vmem:[#allocation4 + $0x1f8] sm:$0xff]
          %v5511 = vld [vmem:[%s10] sm:$0x3]
          %v5513 = vlaneseq
          %v5514 = vshrl.u32 %v5513, 7
          %v5515 = vsub.s32 0, %v5514
          %v5516 = vrot.slane %v5511, %v5515
          %v5517 = vlaneseq
          %v5518 = vshrl.u32 %v5517, 7
          %v5519 = vsub.s32 1, %v5518
          %v5520 = vrot.slane %v5511, %v5519
          %v5587 = vunpack.c.l.b16 %v5447
          %v5588 = vunpack.c.h.b16 %v5447
          %v5589 = vunpack.c.l.b16 %v5448
          %v5590 = vunpack.c.h.b16 %v5448
          %v5591 = vunpack.c.l.b16 %v5449
          %v5592 = vunpack.c.h.b16 %v5449
          %v5593 = vunpack.c.l.b16 %v5450
          %v5594 = vunpack.c.h.b16 %v5450
          %v5595 = vunpack.c.l.b16 %v5451
          %v5596 = vunpack.c.h.b16 %v5451
          %v5597 = vunpack.c.l.b16 %v5452
          %v5598 = vunpack.c.h.b16 %v5452
          %v5599 = vunpack.c.l.b16 %v5453
          %v5600 = vunpack.c.h.b16 %v5453
          %v5601 = vunpack.c.l.b16 %v5454
          %v5602 = vunpack.c.h.b16 %v5454
          %v5603 = vunpack.c.l.b16 %v5455
          %v5604 = vunpack.c.h.b16 %v5455
          %v5605 = vunpack.c.l.b16 %v5456
          %v5606 = vunpack.c.h.b16 %v5456
          %v5607 = vunpack.c.l.b16 %v5457
          %v5608 = vunpack.c.h.b16 %v5457
          %v5609 = vunpack.c.l.b16 %v5458
          %v5610 = vunpack.c.h.b16 %v5458
          %v5611 = vunpack.c.l.b16 %v5459
          %v5612 = vunpack.c.h.b16 %v5459
          %v5613 = vunpack.c.l.b16 %v5460
          %v5614 = vunpack.c.h.b16 %v5460
          %v5615 = vunpack.c.l.b16 %v5461
          %v5616 = vunpack.c.h.b16 %v5461
          %v5617 = vunpack.c.l.b16 %v5462
          %v5618 = vunpack.c.h.b16 %v5462
          %v5619 = vunpack.c.l.b16 %v5463
          %v5620 = vunpack.c.h.b16 %v5463
          %v5621 = vunpack.c.l.b16 %v5464
          %v5622 = vunpack.c.h.b16 %v5464
          %v5623 = vunpack.c.l.b16 %v5465
          %v5624 = vunpack.c.h.b16 %v5465
          %v5625 = vunpack.c.l.b16 %v5466
          %v5626 = vunpack.c.h.b16 %v5466
          %v5627 = vunpack.c.l.b16 %v5467
          %v5628 = vunpack.c.h.b16 %v5467
          %v5629 = vunpack.c.l.b16 %v5468
          %v5630 = vunpack.c.h.b16 %v5468
          %v5631 = vunpack.c.l.b16 %v5469
          %v5632 = vunpack.c.h.b16 %v5469
          %v5633 = vunpack.c.l.b16 %v5470
          %v5634 = vunpack.c.h.b16 %v5470
          %v5635 = vunpack.c.l.b16 %v5471
          %v5636 = vunpack.c.h.b16 %v5471
          %v5637 = vunpack.c.l.b16 %v5472
          %v5638 = vunpack.c.h.b16 %v5472
          %v5639 = vunpack.c.l.b16 %v5473
          %v5640 = vunpack.c.h.b16 %v5473
          %v5641 = vunpack.c.l.b16 %v5474
          %v5642 = vunpack.c.h.b16 %v5474
          %v5643 = vunpack.c.l.b16 %v5475
          %v5644 = vunpack.c.h.b16 %v5475
          %v5645 = vunpack.c.l.b16 %v5476
          %v5646 = vunpack.c.h.b16 %v5476
          %v5647 = vunpack.c.l.b16 %v5477
          %v5648 = vunpack.c.h.b16 %v5477
          %v5649 = vunpack.c.l.b16 %v5478
          %v5650 = vunpack.c.h.b16 %v5478
          %v5651 = vunpack.c.l.b16 %v5479
          %v5652 = vunpack.c.h.b16 %v5479
          %v5653 = vunpack.c.l.b16 %v5480
          %v5654 = vunpack.c.h.b16 %v5480
          %v5655 = vunpack.c.l.b16 %v5481
          %v5656 = vunpack.c.h.b16 %v5481
          %v5657 = vunpack.c.l.b16 %v5482
          %v5658 = vunpack.c.h.b16 %v5482
          %v5659 = vunpack.c.l.b16 %v5483
          %v5660 = vunpack.c.h.b16 %v5483
          %v5661 = vunpack.c.l.b16 %v5484
          %v5662 = vunpack.c.h.b16 %v5484
          %v5663 = vunpack.c.l.b16 %v5485
          %v5664 = vunpack.c.h.b16 %v5485
          %v5665 = vunpack.c.l.b16 %v5486
          %v5666 = vunpack.c.h.b16 %v5486
          %v5667 = vunpack.c.l.b16 %v5487
          %v5668 = vunpack.c.h.b16 %v5487
          %v5669 = vunpack.c.l.b16 %v5488
          %v5670 = vunpack.c.h.b16 %v5488
          %v5671 = vunpack.c.l.b16 %v5489
          %v5672 = vunpack.c.h.b16 %v5489
          %v5673 = vunpack.c.l.b16 %v5490
          %v5674 = vunpack.c.h.b16 %v5490
          %v5675 = vunpack.c.l.b16 %v5491
          %v5676 = vunpack.c.h.b16 %v5491
          %v5677 = vunpack.c.l.b16 %v5492
          %v5678 = vunpack.c.h.b16 %v5492
          %v5679 = vunpack.c.l.b16 %v5493
          %v5680 = vunpack.c.h.b16 %v5493
          %v5681 = vunpack.c.l.b16 %v5494
          %v5682 = vunpack.c.h.b16 %v5494
          %v5683 = vunpack.c.l.b16 %v5495
          %v5684 = vunpack.c.h.b16 %v5495
          %v5685 = vunpack.c.l.b16 %v5496
          %v5686 = vunpack.c.h.b16 %v5496
          %v5687 = vunpack.c.l.b16 %v5497
          %v5688 = vunpack.c.h.b16 %v5497
          %v5689 = vunpack.c.l.b16 %v5498
          %v5690 = vunpack.c.h.b16 %v5498
          %v5691 = vunpack.c.l.b16 %v5499
          %v5692 = vunpack.c.h.b16 %v5499
          %v5693 = vunpack.c.l.b16 %v5500
          %v5694 = vunpack.c.h.b16 %v5500
          %v5695 = vunpack.c.l.b16 %v5501
          %v5696 = vunpack.c.h.b16 %v5501
          %v5697 = vunpack.c.l.b16 %v5502
          %v5698 = vunpack.c.h.b16 %v5502
          %v5699 = vunpack.c.l.b16 %v5503
          %v5700 = vunpack.c.h.b16 %v5503
          %v5701 = vunpack.c.l.b16 %v5504
          %v5702 = vunpack.c.h.b16 %v5504
          %v5703 = vunpack.c.l.b16 %v5505
          %v5704 = vunpack.c.h.b16 %v5505
          %v5705 = vunpack.c.l.b16 %v5506
          %v5706 = vunpack.c.h.b16 %v5506
          %v5707 = vunpack.c.l.b16 %v5507
          %v5708 = vunpack.c.h.b16 %v5507
          %v5709 = vunpack.c.l.b16 %v5508
          %v5710 = vunpack.c.h.b16 %v5508
          %v5711 = vunpack.c.l.b16 %v5509
          %v5712 = vunpack.c.h.b16 %v5509
          %v5713 = vunpack.c.l.b16 %v5510
          %v5714 = vunpack.c.h.b16 %v5510
          %v5715 = vpack.c.b16 %v5589, %v5587
          %v5716 = vpack.c.b16 %v5590, %v5588
          %v5717 = vpack.c.b16 %v5593, %v5591
          %v5718 = vpack.c.b16 %v5594, %v5592
          %v5719 = vpack.c.b16 %v5597, %v5595
          %v5720 = vpack.c.b16 %v5598, %v5596
          %v5721 = vpack.c.b16 %v5601, %v5599
          %v5722 = vpack.c.b16 %v5602, %v5600
          %v5723 = vpack.c.b16 %v5605, %v5603
          %v5724 = vpack.c.b16 %v5606, %v5604
          %v5725 = vpack.c.b16 %v5609, %v5607
          %v5726 = vpack.c.b16 %v5610, %v5608
          %v5727 = vpack.c.b16 %v5613, %v5611
          %v5728 = vpack.c.b16 %v5614, %v5612
          %v5729 = vpack.c.b16 %v5617, %v5615
          %v5730 = vpack.c.b16 %v5618, %v5616
          %v5731 = vpack.c.b16 %v5621, %v5619
          %v5732 = vpack.c.b16 %v5622, %v5620
          %v5733 = vpack.c.b16 %v5625, %v5623
          %v5734 = vpack.c.b16 %v5626, %v5624
          %v5735 = vpack.c.b16 %v5629, %v5627
          %v5736 = vpack.c.b16 %v5630, %v5628
          %v5737 = vpack.c.b16 %v5633, %v5631
          %v5738 = vpack.c.b16 %v5634, %v5632
          %v5739 = vpack.c.b16 %v5637, %v5635
          %v5740 = vpack.c.b16 %v5638, %v5636
          %v5741 = vpack.c.b16 %v5641, %v5639
          %v5742 = vpack.c.b16 %v5642, %v5640
          %v5743 = vpack.c.b16 %v5645, %v5643
          %v5744 = vpack.c.b16 %v5646, %v5644
          %v5745 = vpack.c.b16 %v5649, %v5647
          %v5746 = vpack.c.b16 %v5650, %v5648
          %v5747 = vpack.c.b16 %v5653, %v5651
          %v5748 = vpack.c.b16 %v5654, %v5652
          %v5749 = vpack.c.b16 %v5657, %v5655
          %v5750 = vpack.c.b16 %v5658, %v5656
          %v5751 = vpack.c.b16 %v5661, %v5659
          %v5752 = vpack.c.b16 %v5662, %v5660
          %v5753 = vpack.c.b16 %v5665, %v5663
          %v5754 = vpack.c.b16 %v5666, %v5664
          %v5755 = vpack.c.b16 %v5669, %v5667
          %v5756 = vpack.c.b16 %v5670, %v5668
          %v5757 = vpack.c.b16 %v5673, %v5671
          %v5758 = vpack.c.b16 %v5674, %v5672
          %v5759 = vpack.c.b16 %v5677, %v5675
          %v5760 = vpack.c.b16 %v5678, %v5676
          %v5761 = vpack.c.b16 %v5681, %v5679
          %v5762 = vpack.c.b16 %v5682, %v5680
          %v5763 = vpack.c.b16 %v5685, %v5683
          %v5764 = vpack.c.b16 %v5686, %v5684
          %v5765 = vpack.c.b16 %v5689, %v5687
          %v5766 = vpack.c.b16 %v5690, %v5688
          %v5767 = vpack.c.b16 %v5693, %v5691
          %v5768 = vpack.c.b16 %v5694, %v5692
          %v5769 = vpack.c.b16 %v5697, %v5695
          %v5770 = vpack.c.b16 %v5698, %v5696
          %v5771 = vpack.c.b16 %v5701, %v5699
          %v5772 = vpack.c.b16 %v5702, %v5700
          %v5773 = vpack.c.b16 %v5705, %v5703
          %v5774 = vpack.c.b16 %v5706, %v5704
          %v5775 = vpack.c.b16 %v5709, %v5707
          %v5776 = vpack.c.b16 %v5710, %v5708
          %v5777 = vpack.c.b16 %v5713, %v5711
          %v5778 = vpack.c.b16 %v5714, %v5712
          %5843 = vmatprep.subr.bf16.mxu0 %v5716
          %5844 = vmatpush1.bf16.msra.mxu0 %v5715
          %5845 = vmatprep.subr.bf16.mxu0 %v5718
          %5846 = vmatpush1.bf16.msra.mxu0 %v5717
          %5847 = vmatprep.subr.bf16.mxu0 %v5720
          %5848 = vmatpush1.bf16.msra.mxu0 %v5719
          %5849 = vmatprep.subr.bf16.mxu0 %v5722
          %5850 = vmatpush1.bf16.msra.mxu0 %v5721
          %5851 = vmatprep.subr.bf16.mxu0 %v5724
          %5852 = vmatpush1.bf16.msra.mxu0 %v5723
          %5853 = vmatprep.subr.bf16.mxu0 %v5726
          %5854 = vmatpush1.bf16.msra.mxu0 %v5725
          %5855 = vmatprep.subr.bf16.mxu0 %v5728
          %5856 = vmatpush1.bf16.msra.mxu0 %v5727
          %5857 = vmatprep.subr.bf16.mxu0 %v5730
          %5858 = vmatpush1.bf16.msra.mxu0 %v5729
          %5859 = vmatprep.subr.bf16.mxu0 %v5732
          %5860 = vmatpush1.bf16.msra.mxu0 %v5731
          %5861 = vmatprep.subr.bf16.mxu0 %v5734
          %5862 = vmatpush1.bf16.msra.mxu0 %v5733
          %5863 = vmatprep.subr.bf16.mxu0 %v5736
          %5864 = vmatpush1.bf16.msra.mxu0 %v5735
          %5865 = vmatprep.subr.bf16.mxu0 %v5738
          %5866 = vmatpush1.bf16.msra.mxu0 %v5737
          %5867 = vmatprep.subr.bf16.mxu0 %v5740
          %5868 = vmatpush1.bf16.msra.mxu0 %v5739
          %5869 = vmatprep.subr.bf16.mxu0 %v5742
          %5870 = vmatpush1.bf16.msra.mxu0 %v5741
          %5871 = vmatprep.subr.bf16.mxu0 %v5744
          %5872 = vmatpush1.bf16.msra.mxu0 %v5743
          %5873 = vmatprep.subr.bf16.mxu0 %v5746
          %5874 = vmatpush1.bf16.msra.mxu0 %v5745
          %5875 = vmatprep.mubr.bf16.mxu0 %v5444
          %5876 = vmatmul.mubr.bf16.gmra.mrb[0].mxu0 %v5443
          %v5877 = vpop.f32.mrb[0].mxu0
          %v5878 = vadd.f32 %v5516, %v5877
          %v5879 = vpop.f32.mrb[0].mxu0
          %v5880 = vadd.f32 %v5520, %v5879
          %v5881 = vpop.f32.mrb[0].mxu0
          %v5882 = vpop.f32.mrb[0].mxu0
          %5883 = vdwg.mxu0
          %5884 = vmatprep.subr.bf16.mxu0 %v5748
          %5885 = vmatpush1.bf16.msra.mxu0 %v5747
          %5886 = vmatprep.subr.bf16.mxu0 %v5750
          %5887 = vmatpush1.bf16.msra.mxu0 %v5749
          %5888 = vmatprep.subr.bf16.mxu0 %v5752
          %5889 = vmatpush1.bf16.msra.mxu0 %v5751
          %5890 = vmatprep.subr.bf16.mxu0 %v5754
          %5891 = vmatpush1.bf16.msra.mxu0 %v5753
          %5892 = vmatprep.subr.bf16.mxu0 %v5756
          %5893 = vmatpush1.bf16.msra.mxu0 %v5755
          %5894 = vmatprep.subr.bf16.mxu0 %v5758
          %5895 = vmatpush1.bf16.msra.mxu0 %v5757
          %5896 = vmatprep.subr.bf16.mxu0 %v5760
          %5897 = vmatpush1.bf16.msra.mxu0 %v5759
          %5898 = vmatprep.subr.bf16.mxu0 %v5762
          %5899 = vmatpush1.bf16.msra.mxu0 %v5761
          %5900 = vmatprep.subr.bf16.mxu0 %v5764
          %5901 = vmatpush1.bf16.msra.mxu0 %v5763
          %5902 = vmatprep.subr.bf16.mxu0 %v5766
          %5903 = vmatpush1.bf16.msra.mxu0 %v5765
          %5904 = vmatprep.subr.bf16.mxu0 %v5768
          %5905 = vmatpush1.bf16.msra.mxu0 %v5767
          %5906 = vmatprep.subr.bf16.mxu0 %v5770
          %5907 = vmatpush1.bf16.msra.mxu0 %v5769
          %5908 = vmatprep.subr.bf16.mxu0 %v5772
          %5909 = vmatpush1.bf16.msra.mxu0 %v5771
          %5910 = vmatprep.subr.bf16.mxu0 %v5774
          %5911 = vmatpush1.bf16.msra.mxu0 %v5773
          %5912 = vmatprep.subr.bf16.mxu0 %v5776
          %5913 = vmatpush1.bf16.msra.mxu0 %v5775
          %5914 = vmatprep.subr.bf16.mxu0 %v5778
          %5915 = vmatpush1.bf16.msra.mxu0 %v5777
          %5916 = vmatprep.mubr.bf16.mxu0 %v5446
          %5917 = vmatmul.mubr.bf16.gmra.mrb[0].mxu0 %v5445
          %v5918 = vpop.f32.mrb[0].mxu0
          %v5919 = vadd.f32 %v5878, %v5918
          %v5920 = vpop.f32.mrb[0].mxu0
          %v5921 = vadd.f32 %v5880, %v5920
          %v5922 = vpop.f32.mrb[0].mxu0
          %v5923 = vpop.f32.mrb[0].mxu0
          %5924 = vdwg.mxu0
          %v5925 = vmax.f32 %v5919, 0.0
          %v5926 = vmax.f32 %v5921, 0.0
          %v5927 = vpack.c.bf16 %v5925, %v5925
          %v5928 = vpack.c.bf16 %v5926, %v5926
          %v5929 = vld [vmem:[%s11] sm:$0xf]
          %v5930 = vld [vmem:[%s11 + $0x4] sm:$0xf]
          %v5931 = vld [vmem:[%s11 + $0x8] sm:$0xf]
          %v5932 = vld [vmem:[%s11 + $0xc] sm:$0xf]
          %v5933 = vld [vmem:[%s11 + $0x10] sm:$0xf]
          %v5934 = vld [vmem:[%s11 + $0x14] sm:$0xf]
          %v5935 = vld [vmem:[%s11 + $0x18] sm:$0xf]
          %v5936 = vld [vmem:[%s11 + $0x1c] sm:$0xf]
          %v5937 = vld [vmem:[%s11 + $0x20] sm:$0xf]
          %v5938 = vld [vmem:[%s11 + $0x24] sm:$0xf]
          %v5939 = vld [vmem:[%s11 + $0x28] sm:$0xf]
          %v5940 = vld [vmem:[%s11 + $0x2c] sm:$0xf]
          %v5941 = vld [vmem:[%s11 + $0x30] sm:$0xf]
          %v5942 = vld [vmem:[%s11 + $0x34] sm:$0xf]
          %v5943 = vld [vmem:[%s11 + $0x38] sm:$0xf]
          %v5944 = vld [vmem:[%s11 + $0x3c] sm:$0xf]
          %v5945 = vld [vmem:[%s11 + $0x40] sm:$0xf]
          %v5946 = vld [vmem:[%s11 + $0x44] sm:$0xf]
          %v5947 = vld [vmem:[%s11 + $0x48] sm:$0xf]
          %v5948 = vld [vmem:[%s11 + $0x4c] sm:$0xf]
          %v5949 = vld [vmem:[%s11 + $0x50] sm:$0xf]
          %v5950 = vld [vmem:[%s11 + $0x54] sm:$0xf]
          %v5951 = vld [vmem:[%s11 + $0x58] sm:$0xf]
          %v5952 = vld [vmem:[%s11 + $0x5c] sm:$0xf]
          %v5953 = vld [vmem:[%s11 + $0x60] sm:$0xf]
          %v5954 = vld [vmem:[%s11 + $0x64] sm:$0xf]
          %v5955 = vld [vmem:[%s11 + $0x68] sm:$0xf]
          %v5956 = vld [vmem:[%s11 + $0x6c] sm:$0xf]
          %v5957 = vld [vmem:[%s11 + $0x70] sm:$0xf]
          %v5958 = vld [vmem:[%s11 + $0x74] sm:$0xf]
          %v5959 = vld [vmem:[%s11 + $0x78] sm:$0xf]
          %v5960 = vld [vmem:[%s11 + $0x7c] sm:$0xf]
          %v5961 = vld [vmem:[%s12] sm:$0x1]
          %v5963 = vlaneseq
          %v5964 = vshrl.u32 %v5963, 7
          %v5965 = vsub.s32 0, %v5964
          %v5966 = vrot.slane %v5961, %v5965
          %v6000 = vunpack.c.l.b16 %v5929
          %v6001 = vunpack.c.l.b16 %v5930
          %v6002 = vunpack.c.l.b16 %v5931
          %v6003 = vunpack.c.l.b16 %v5932
          %v6004 = vunpack.c.l.b16 %v5933
          %v6005 = vunpack.c.l.b16 %v5934
          %v6006 = vunpack.c.l.b16 %v5935
          %v6007 = vunpack.c.l.b16 %v5936
          %v6008 = vunpack.c.l.b16 %v5937
          %v6009 = vunpack.c.l.b16 %v5938
          %v6010 = vunpack.c.l.b16 %v5939
          %v6011 = vunpack.c.l.b16 %v5940
          %v6012 = vunpack.c.l.b16 %v5941
          %v6013 = vunpack.c.l.b16 %v5942
          %v6014 = vunpack.c.l.b16 %v5943
          %v6015 = vunpack.c.l.b16 %v5944
          %v6016 = vunpack.c.l.b16 %v5945
          %v6017 = vunpack.c.l.b16 %v5946
          %v6018 = vunpack.c.l.b16 %v5947
          %v6019 = vunpack.c.l.b16 %v5948
          %v6020 = vunpack.c.l.b16 %v5949
          %v6021 = vunpack.c.l.b16 %v5950
          %v6022 = vunpack.c.l.b16 %v5951
          %v6023 = vunpack.c.l.b16 %v5952
          %v6024 = vunpack.c.l.b16 %v5953
          %v6025 = vunpack.c.l.b16 %v5954
          %v6026 = vunpack.c.l.b16 %v5955
          %v6027 = vunpack.c.l.b16 %v5956
          %v6028 = vunpack.c.l.b16 %v5957
          %v6029 = vunpack.c.l.b16 %v5958
          %v6030 = vunpack.c.l.b16 %v5959
          %v6031 = vunpack.c.l.b16 %v5960
          %v6032 = vpack.c.b16 %v6001, %v6000
          %v6033 = vpack.c.b16 %v6003, %v6002
          %v6034 = vpack.c.b16 %v6005, %v6004
          %v6035 = vpack.c.b16 %v6007, %v6006
          %v6036 = vpack.c.b16 %v6009, %v6008
          %v6037 = vpack.c.b16 %v6011, %v6010
          %v6038 = vpack.c.b16 %v6013, %v6012
          %v6039 = vpack.c.b16 %v6015, %v6014
          %v6040 = vpack.c.b16 %v6017, %v6016
          %v6041 = vpack.c.b16 %v6019, %v6018
          %v6042 = vpack.c.b16 %v6021, %v6020
          %v6043 = vpack.c.b16 %v6023, %v6022
          %v6044 = vpack.c.b16 %v6025, %v6024
          %v6045 = vpack.c.b16 %v6027, %v6026
          %v6046 = vpack.c.b16 %v6029, %v6028
          %v6047 = vpack.c.b16 %v6031, %v6030
          %6064 = vmatprep.subr.bf16.mxu0 0
          %6065 = vmatpush1.bf16.msra.mxu0 %v6032
          %6066 = vmatprep.subr.bf16.mxu0 0
          %6067 = vmatpush1.bf16.msra.mxu0 %v6033
          %6068 = vmatprep.subr.bf16.mxu0 0
          %6069 = vmatpush1.bf16.msra.mxu0 %v6034
          %6070 = vmatprep.subr.bf16.mxu0 0
          %6071 = vmatpush1.bf16.msra.mxu0 %v6035
          %6072 = vmatprep.subr.bf16.mxu0 0
          %6073 = vmatpush1.bf16.msra.mxu0 %v6036
          %6074 = vmatprep.subr.bf16.mxu0 0
          %6075 = vmatpush1.bf16.msra.mxu0 %v6037
          %6076 = vmatprep.subr.bf16.mxu0 0
          %6077 = vmatpush1.bf16.msra.mxu0 %v6038
          %6078 = vmatprep.subr.bf16.mxu0 0
          %6079 = vmatpush1.bf16.msra.mxu0 %v6039
          %6080 = vmatprep.subr.bf16.mxu0 0
          %6081 = vmatpush1.bf16.msra.mxu0 %v6040
          %6082 = vmatprep.subr.bf16.mxu0 0
          %6083 = vmatpush1.bf16.msra.mxu0 %v6041
          %6084 = vmatprep.subr.bf16.mxu0 0
          %6085 = vmatpush1.bf16.msra.mxu0 %v6042
          %6086 = vmatprep.subr.bf16.mxu0 0
          %6087 = vmatpush1.bf16.msra.mxu0 %v6043
          %6088 = vmatprep.subr.bf16.mxu0 0
          %6089 = vmatpush1.bf16.msra.mxu0 %v6044
          %6090 = vmatprep.subr.bf16.mxu0 0
          %6091 = vmatpush1.bf16.msra.mxu0 %v6045
          %6092 = vmatprep.subr.bf16.mxu0 0
          %6093 = vmatpush1.bf16.msra.mxu0 %v6046
          %6094 = vmatprep.subr.bf16.mxu0 0
          %6095 = vmatpush1.bf16.msra.mxu0 %v6047
          %6096 = vmatprep.mubr.bf16.mxu0 %v5928
          %6097 = vmatmul.mubr.bf16.gmra.mrb[0].mxu0 %v5927
          %v6098 = vpop.f32.mrb[0].mxu0
          %v6099 = vadd.f32 %v5966, %v6098
          %v6100 = vpop.f32.mrb[0].mxu0
          %v6101 = vpop.f32.mrb[0].mxu0
          %v6102 = vpop.f32.mrb[0].mxu0
          %6103 = vdwg.mxu0
          %vm6104 = vcmask 66560
          %6105 = vst.msk [vmem:[%s631] sm:$0x3] %vm6104, %v6099
        $region122: #{tnet_forward.1} parent=105 // pred_fallthru
          _
        %p6106 = scmp.lt.s32.totalorder %s29, 1
        %s6107 = scalar_select %p6106, %s29, 1
        %s6108 = smul.addr %s6107, 2
        %s6109 = scalar_lea.vmem %s13, %s6108
        // Predicated region
        $region123: #{tnet_forward.1} parent=105 // pred_check
          %p6110 = pneg %p335
        $region124: #{tnet_forward.1} parent=105 // pred_check_branch
          %6112 = sbr.rel (%p6110) target = $region126
        $region125: #{tnet_forward.1} parent=105 // pred_region
          _
        $region126: #{tnet_forward.1} parent=105 // pred_fallthru
          _
      $region106: #{tnet_forward.1} parent=5 // pred_fallthru
        _
      %p6113 = scmp.le.s32.totalorder 2, %s20
      // Predicated region
      $region127: #{tnet_forward.1} parent=5 // pred_check
        %p6114 = pneg %p6113
      $region128: #{tnet_forward.1} parent=5 // pred_check_branch
        %6116 = sbr.rel (%p6114) target = $region130
      $region129: #{tnet_forward.1} parent=5 // pred_region
        %s6117 = ssub.s32 %s20, 2
        // Predicated region
        $region131: #{tnet_forward.1} parent=129 // pred_check
          %p6118 = pneg %p341
        $region132: #{tnet_forward.1} parent=129 // pred_check_branch
          %6120 = sbr.rel (%p6118) target = $region134
        $region133: #{tnet_forward.1} parent=129 // pred_region
          %p6121 = scmp.lt.s32.totalorder %s31, 1
          %s6122 = scalar_select %p6121, %s31, 1
          %s6123 = smul.addr %s6122, 2
          %s6124 = scalar_lea.vmem %s13, %s6123
        $region134: #{tnet_forward.1} parent=129 // pred_fallthru
          _
      $region130: #{tnet_forward.1} parent=5 // pred_fallthru
        _
    $region6: #{tnet_forward.1} parent=1 // loop_footer
      %s24 = sadd.s32 1, %s20
    $region7: #{tnet_forward.1} parent=1 // loop_footer_branch
      %19 = sbr.rel target = $region3
    $region8: #{tnet_forward.1} parent=1 // loop_exit
      _
    %6125 = vsyncpa [#allocation5], 1
    %s6126 = scalar_lea.sflag [#allocation5], 1
    %6127 = vsyncpa %s6126, 1

</llo_original>
